<compile_context>
chip_gen: v5e
topology: v5e:2x2
jax: 0.10.0
libtpu: 0.0.40
codegen_flags: <defaults>
</compile_context>

<pallas_src>
import jax
import jax.numpy as jnp
from jax.experimental import pallas as pl
from jax.experimental.pallas import tpu as pltpu

_VMEM = pl.BlockSpec(memory_space=pltpu.MemorySpace.VMEM)


# ----------------------------- Pallas kernels -------------------------------

def _conv_relu_pool_kernel(p_ref, w_ref, b_ref, o_ref):
    """Fused conv (as 4 parity matmuls) + bias + ReLU + 2x2/stride-2 max pool.

    p_ref : (4, M, K)   bf16  im2col patches; leading axis = pool position
    w_ref : (K, Cout)   bf16  flattened conv filter, column order (kh, kw, cin)
    b_ref : (1, Cout)   f32
    o_ref : (M, Cout)   bf16  pooled activations, rows ordered (n, ho, wo)
    """
    w = w_ref[...]
    b = b_ref[...]

    def branch(i):
        acc = jnp.dot(p_ref[i], w, preferred_element_type=jnp.float32)
        return jnp.maximum(acc + b, 0.0)              # bias + ReLU (f32)

    pooled = jnp.maximum(jnp.maximum(branch(0), branch(1)),
                         jnp.maximum(branch(2), branch(3)))
    o_ref[...] = pooled.astype(o_ref.dtype)


def _mlp_kernel(x_ref, w1_ref, b1_ref, w2_ref, b2_ref, o_ref):
    """Fused Linear -> ReLU -> Linear; hidden activation stays on-chip."""
    h = jnp.dot(x_ref[...], w1_ref[...], preferred_element_type=jnp.float32)
    h = jnp.maximum(h + b1_ref[...], 0.0)
    out = jnp.dot(h.astype(w2_ref.dtype), w2_ref[...],
                  preferred_element_type=jnp.float32)
    o_ref[...] = (out + b2_ref[...]).astype(o_ref.dtype)


# ------------------------------- JAX glue ------------------------------------

def _im2col_pooled(xp, k, ho, wo):
    """Padded NHWC input -> (4, N*ho*wo, k*k*Cin) parity-blocked patches.

    Block (dh, dw) holds the im2col rows of the conv-output pixels
    (2*i + dh, 2*j + dw), i.e. the 4 members of each 2x2 pool window live in
    the 4 leading-axis blocks, at the same row index.
    """
    n, _, _, cin = xp.shape
    blocks = []
    for dh in range(2):
        for dw in range(2):
            taps = []
            for kh in range(k):
                for kw in range(k):
                    r0, c0 = dh + kh, dw + kw
                    taps.append(
                        xp[:, r0:r0 + 2 * ho - 1:2, c0:c0 + 2 * wo - 1:2, :])
            blk = jnp.stack(taps, axis=3)             # (n, ho, wo, k*k, cin)
            blocks.append(blk.reshape(n * ho * wo, k * k * cin))
    return jnp.stack(blocks, axis=0)                  # (4, n*ho*wo, K)


def conv_relu_pool(x, w2d, b, k, pad):
    """x: (N,H,W,Cin) bf16 NHWC; w2d: (k*k*Cin, Cout) bf16; b: (1,Cout) f32."""
    n, h, w, _ = x.shape
    cout = w2d.shape[1]
    hc = h + 2 * pad - k + 1
    wc = w + 2 * pad - k + 1
    ho, wo = hc // 2, wc // 2                          # floor pooling
    xp = jnp.pad(x, ((0, 0), (pad, pad), (pad, pad), (0, 0)))
    patches = _im2col_pooled(xp, k, ho, wo)
    m = n * ho * wo
    pooled = pl.pallas_call(
        _conv_relu_pool_kernel,
        out_shape=jax.ShapeDtypeStruct((m, cout), jnp.bfloat16),
        in_specs=[_VMEM, _VMEM, _VMEM],
        out_specs=_VMEM,
    )(patches, w2d, b)
    return pooled.reshape(n, ho, wo, cout)


def mlp(feat, p):
    n = feat.shape[0]
    class_num = p["fc2_w"].shape[1]
    return pl.pallas_call(
        _mlp_kernel,
        out_shape=jax.ShapeDtypeStruct((n, class_num), jnp.float32),
        in_specs=[_VMEM] * 5,
        out_specs=_VMEM,
    )(feat, p["fc1_w"], p["fc1_b"], p["fc2_w"], p["fc2_b"])


def simple_convnet_forward(x, params):
    """x: (B, 2, H, W) float32 — two stacked digit images per sample."""
    b = x.shape[0]
    imgs = jnp.concatenate([x[:, 0], x[:, 1]], axis=0)          # (2B, H, W)
    imgs = imgs[..., None].astype(jnp.bfloat16)                  # (2B, H, W, 1)

    h = conv_relu_pool(imgs, params["conv1_w"], params["conv1_b"], 5, 2)  # (2B,7,7,32)
    h = conv_relu_pool(h, params["conv2_w"], params["conv2_b"], 4, 2)     # (2B,4,4,64)
    feat = h.reshape(2 * b, -1)      # NHWC flatten; fc1_w rows pre-permuted

    logits = mlp(feat, params)                                   # (2B, class_num)
    digit1, digit2 = logits[:b], logits[b:]
    cmp = jnp.argmax(digit1, axis=1) <= jnp.argmax(digit2, axis=1)
    return digit1, digit2, cmp


# ------------------------------- parameters ----------------------------------

def init_params(key, class_num=10, channels_in=1):
    """PyTorch-equivalent layouts: conv (kH,kW,Cin,Cout); linear (in,out) with
    fc1 input rows in NCHW-flatten order (like nn.Linear(16*64, 1000))."""
    ks = jax.random.split(key, 8)
    s = 0.05
    return {
        "conv1_w": jax.random.normal(ks[0], (5, 5, channels_in, 32), jnp.float32) * s,
        "conv1_b": jax.random.normal(ks[1], (32,), jnp.float32) * s,
        "conv2_w": jax.random.normal(ks[2], (4, 4, 32, 64), jnp.float32) * s,
        "conv2_b": jax.random.normal(ks[3], (64,), jnp.float32) * s,
        "fc1_w": jax.random.normal(ks[4], (16 * 64, 1000), jnp.float32) * s,
        "fc1_b": jax.random.normal(ks[5], (1000,), jnp.float32) * s,
        "fc2_w": jax.random.normal(ks[6], (1000, class_num), jnp.float32) * s,
        "fc2_b": jax.random.normal(ks[7], (class_num,), jnp.float32) * s,
    }


def prepare_params(p, feat_hw=(4, 4), feat_c=64):
    """One-time weight prep: flatten conv filters, cast MXU operands to bf16,
    and fold PyTorch's NCHW flatten into a row permutation of fc1_w so the
    kernels consume NHWC-flattened features directly."""
    fh, fw = feat_hw
    # NHWC flat position (h, w, c) must read NCHW row  c*fh*fw + h*fw + w.
    perm = jnp.transpose(
        jnp.arange(feat_c * fh * fw).reshape(feat_c, fh, fw), (1, 2, 0)
    ).reshape(-1)
    return {
        "conv1_w": p["conv1_w"].reshape(-1, p["conv1_w"].shape[-1]).astype(jnp.bfloat16),
        "conv1_b": p["conv1_b"].reshape(1, -1).astype(jnp.float32),
        "conv2_w": p["conv2_w"].reshape(-1, p["conv2_w"].shape[-1]).astype(jnp.bfloat16),
        "conv2_b": p["conv2_b"].reshape(1, -1).astype(jnp.float32),
        "fc1_w": p["fc1_w"][perm, :].astype(jnp.bfloat16),
        "fc1_b": p["fc1_b"].reshape(1, -1).astype(jnp.float32),
        "fc2_w": p["fc2_w"].astype(jnp.bfloat16),
        "fc2_b": p["fc2_b"].reshape(1, -1).astype(jnp.float32),
    }


if __name__ == "__main__":
    key = jax.random.PRNGKey(0)
    k_param, k_x = jax.random.split(key)
    params = prepare_params(init_params(k_param, class_num=10, channels_in=1))

    # (B, 2, 14, 14): two 14x14 digit images per sample (MNIST-pairs task);
    # 14x14 makes the flattened feature exactly 16*64, as nn.Linear expects.
    x = jax.random.normal(k_x, (2, 2, 14, 14), jnp.float32)

    fwd = jax.jit(simple_convnet_forward)
    digit1, digit2, cmp = fwd(x, params)
    jax.block_until_ready((digit1, digit2, cmp))

    assert digit1.shape == (2, 10) and digit2.shape == (2, 10)
    assert cmp.shape == (2,) and cmp.dtype == jnp.bool_
    print("KERNEL_OK")
</pallas_src>

<mosaic_0001>
module attributes {stable_mosaic.version = 11 : i64} {
  func.func @_conv_relu_pool_kernel(%arg0: memref<4x196x25xbf16, #tpu.memory_space<vmem>>, %arg1: memref<25x32xbf16, #tpu.memory_space<vmem>>, %arg2: memref<1x32xf32, #tpu.memory_space<vmem>>, %arg3: memref<196x32xbf16, #tpu.memory_space<vmem>>) attributes {dimension_semantics = [], scalar_prefetch = 0 : i64, scratch_operands = 0 : i64, tpu.core_type = #tpu.core_type<tc>} {
    %c0 = arith.constant 0 : index
    %c0_0 = arith.constant 0 : index
    %0 = vector.load %arg1[%c0, %c0_0] : memref<25x32xbf16, #tpu.memory_space<vmem>>, vector<25x32xbf16>
    %c0_1 = arith.constant 0 : index
    %c0_2 = arith.constant 0 : index
    %1 = vector.load %arg2[%c0_1, %c0_2] : memref<1x32xf32, #tpu.memory_space<vmem>>, vector<1x32xf32>
    %c0_3 = arith.constant 0 : index
    %c0_4 = arith.constant 0 : index
    %c0_5 = arith.constant 0 : index
    %2 = vector.load %arg0[%c0_3, %c0_4, %c0_5] : memref<4x196x25xbf16, #tpu.memory_space<vmem>>, vector<1x196x25xbf16>
    %3 = vector.shape_cast %2 : vector<1x196x25xbf16> to vector<196x25xbf16>
    %cst = arith.constant dense<0.000000e+00> : vector<196x32xf32>
    %4 = tpu.matmul %3, %0, %cst {dimension_numbers = #tpu.dot_dimension_numbers<[1], [0], [0], [1], [0, 0, 1, 1], [], []>} : vector<196x25xbf16>, vector<25x32xbf16>, vector<196x32xf32> -> vector<196x32xf32>
    %5 = vector.broadcast %1 : vector<1x32xf32> to vector<196x32xf32>
    %6 = arith.addf %4, %5 : vector<196x32xf32>
    %cst_6 = arith.constant 0.000000e+00 : f32
    %7 = vector.broadcast %cst_6 : f32 to vector<196x32xf32>
    %8 = arith.maximumf %6, %7 : vector<196x32xf32>
    %c1 = arith.constant 1 : index
    %c0_7 = arith.constant 0 : index
    %c0_8 = arith.constant 0 : index
    %9 = vector.load %arg0[%c1, %c0_7, %c0_8] : memref<4x196x25xbf16, #tpu.memory_space<vmem>>, vector<1x196x25xbf16>
    %10 = vector.shape_cast %9 : vector<1x196x25xbf16> to vector<196x25xbf16>
    %cst_9 = arith.constant dense<0.000000e+00> : vector<196x32xf32>
    %11 = tpu.matmul %10, %0, %cst_9 {dimension_numbers = #tpu.dot_dimension_numbers<[1], [0], [0], [1], [0, 0, 1, 1], [], []>} : vector<196x25xbf16>, vector<25x32xbf16>, vector<196x32xf32> -> vector<196x32xf32>
    %12 = vector.broadcast %1 : vector<1x32xf32> to vector<196x32xf32>
    %13 = arith.addf %11, %12 : vector<196x32xf32>
    %cst_10 = arith.constant 0.000000e+00 : f32
    %14 = vector.broadcast %cst_10 : f32 to vector<196x32xf32>
    %15 = arith.maximumf %13, %14 : vector<196x32xf32>
    %16 = arith.maximumf %8, %15 : vector<196x32xf32>
    %c2 = arith.constant 2 : index
    %c0_11 = arith.constant 0 : index
    %c0_12 = arith.constant 0 : index
    %17 = vector.load %arg0[%c2, %c0_11, %c0_12] : memref<4x196x25xbf16, #tpu.memory_space<vmem>>, vector<1x196x25xbf16>
    %18 = vector.shape_cast %17 : vector<1x196x25xbf16> to vector<196x25xbf16>
    %cst_13 = arith.constant dense<0.000000e+00> : vector<196x32xf32>
    %19 = tpu.matmul %18, %0, %cst_13 {dimension_numbers = #tpu.dot_dimension_numbers<[1], [0], [0], [1], [0, 0, 1, 1], [], []>} : vector<196x25xbf16>, vector<25x32xbf16>, vector<196x32xf32> -> vector<196x32xf32>
    %20 = vector.broadcast %1 : vector<1x32xf32> to vector<196x32xf32>
    %21 = arith.addf %19, %20 : vector<196x32xf32>
    %cst_14 = arith.constant 0.000000e+00 : f32
    %22 = vector.broadcast %cst_14 : f32 to vector<196x32xf32>
    %23 = arith.maximumf %21, %22 : vector<196x32xf32>
    %c3 = arith.constant 3 : index
    %c0_15 = arith.constant 0 : index
    %c0_16 = arith.constant 0 : index
    %24 = vector.load %arg0[%c3, %c0_15, %c0_16] : memref<4x196x25xbf16, #tpu.memory_space<vmem>>, vector<1x196x25xbf16>
    %25 = vector.shape_cast %24 : vector<1x196x25xbf16> to vector<196x25xbf16>
    %cst_17 = arith.constant dense<0.000000e+00> : vector<196x32xf32>
    %26 = tpu.matmul %25, %0, %cst_17 {dimension_numbers = #tpu.dot_dimension_numbers<[1], [0], [0], [1], [0, 0, 1, 1], [], []>} : vector<196x25xbf16>, vector<25x32xbf16>, vector<196x32xf32> -> vector<196x32xf32>
    %27 = vector.broadcast %1 : vector<1x32xf32> to vector<196x32xf32>
    %28 = arith.addf %26, %27 : vector<196x32xf32>
    %cst_18 = arith.constant 0.000000e+00 : f32
    %29 = vector.broadcast %cst_18 : f32 to vector<196x32xf32>
    %30 = arith.maximumf %28, %29 : vector<196x32xf32>
    %31 = arith.maximumf %23, %30 : vector<196x32xf32>
    %32 = arith.maximumf %16, %31 : vector<196x32xf32>
    %33 = arith.truncf %32 : vector<196x32xf32> to vector<196x32xbf16>
    %c0_19 = arith.constant 0 : index
    %c0_20 = arith.constant 0 : index
    %34 = vector.load %arg3[%c0_19, %c0_20] : memref<196x32xbf16, #tpu.memory_space<vmem>>, vector<196x32xbf16>
    tpu.vector_store %arg3[%c0_19, %c0_20], %33 {strides = array<i32>} : memref<196x32xbf16, #tpu.memory_space<vmem>>, vector<196x32xbf16>,
    return
  }
}

module attributes {stable_mosaic.version = 11 : i64} {
  func.func @_conv_relu_pool_kernel(%arg0: memref<4x64x512xbf16, #tpu.memory_space<vmem>>, %arg1: memref<512x64xbf16, #tpu.memory_space<vmem>>, %arg2: memref<1x64xf32, #tpu.memory_space<vmem>>, %arg3: memref<64x64xbf16, #tpu.memory_space<vmem>>) attributes {dimension_semantics = [], scalar_prefetch = 0 : i64, scratch_operands = 0 : i64, tpu.core_type = #tpu.core_type<tc>} {
    %c0 = arith.constant 0 : index
    %c0_0 = arith.constant 0 : index
    %0 = vector.load %arg1[%c0, %c0_0] : memref<512x64xbf16, #tpu.memory_space<vmem>>, vector<512x64xbf16>
    %c0_1 = arith.constant 0 : index
    %c0_2 = arith.constant 0 : index
    %1 = vector.load %arg2[%c0_1, %c0_2] : memref<1x64xf32, #tpu.memory_space<vmem>>, vector<1x64xf32>
    %c0_3 = arith.constant 0 : index
    %c0_4 = arith.constant 0 : index
    %c0_5 = arith.constant 0 : index
    %2 = vector.load %arg0[%c0_3, %c0_4, %c0_5] : memref<4x64x512xbf16, #tpu.memory_space<vmem>>, vector<1x64x512xbf16>
    %3 = vector.shape_cast %2 : vector<1x64x512xbf16> to vector<64x512xbf16>
    %cst = arith.constant dense<0.000000e+00> : vector<64x64xf32>
    %4 = tpu.matmul %3, %0, %cst {dimension_numbers = #tpu.dot_dimension_numbers<[1], [0], [0], [1], [0, 0, 1, 1], [], []>} : vector<64x512xbf16>, vector<512x64xbf16>, vector<64x64xf32> -> vector<64x64xf32>
    %5 = vector.broadcast %1 : vector<1x64xf32> to vector<64x64xf32>
    %6 = arith.addf %4, %5 : vector<64x64xf32>
    %cst_6 = arith.constant 0.000000e+00 : f32
    %7 = vector.broadcast %cst_6 : f32 to vector<64x64xf32>
    %8 = arith.maximumf %6, %7 : vector<64x64xf32>
    %c1 = arith.constant 1 : index
    %c0_7 = arith.constant 0 : index
    %c0_8 = arith.constant 0 : index
    %9 = vector.load %arg0[%c1, %c0_7, %c0_8] : memref<4x64x512xbf16, #tpu.memory_space<vmem>>, vector<1x64x512xbf16>
    %10 = vector.shape_cast %9 : vector<1x64x512xbf16> to vector<64x512xbf16>
    %cst_9 = arith.constant dense<0.000000e+00> : vector<64x64xf32>
    %11 = tpu.matmul %10, %0, %cst_9 {dimension_numbers = #tpu.dot_dimension_numbers<[1], [0], [0], [1], [0, 0, 1, 1], [], []>} : vector<64x512xbf16>, vector<512x64xbf16>, vector<64x64xf32> -> vector<64x64xf32>
    %12 = vector.broadcast %1 : vector<1x64xf32> to vector<64x64xf32>
    %13 = arith.addf %11, %12 : vector<64x64xf32>
    %cst_10 = arith.constant 0.000000e+00 : f32
    %14 = vector.broadcast %cst_10 : f32 to vector<64x64xf32>
    %15 = arith.maximumf %13, %14 : vector<64x64xf32>
    %16 = arith.maximumf %8, %15 : vector<64x64xf32>
    %c2 = arith.constant 2 : index
    %c0_11 = arith.constant 0 : index
    %c0_12 = arith.constant 0 : index
    %17 = vector.load %arg0[%c2, %c0_11, %c0_12] : memref<4x64x512xbf16, #tpu.memory_space<vmem>>, vector<1x64x512xbf16>
    %18 = vector.shape_cast %17 : vector<1x64x512xbf16> to vector<64x512xbf16>
    %cst_13 = arith.constant dense<0.000000e+00> : vector<64x64xf32>
    %19 = tpu.matmul %18, %0, %cst_13 {dimension_numbers = #tpu.dot_dimension_numbers<[1], [0], [0], [1], [0, 0, 1, 1], [], []>} : vector<64x512xbf16>, vector<512x64xbf16>, vector<64x64xf32> -> vector<64x64xf32>
    %20 = vector.broadcast %1 : vector<1x64xf32> to vector<64x64xf32>
    %21 = arith.addf %19, %20 : vector<64x64xf32>
    %cst_14 = arith.constant 0.000000e+00 : f32
    %22 = vector.broadcast %cst_14 : f32 to vector<64x64xf32>
    %23 = arith.maximumf %21, %22 : vector<64x64xf32>
    %c3 = arith.constant 3 : index
    %c0_15 = arith.constant 0 : index
    %c0_16 = arith.constant 0 : index
    %24 = vector.load %arg0[%c3, %c0_15, %c0_16] : memref<4x64x512xbf16, #tpu.memory_space<vmem>>, vector<1x64x512xbf16>
    %25 = vector.shape_cast %24 : vector<1x64x512xbf16> to vector<64x512xbf16>
    %cst_17 = arith.constant dense<0.000000e+00> : vector<64x64xf32>
    %26 = tpu.matmul %25, %0, %cst_17 {dimension_numbers = #tpu.dot_dimension_numbers<[1], [0], [0], [1], [0, 0, 1, 1], [], []>} : vector<64x512xbf16>, vector<512x64xbf16>, vector<64x64xf32> -> vector<64x64xf32>
    %27 = vector.broadcast %1 : vector<1x64xf32> to vector<64x64xf32>
    %28 = arith.addf %26, %27 : vector<64x64xf32>
    %cst_18 = arith.constant 0.000000e+00 : f32
    %29 = vector.broadcast %cst_18 : f32 to vector<64x64xf32>
    %30 = arith.maximumf %28, %29 : vector<64x64xf32>
    %31 = arith.maximumf %23, %30 : vector<64x64xf32>
    %32 = arith.maximumf %16, %31 : vector<64x64xf32>
    %33 = arith.truncf %32 : vector<64x64xf32> to vector<64x64xbf16>
    %c0_19 = arith.constant 0 : index
    %c0_20 = arith.constant 0 : index
    %34 = vector.load %arg3[%c0_19, %c0_20] : memref<64x64xbf16, #tpu.memory_space<vmem>>, vector<64x64xbf16>
    tpu.vector_store %arg3[%c0_19, %c0_20], %33 {strides = array<i32>} : memref<64x64xbf16, #tpu.memory_space<vmem>>, vector<64x64xbf16>,
    return
  }
}

module attributes {stable_mosaic.version = 11 : i64} {
  func.func @_mlp_kernel(%arg0: memref<4x1024xbf16, #tpu.memory_space<vmem>>, %arg1: memref<1024x1000xbf16, #tpu.memory_space<vmem>>, %arg2: memref<1x1000xf32, #tpu.memory_space<vmem>>, %arg3: memref<1000x10xbf16, #tpu.memory_space<vmem>>, %arg4: memref<1x10xf32, #tpu.memory_space<vmem>>, %arg5: memref<4x10xf32, #tpu.memory_space<vmem>>) attributes {dimension_semantics = [], scalar_prefetch = 0 : i64, scratch_operands = 0 : i64, tpu.core_type = #tpu.core_type<tc>} {
    %c0 = arith.constant 0 : index
    %c0_0 = arith.constant 0 : index
    %0 = vector.load %arg0[%c0, %c0_0] : memref<4x1024xbf16, #tpu.memory_space<vmem>>, vector<4x1024xbf16>
    %c0_1 = arith.constant 0 : index
    %c0_2 = arith.constant 0 : index
    %1 = vector.load %arg1[%c0_1, %c0_2] : memref<1024x1000xbf16, #tpu.memory_space<vmem>>, vector<1024x1000xbf16>
    %cst = arith.constant dense<0.000000e+00> : vector<4x1000xf32>
    %2 = tpu.matmul %0, %1, %cst {dimension_numbers = #tpu.dot_dimension_numbers<[1], [0], [0], [1], [0, 0, 1, 1], [], []>} : vector<4x1024xbf16>, vector<1024x1000xbf16>, vector<4x1000xf32> -> vector<4x1000xf32>
    %c0_3 = arith.constant 0 : index
    %c0_4 = arith.constant 0 : index
    %3 = vector.load %arg2[%c0_3, %c0_4] : memref<1x1000xf32, #tpu.memory_space<vmem>>, vector<1x1000xf32>
    %4 = vector.broadcast %3 : vector<1x1000xf32> to vector<4x1000xf32>
    %5 = arith.addf %2, %4 : vector<4x1000xf32>
    %cst_5 = arith.constant 0.000000e+00 : f32
    %6 = vector.broadcast %cst_5 : f32 to vector<4x1000xf32>
    %7 = arith.maximumf %5, %6 : vector<4x1000xf32>
    %8 = arith.truncf %7 : vector<4x1000xf32> to vector<4x1000xbf16>
    %c0_6 = arith.constant 0 : index
    %c0_7 = arith.constant 0 : index
    %9 = vector.load %arg3[%c0_6, %c0_7] : memref<1000x10xbf16, #tpu.memory_space<vmem>>, vector<1000x10xbf16>
    %cst_8 = arith.constant dense<0.000000e+00> : vector<4x10xf32>
    %10 = tpu.matmul %8, %9, %cst_8 {dimension_numbers = #tpu.dot_dimension_numbers<[1], [0], [0], [1], [0, 0, 1, 1], [], []>} : vector<4x1000xbf16>, vector<1000x10xbf16>, vector<4x10xf32> -> vector<4x10xf32>
    %c0_9 = arith.constant 0 : index
    %c0_10 = arith.constant 0 : index
    %11 = vector.load %arg4[%c0_9, %c0_10] : memref<1x10xf32, #tpu.memory_space<vmem>>, vector<1x10xf32>
    %12 = vector.broadcast %11 : vector<1x10xf32> to vector<4x10xf32>
    %13 = arith.addf %10, %12 : vector<4x10xf32>
    %c0_11 = arith.constant 0 : index
    %c0_12 = arith.constant 0 : index
    %14 = vector.load %arg5[%c0_11, %c0_12] : memref<4x10xf32, #tpu.memory_space<vmem>>, vector<4x10xf32>
    tpu.vector_store %arg5[%c0_11, %c0_12], %13 {strides = array<i32>} : memref<4x10xf32, #tpu.memory_space<vmem>>, vector<4x10xf32>,
    return
  }
}

</mosaic_0001>

<llo_original>
// kernel: simple_convnet_forward.3
$region0: #{simple_convnet_forward.3}
  #allocation0 [shape = 'u32[]', space=smem, size = 0x4, offset = 0x4, fixed_abs, tag = 'smem constant byte address 0x4 - core index']
  #allocation1 [shape = 'u32[72,128]{1,0:T(1,128)}', space=vmem, size = 0x9000, scoped, tag = 'internal scratch']
  %s0 = inlined_call_operand.vmem [shape: bf16[4,196,25], index: 0, kind: input, shape index: {}]
  %s1 = inlined_call_operand.vmem [shape: bf16[25,32], index: 1, kind: input, shape index: {}]
  %s2 = inlined_call_operand.vmem [shape: f32[1,32], index: 2, kind: input, shape index: {}]
  %s3 = inlined_call_operand.vmem [shape: bf16[196,32], index: 3, kind: output, shape index: {}]
  %s4 = sld [smem:[#allocation0]]
  $region22: #{simple_convnet_forward.3} parent=0
    _
  %s6 = ssub.s32 1, %s4
  %s7 = scalar_select 0, %s6, %s4
  // Predicated region
  $region2: #{simple_convnet_forward.3} parent=0 // pred_check
    _
  $region3: #{simple_convnet_forward.3} parent=0 // pred_check_branch
    %9 = sbr.rel (0) target = $region5
  $region4: #{simple_convnet_forward.3} parent=0 // pred_region
    _
  $region5: #{simple_convnet_forward.3} parent=0 // pred_fallthru
    _
  // Predicated region
  $region6: #{simple_convnet_forward.3} parent=0 // pred_check
    _
  $region7: #{simple_convnet_forward.3} parent=0 // pred_check_branch
    %11 = sbr.rel (0) target = $region9
  $region8: #{simple_convnet_forward.3} parent=0 // pred_region
    _
  $region9: #{simple_convnet_forward.3} parent=0 // pred_fallthru
    _
  // Predicated region
  $region10: #{simple_convnet_forward.3} parent=0 // pred_check
    _
  $region11: #{simple_convnet_forward.3} parent=0 // pred_check_branch
    %13 = sbr.rel (0) target = $region13
  $region12: #{simple_convnet_forward.3} parent=0 // pred_region
    _
  $region13: #{simple_convnet_forward.3} parent=0 // pred_fallthru
    _
  %v15 = vld [vmem:[%s1] sm:$0xf]
  %v16 = vld [vmem:[%s1 + $0x4] sm:$0xf]
  %v17 = vld [vmem:[%s1 + $0x8] sm:$0xf]
  %v18 = vld [vmem:[%s1 + $0xc] sm:$0x1]
  %v19 = vld [vmem:[%s2] sm:$0x1]
  %v20 = vld [vmem:[%s0] sm:$0xf]
  %v21 = vld [vmem:[%s0 + $0x4] sm:$0xf]
  %v22 = vld [vmem:[%s0 + $0x8] sm:$0xf]
  %v23 = vld [vmem:[%s0 + $0xc] sm:$0xf]
  %v24 = vld [vmem:[%s0 + $0x10] sm:$0xf]
  %v25 = vld [vmem:[%s0 + $0x14] sm:$0xf]
  %v26 = vld [vmem:[%s0 + $0x18] sm:$0xf]
  %v27 = vld [vmem:[%s0 + $0x1c] sm:$0xf]
  %v28 = vld [vmem:[%s0 + $0x20] sm:$0xf]
  %v29 = vld [vmem:[%s0 + $0x24] sm:$0xf]
  %v30 = vld [vmem:[%s0 + $0x28] sm:$0xf]
  %v31 = vld [vmem:[%s0 + $0x2c] sm:$0xf]
  %v32 = vld [vmem:[%s0 + $0x30] sm:$0xf]
  %v33 = vld [vmem:[%s0 + $0x34] sm:$0xf]
  %v34 = vld [vmem:[%s0 + $0x38] sm:$0xf]
  %v35 = vld [vmem:[%s0 + $0x3c] sm:$0xf]
  %v36 = vld [vmem:[%s0 + $0x40] sm:$0xf]
  %v37 = vld [vmem:[%s0 + $0x44] sm:$0xf]
  %v38 = vld [vmem:[%s0 + $0x48] sm:$0xf]
  %v39 = vld [vmem:[%s0 + $0x4c] sm:$0xf]
  %v40 = vld [vmem:[%s0 + $0x50] sm:$0xf]
  %v41 = vld [vmem:[%s0 + $0x54] sm:$0xf]
  %v42 = vld [vmem:[%s0 + $0x58] sm:$0xf]
  %v43 = vld [vmem:[%s0 + $0x5c] sm:$0xf]
  %v44 = vld [vmem:[%s0 + $0x60] sm:$0x3]
  %v46 = vperm.slane %v19, 0
  %v73 = vunpack.c.l.b16 %v20
  %v74 = vunpack.c.l.b16 %v21
  %v75 = vunpack.c.l.b16 %v22
  %v76 = vunpack.c.l.b16 %v23
  %v77 = vunpack.c.l.b16 %v24
  %v78 = vunpack.c.l.b16 %v25
  %v79 = vunpack.c.l.b16 %v26
  %v80 = vunpack.c.l.b16 %v27
  %v81 = vunpack.c.l.b16 %v28
  %v82 = vunpack.c.l.b16 %v29
  %v83 = vunpack.c.l.b16 %v30
  %v84 = vunpack.c.l.b16 %v31
  %v85 = vunpack.c.l.b16 %v32
  %v86 = vunpack.c.l.b16 %v33
  %v87 = vunpack.c.l.b16 %v34
  %v88 = vunpack.c.l.b16 %v35
  %v89 = vunpack.c.l.b16 %v36
  %v90 = vunpack.c.l.b16 %v37
  %v91 = vunpack.c.l.b16 %v38
  %v92 = vunpack.c.l.b16 %v39
  %v93 = vunpack.c.l.b16 %v40
  %v94 = vunpack.c.l.b16 %v41
  %v95 = vunpack.c.l.b16 %v42
  %v96 = vunpack.c.l.b16 %v43
  %v97 = vunpack.c.l.b16 %v44
  %v98 = vpack.c.b16 %v74, %v73
  %v99 = vpack.c.b16 %v76, %v75
  %v100 = vpack.c.b16 %v78, %v77
  %v101 = vpack.c.b16 %v80, %v79
  %v102 = vpack.c.b16 %v82, %v81
  %v103 = vpack.c.b16 %v84, %v83
  %v104 = vpack.c.b16 %v86, %v85
  %v105 = vpack.c.b16 %v88, %v87
  %v106 = vpack.c.b16 %v90, %v89
  %v107 = vpack.c.b16 %v92, %v91
  %v108 = vpack.c.b16 %v94, %v93
  %v109 = vpack.c.b16 %v96, %v95
  %v110 = vpack.c.b16 %v97, %v97
  %v115 = vunpack.c.l.b16 %v15
  %v116 = vunpack.c.l.b16 %v16
  %v117 = vunpack.c.l.b16 %v17
  %v118 = vunpack.c.l.b16 %v18
  %v119 = vpack.c.b16 %v116, %v115
  %v120 = vpack.c.b16 %v118, %v117
  %vm122 = vcmask 203776
  %v124 = vsel %vm122, %v98, 0
  %v127 = vsel %vm122, %v99, 0
  %v130 = vsel %vm122, %v100, 0
  %v133 = vsel %vm122, %v101, 0
  %v136 = vsel %vm122, %v102, 0
  %v139 = vsel %vm122, %v103, 0
  %v142 = vsel %vm122, %v104, 0
  %v145 = vsel %vm122, %v105, 0
  %v148 = vsel %vm122, %v106, 0
  %v151 = vsel %vm122, %v107, 0
  %v154 = vsel %vm122, %v108, 0
  %v157 = vsel %vm122, %v109, 0
  %v160 = vsel %vm122, %v110, 0
  %vm162 = vcmask 1043456
  %vm163 = vcmask 1044480
  %v164 = vsel %vm162, 4294967295, 65535
  %v165 = vsel %vm163, %v164, 0
  %v167 = vand.u32 %v120, %v165
  %169 = vmatpush.bf16.msra.mxu0 0
  %170 = vmatpush.bf16.msra.mxu0 0
  %171 = vmatpush.bf16.msra.mxu0 0
  %172 = vmatpush.bf16.msra.mxu0 0
  %173 = vmatpush.bf16.msra.mxu0 0
  %174 = vmatpush.bf16.msra.mxu0 0
  %175 = vmatpush.bf16.msra.mxu0 %v167
  %176 = vmatpush.bf16.msra.mxu0 %v119
  %177 = vmatmul.bf16.gmra.mxu0 %v124
  %v178 = vpop.f32.mrf.mxu0
  %v179 = vadd.f32 %v46, %v178
  %v180 = vpop.f32.mrf.mxu0
  %v181 = vadd.f32 %v46, %v180
  %182 = vmatmul.bf16.gmra.mxu0 %v127
  %v183 = vpop.f32.mrf.mxu0
  %v184 = vadd.f32 %v46, %v183
  %v185 = vpop.f32.mrf.mxu0
  %v186 = vadd.f32 %v46, %v185
  %187 = vmatmul.bf16.gmra.mxu0 %v130
  %v188 = vpop.f32.mrf.mxu0
  %v189 = vadd.f32 %v46, %v188
  %v190 = vpop.f32.mrf.mxu0
  %v191 = vadd.f32 %v46, %v190
  %192 = vmatmul.bf16.gmra.mxu0 %v133
  %v193 = vpop.f32.mrf.mxu0
  %v194 = vadd.f32 %v46, %v193
  %v195 = vpop.f32.mrf.mxu0
  %v196 = vadd.f32 %v46, %v195
  %197 = vmatmul.bf16.gmra.mxu0 %v136
  %v198 = vpop.f32.mrf.mxu0
  %v199 = vadd.f32 %v46, %v198
  %v200 = vpop.f32.mrf.mxu0
  %v201 = vadd.f32 %v46, %v200
  %202 = vmatmul.bf16.gmra.mxu0 %v139
  %v203 = vpop.f32.mrf.mxu0
  %v204 = vadd.f32 %v46, %v203
  %v205 = vpop.f32.mrf.mxu0
  %v206 = vadd.f32 %v46, %v205
  %207 = vmatmul.bf16.gmra.mxu0 %v142
  %v208 = vpop.f32.mrf.mxu0
  %v209 = vadd.f32 %v46, %v208
  %v210 = vpop.f32.mrf.mxu0
  %v211 = vadd.f32 %v46, %v210
  %212 = vmatmul.bf16.gmra.mxu0 %v145
  %v213 = vpop.f32.mrf.mxu0
  %v214 = vadd.f32 %v46, %v213
  %v215 = vpop.f32.mrf.mxu0
  %v216 = vadd.f32 %v46, %v215
  %217 = vmatmul.bf16.gmra.mxu0 %v148
  %v218 = vpop.f32.mrf.mxu0
  %v219 = vadd.f32 %v46, %v218
  %v220 = vpop.f32.mrf.mxu0
  %v221 = vadd.f32 %v46, %v220
  %222 = vmatmul.bf16.gmra.mxu0 %v151
  %v223 = vpop.f32.mrf.mxu0
  %v224 = vadd.f32 %v46, %v223
  %v225 = vpop.f32.mrf.mxu0
  %v226 = vadd.f32 %v46, %v225
  %227 = vmatmul.bf16.gmra.mxu0 %v154
  %v228 = vpop.f32.mrf.mxu0
  %v229 = vadd.f32 %v46, %v228
  %v230 = vpop.f32.mrf.mxu0
  %v231 = vadd.f32 %v46, %v230
  %232 = vmatmul.bf16.gmra.mxu0 %v157
  %v233 = vpop.f32.mrf.mxu0
  %v234 = vadd.f32 %v46, %v233
  %v235 = vpop.f32.mrf.mxu0
  %v236 = vadd.f32 %v46, %v235
  %237 = vmatmul.bf16.gmra.mxu0 %v160
  %v238 = vpop.f32.mrf.mxu0
  %v239 = vadd.f32 %v46, %v238
  %v240 = vpop.f32.mrf.mxu0
  %241 = vdwg.mxu0
  %v242 = vmax.f32 %v179, 0.0
  %v243 = vmax.f32 %v181, 0.0
  %v244 = vmax.f32 %v184, 0.0
  %v245 = vmax.f32 %v186, 0.0
  %v246 = vmax.f32 %v189, 0.0
  %v247 = vmax.f32 %v191, 0.0
  %v248 = vmax.f32 %v194, 0.0
  %v249 = vmax.f32 %v196, 0.0
  %v250 = vmax.f32 %v199, 0.0
  %v251 = vmax.f32 %v201, 0.0
  %v252 = vmax.f32 %v204, 0.0
  %v253 = vmax.f32 %v206, 0.0
  %v254 = vmax.f32 %v209, 0.0
  %v255 = vmax.f32 %v211, 0.0
  %v256 = vmax.f32 %v214, 0.0
  %v257 = vmax.f32 %v216, 0.0
  %v258 = vmax.f32 %v219, 0.0
  %v259 = vmax.f32 %v221, 0.0
  %v260 = vmax.f32 %v224, 0.0
  %v261 = vmax.f32 %v226, 0.0
  %v262 = vmax.f32 %v229, 0.0
  %v263 = vmax.f32 %v231, 0.0
  %v264 = vmax.f32 %v234, 0.0
  %v265 = vmax.f32 %v236, 0.0
  %v266 = vmax.f32 %v239, 0.0
  %s267 = scalar_lea.vmem %s0, 100
  %v268 = vld [vmem:[%s267] sm:$0xf]
  %v269 = vld [vmem:[%s267 + $0x4] sm:$0xf]
  %v270 = vld [vmem:[%s267 + $0x8] sm:$0xf]
  %v271 = vld [vmem:[%s267 + $0xc] sm:$0xf]
  %v272 = vld [vmem:[%s267 + $0x10] sm:$0xf]
  %v273 = vld [vmem:[%s267 + $0x14] sm:$0xf]
  %v274 = vld [vmem:[%s267 + $0x18] sm:$0xf]
  %v275 = vld [vmem:[%s267 + $0x1c] sm:$0xf]
  %v276 = vld [vmem:[%s267 + $0x20] sm:$0xf]
  %v277 = vld [vmem:[%s267 + $0x24] sm:$0xf]
  %v278 = vld [vmem:[%s267 + $0x28] sm:$0xf]
  %v279 = vld [vmem:[%s267 + $0x2c] sm:$0xf]
  %v280 = vld [vmem:[%s267 + $0x30] sm:$0xf]
  %v281 = vld [vmem:[%s267 + $0x34] sm:$0xf]
  %v282 = vld [vmem:[%s267 + $0x38] sm:$0xf]
  %v283 = vld [vmem:[%s267 + $0x3c] sm:$0xf]
  %v284 = vld [vmem:[%s267 + $0x40] sm:$0xf]
  %v285 = vld [vmem:[%s267 + $0x44] sm:$0xf]
  %v286 = vld [vmem:[%s267 + $0x48] sm:$0xf]
  %v287 = vld [vmem:[%s267 + $0x4c] sm:$0xf]
  %v288 = vld [vmem:[%s267 + $0x50] sm:$0xf]
  %v289 = vld [vmem:[%s267 + $0x54] sm:$0xf]
  %v290 = vld [vmem:[%s267 + $0x58] sm:$0xf]
  %v291 = vld [vmem:[%s267 + $0x5c] sm:$0xf]
  %v292 = vld [vmem:[%s267 + $0x60] sm:$0x3]
  %v318 = vunpack.c.l.b16 %v268
  %v319 = vunpack.c.l.b16 %v269
  %v320 = vunpack.c.l.b16 %v270
  %v321 = vunpack.c.l.b16 %v271
  %v322 = vunpack.c.l.b16 %v272
  %v323 = vunpack.c.l.b16 %v273
  %v324 = vunpack.c.l.b16 %v274
  %v325 = vunpack.c.l.b16 %v275
  %v326 = vunpack.c.l.b16 %v276
  %v327 = vunpack.c.l.b16 %v277
  %v328 = vunpack.c.l.b16 %v278
  %v329 = vunpack.c.l.b16 %v279
  %v330 = vunpack.c.l.b16 %v280
  %v331 = vunpack.c.l.b16 %v281
  %v332 = vunpack.c.l.b16 %v282
  %v333 = vunpack.c.l.b16 %v283
  %v334 = vunpack.c.l.b16 %v284
  %v335 = vunpack.c.l.b16 %v285
  %v336 = vunpack.c.l.b16 %v286
  %v337 = vunpack.c.l.b16 %v287
  %v338 = vunpack.c.l.b16 %v288
  %v339 = vunpack.c.l.b16 %v289
  %v340 = vunpack.c.l.b16 %v290
  %v341 = vunpack.c.l.b16 %v291
  %v342 = vunpack.c.l.b16 %v292
  %v343 = vpack.c.b16 %v319, %v318
  %v344 = vpack.c.b16 %v321, %v320
  %v345 = vpack.c.b16 %v323, %v322
  %v346 = vpack.c.b16 %v325, %v324
  %v347 = vpack.c.b16 %v327, %v326
  %v348 = vpack.c.b16 %v329, %v328
  %v349 = vpack.c.b16 %v331, %v330
  %v350 = vpack.c.b16 %v333, %v332
  %v351 = vpack.c.b16 %v335, %v334
  %v352 = vpack.c.b16 %v337, %v336
  %v353 = vpack.c.b16 %v339, %v338
  %v354 = vpack.c.b16 %v341, %v340
  %v355 = vpack.c.b16 %v342, %v342
  %v357 = vsel %vm122, %v343, 0
  %v360 = vsel %vm122, %v344, 0
  %v363 = vsel %vm122, %v345, 0
  %v366 = vsel %vm122, %v346, 0
  %v369 = vsel %vm122, %v347, 0
  %v372 = vsel %vm122, %v348, 0
  %v375 = vsel %vm122, %v349, 0
  %v378 = vsel %vm122, %v350, 0
  %v381 = vsel %vm122, %v351, 0
  %v384 = vsel %vm122, %v352, 0
  %v387 = vsel %vm122, %v353, 0
  %v390 = vsel %vm122, %v354, 0
  %v393 = vsel %vm122, %v355, 0
  %395 = vmatpush.bf16.msra.mxu0 0
  %396 = vmatpush.bf16.msra.mxu0 0
  %397 = vmatpush.bf16.msra.mxu0 0
  %398 = vmatpush.bf16.msra.mxu0 0
  %399 = vmatpush.bf16.msra.mxu0 0
  %400 = vmatpush.bf16.msra.mxu0 0
  %401 = vmatpush.bf16.msra.mxu0 %v167
  %402 = vmatpush.bf16.msra.mxu0 %v119
  %403 = vmatmul.bf16.gmra.mxu0 %v357
  %v404 = vpop.f32.mrf.mxu0
  %v405 = vadd.f32 %v46, %v404
  %v406 = vpop.f32.mrf.mxu0
  %v407 = vadd.f32 %v46, %v406
  %408 = vmatmul.bf16.gmra.mxu0 %v360
  %v409 = vpop.f32.mrf.mxu0
  %v410 = vadd.f32 %v46, %v409
  %v411 = vpop.f32.mrf.mxu0
  %v412 = vadd.f32 %v46, %v411
  %413 = vmatmul.bf16.gmra.mxu0 %v363
  %v414 = vpop.f32.mrf.mxu0
  %v415 = vadd.f32 %v46, %v414
  %v416 = vpop.f32.mrf.mxu0
  %v417 = vadd.f32 %v46, %v416
  %418 = vmatmul.bf16.gmra.mxu0 %v366
  %v419 = vpop.f32.mrf.mxu0
  %v420 = vadd.f32 %v46, %v419
  %v421 = vpop.f32.mrf.mxu0
  %v422 = vadd.f32 %v46, %v421
  %423 = vmatmul.bf16.gmra.mxu0 %v369
  %v424 = vpop.f32.mrf.mxu0
  %v425 = vadd.f32 %v46, %v424
  %v426 = vpop.f32.mrf.mxu0
  %v427 = vadd.f32 %v46, %v426
  %428 = vmatmul.bf16.gmra.mxu0 %v372
  %v429 = vpop.f32.mrf.mxu0
  %v430 = vadd.f32 %v46, %v429
  %v431 = vpop.f32.mrf.mxu0
  %v432 = vadd.f32 %v46, %v431
  %433 = vmatmul.bf16.gmra.mxu0 %v375
  %v434 = vpop.f32.mrf.mxu0
  %v435 = vadd.f32 %v46, %v434
  %v436 = vpop.f32.mrf.mxu0
  %v437 = vadd.f32 %v46, %v436
  %438 = vmatmul.bf16.gmra.mxu0 %v378
  %v439 = vpop.f32.mrf.mxu0
  %v440 = vadd.f32 %v46, %v439
  %v441 = vpop.f32.mrf.mxu0
  %v442 = vadd.f32 %v46, %v441
  %443 = vmatmul.bf16.gmra.mxu0 %v381
  %v444 = vpop.f32.mrf.mxu0
  %v445 = vadd.f32 %v46, %v444
  %v446 = vpop.f32.mrf.mxu0
  %v447 = vadd.f32 %v46, %v446
  %448 = vmatmul.bf16.gmra.mxu0 %v384
  %v449 = vpop.f32.mrf.mxu0
  %v450 = vadd.f32 %v46, %v449
  %v451 = vpop.f32.mrf.mxu0
  %v452 = vadd.f32 %v46, %v451
  %453 = vmatmul.bf16.gmra.mxu0 %v387
  %v454 = vpop.f32.mrf.mxu0
  %v455 = vadd.f32 %v46, %v454
  %v456 = vpop.f32.mrf.mxu0
  %v457 = vadd.f32 %v46, %v456
  %458 = vmatmul.bf16.gmra.mxu0 %v390
  %v459 = vpop.f32.mrf.mxu0
  %v460 = vadd.f32 %v46, %v459
  %v461 = vpop.f32.mrf.mxu0
  %v462 = vadd.f32 %v46, %v461
  %463 = vmatmul.bf16.gmra.mxu0 %v393
  %v464 = vpop.f32.mrf.mxu0
  %v465 = vadd.f32 %v46, %v464
  %v466 = vpop.f32.mrf.mxu0
  %467 = vdwg.mxu0
  %v468 = vmax.f32 %v405, 0.0
  %v469 = vmax.f32 %v407, 0.0
  %v470 = vmax.f32 %v410, 0.0
  %v471 = vmax.f32 %v412, 0.0
  %v472 = vmax.f32 %v415, 0.0
  %v473 = vmax.f32 %v417, 0.0
  %v474 = vmax.f32 %v420, 0.0
  %v475 = vmax.f32 %v422, 0.0
  %v476 = vmax.f32 %v425, 0.0
  %v477 = vmax.f32 %v427, 0.0
  %v478 = vmax.f32 %v430, 0.0
  %v479 = vmax.f32 %v432, 0.0
  %v480 = vmax.f32 %v435, 0.0
  %v481 = vmax.f32 %v437, 0.0
  %v482 = vmax.f32 %v440, 0.0
  %v483 = vmax.f32 %v442, 0.0
  %v484 = vmax.f32 %v445, 0.0
  %v485 = vmax.f32 %v447, 0.0
  %v486 = vmax.f32 %v450, 0.0
  %v487 = vmax.f32 %v452, 0.0
  %v488 = vmax.f32 %v455, 0.0
  %v489 = vmax.f32 %v457, 0.0
  %v490 = vmax.f32 %v460, 0.0
  %v491 = vmax.f32 %v462, 0.0
  %v492 = vmax.f32 %v465, 0.0
  %v493 = vmax.f32 %v242, %v468
  %v494 = vmax.f32 %v243, %v469
  %v495 = vmax.f32 %v244, %v470
  %v496 = vmax.f32 %v245, %v471
  %v497 = vmax.f32 %v246, %v472
  %v498 = vmax.f32 %v247, %v473
  %v499 = vmax.f32 %v248, %v474
  %v500 = vmax.f32 %v249, %v475
  %v501 = vmax.f32 %v250, %v476
  %v502 = vmax.f32 %v251, %v477
  %v503 = vmax.f32 %v252, %v478
  %v504 = vmax.f32 %v253, %v479
  %v505 = vmax.f32 %v254, %v480
  %v506 = vmax.f32 %v255, %v481
  %v507 = vmax.f32 %v256, %v482
  %v508 = vmax.f32 %v257, %v483
  %v509 = vmax.f32 %v258, %v484
  %v510 = vmax.f32 %v259, %v485
  %v511 = vmax.f32 %v260, %v486
  %v512 = vmax.f32 %v261, %v487
  %v513 = vmax.f32 %v262, %v488
  %v514 = vmax.f32 %v263, %v489
  %v515 = vmax.f32 %v264, %v490
  %v516 = vmax.f32 %v265, %v491
  %v517 = vmax.f32 %v266, %v492
  %s518 = scalar_lea.vmem %s0, 200
  %v519 = vld [vmem:[%s518] sm:$0xf]
  %v520 = vld [vmem:[%s518 + $0x4] sm:$0xf]
  %v521 = vld [vmem:[%s518 + $0x8] sm:$0xf]
  %v522 = vld [vmem:[%s518 + $0xc] sm:$0xf]
  %v523 = vld [vmem:[%s518 + $0x10] sm:$0xf]
  %v524 = vld [vmem:[%s518 + $0x14] sm:$0xf]
  %v525 = vld [vmem:[%s518 + $0x18] sm:$0xf]
  %v526 = vld [vmem:[%s518 + $0x1c] sm:$0xf]
  %v527 = vld [vmem:[%s518 + $0x20] sm:$0xf]
  %v528 = vld [vmem:[%s518 + $0x24] sm:$0xf]
  %v529 = vld [vmem:[%s518 + $0x28] sm:$0xf]
  %v530 = vld [vmem:[%s518 + $0x2c] sm:$0xf]
  %v531 = vld [vmem:[%s518 + $0x30] sm:$0xf]
  %v532 = vld [vmem:[%s518 + $0x34] sm:$0xf]
  %v533 = vld [vmem:[%s518 + $0x38] sm:$0xf]
  %v534 = vld [vmem:[%s518 + $0x3c] sm:$0xf]
  %v535 = vld [vmem:[%s518 + $0x40] sm:$0xf]
  %v536 = vld [vmem:[%s518 + $0x44] sm:$0xf]
  %v537 = vld [vmem:[%s518 + $0x48] sm:$0xf]
  %v538 = vld [vmem:[%s518 + $0x4c] sm:$0xf]
  %v539 = vld [vmem:[%s518 + $0x50] sm:$0xf]
  %v540 = vld [vmem:[%s518 + $0x54] sm:$0xf]
  %v541 = vld [vmem:[%s518 + $0x58] sm:$0xf]
  %v542 = vld [vmem:[%s518 + $0x5c] sm:$0xf]
  %v543 = vld [vmem:[%s518 + $0x60] sm:$0x3]
  %v569 = vunpack.c.l.b16 %v519
  %v570 = vunpack.c.l.b16 %v520
  %v571 = vunpack.c.l.b16 %v521
  %v572 = vunpack.c.l.b16 %v522
  %v573 = vunpack.c.l.b16 %v523
  %v574 = vunpack.c.l.b16 %v524
  %v575 = vunpack.c.l.b16 %v525
  %v576 = vunpack.c.l.b16 %v526
  %v577 = vunpack.c.l.b16 %v527
  %v578 = vunpack.c.l.b16 %v528
  %v579 = vunpack.c.l.b16 %v529
  %v580 = vunpack.c.l.b16 %v530
  %v581 = vunpack.c.l.b16 %v531
  %v582 = vunpack.c.l.b16 %v532
  %v583 = vunpack.c.l.b16 %v533
  %v584 = vunpack.c.l.b16 %v534
  %v585 = vunpack.c.l.b16 %v535
  %v586 = vunpack.c.l.b16 %v536
  %v587 = vunpack.c.l.b16 %v537
  %v588 = vunpack.c.l.b16 %v538
  %v589 = vunpack.c.l.b16 %v539
  %v590 = vunpack.c.l.b16 %v540
  %v591 = vunpack.c.l.b16 %v541
  %v592 = vunpack.c.l.b16 %v542
  %v593 = vunpack.c.l.b16 %v543
  %v594 = vpack.c.b16 %v570, %v569
  %v595 = vpack.c.b16 %v572, %v571
  %v596 = vpack.c.b16 %v574, %v573
  %v597 = vpack.c.b16 %v576, %v575
  %v598 = vpack.c.b16 %v578, %v577
  %v599 = vpack.c.b16 %v580, %v579
  %v600 = vpack.c.b16 %v582, %v581
  %v601 = vpack.c.b16 %v584, %v583
  %v602 = vpack.c.b16 %v586, %v585
  %v603 = vpack.c.b16 %v588, %v587
  %v604 = vpack.c.b16 %v590, %v589
  %v605 = vpack.c.b16 %v592, %v591
  %v606 = vpack.c.b16 %v593, %v593
  %v608 = vsel %vm122, %v594, 0
  %v611 = vsel %vm122, %v595, 0
  %v614 = vsel %vm122, %v596, 0
  %v617 = vsel %vm122, %v597, 0
  %v620 = vsel %vm122, %v598, 0
  %v623 = vsel %vm122, %v599, 0
  %v626 = vsel %vm122, %v600, 0
  %v629 = vsel %vm122, %v601, 0
  %v632 = vsel %vm122, %v602, 0
  %v635 = vsel %vm122, %v603, 0
  %v638 = vsel %vm122, %v604, 0
  %v641 = vsel %vm122, %v605, 0
  %v644 = vsel %vm122, %v606, 0
  %646 = vmatpush.bf16.msra.mxu0 0
  %647 = vmatpush.bf16.msra.mxu0 0
  %648 = vmatpush.bf16.msra.mxu0 0
  %649 = vmatpush.bf16.msra.mxu0 0
  %650 = vmatpush.bf16.msra.mxu0 0
  %651 = vmatpush.bf16.msra.mxu0 0
  %652 = vmatpush.bf16.msra.mxu0 %v167
  %653 = vmatpush.bf16.msra.mxu0 %v119
  %654 = vmatmul.bf16.gmra.mxu0 %v608
  %v655 = vpop.f32.mrf.mxu0
  %v656 = vadd.f32 %v46, %v655
  %v657 = vpop.f32.mrf.mxu0
  %v658 = vadd.f32 %v46, %v657
  %659 = vmatmul.bf16.gmra.mxu0 %v611
  %v660 = vpop.f32.mrf.mxu0
  %v661 = vadd.f32 %v46, %v660
  %v662 = vpop.f32.mrf.mxu0
  %v663 = vadd.f32 %v46, %v662
  %664 = vmatmul.bf16.gmra.mxu0 %v614
  %v665 = vpop.f32.mrf.mxu0
  %v666 = vadd.f32 %v46, %v665
  %v667 = vpop.f32.mrf.mxu0
  %v668 = vadd.f32 %v46, %v667
  %669 = vmatmul.bf16.gmra.mxu0 %v617
  %v670 = vpop.f32.mrf.mxu0
  %v671 = vadd.f32 %v46, %v670
  %v672 = vpop.f32.mrf.mxu0
  %v673 = vadd.f32 %v46, %v672
  %674 = vmatmul.bf16.gmra.mxu0 %v620
  %v675 = vpop.f32.mrf.mxu0
  %v676 = vadd.f32 %v46, %v675
  %v677 = vpop.f32.mrf.mxu0
  %v678 = vadd.f32 %v46, %v677
  %679 = vmatmul.bf16.gmra.mxu0 %v623
  %v680 = vpop.f32.mrf.mxu0
  %v681 = vadd.f32 %v46, %v680
  %v682 = vpop.f32.mrf.mxu0
  %v683 = vadd.f32 %v46, %v682
  %684 = vmatmul.bf16.gmra.mxu0 %v626
  %v685 = vpop.f32.mrf.mxu0
  %v686 = vadd.f32 %v46, %v685
  %v687 = vpop.f32.mrf.mxu0
  %v688 = vadd.f32 %v46, %v687
  %689 = vmatmul.bf16.gmra.mxu0 %v629
  %v690 = vpop.f32.mrf.mxu0
  %v691 = vadd.f32 %v46, %v690
  %v692 = vpop.f32.mrf.mxu0
  %v693 = vadd.f32 %v46, %v692
  %694 = vmatmul.bf16.gmra.mxu0 %v632
  %v695 = vpop.f32.mrf.mxu0
  %v696 = vadd.f32 %v46, %v695
  %v697 = vpop.f32.mrf.mxu0
  %v698 = vadd.f32 %v46, %v697
  %699 = vmatmul.bf16.gmra.mxu0 %v635
  %v700 = vpop.f32.mrf.mxu0
  %v701 = vadd.f32 %v46, %v700
  %v702 = vpop.f32.mrf.mxu0
  %v703 = vadd.f32 %v46, %v702
  %704 = vmatmul.bf16.gmra.mxu0 %v638
  %v705 = vpop.f32.mrf.mxu0
  %v706 = vadd.f32 %v46, %v705
  %v707 = vpop.f32.mrf.mxu0
  %v708 = vadd.f32 %v46, %v707
  %709 = vmatmul.bf16.gmra.mxu0 %v641
  %v710 = vpop.f32.mrf.mxu0
  %v711 = vadd.f32 %v46, %v710
  %v712 = vpop.f32.mrf.mxu0
  %v713 = vadd.f32 %v46, %v712
  %714 = vmatmul.bf16.gmra.mxu0 %v644
  %v715 = vpop.f32.mrf.mxu0
  %v716 = vadd.f32 %v46, %v715
  %v717 = vpop.f32.mrf.mxu0
  %718 = vdwg.mxu0
  %v719 = vmax.f32 %v656, 0.0
  %v720 = vmax.f32 %v658, 0.0
  %v721 = vmax.f32 %v661, 0.0
  %v722 = vmax.f32 %v663, 0.0
  %v723 = vmax.f32 %v666, 0.0
  %v724 = vmax.f32 %v668, 0.0
  %v725 = vmax.f32 %v671, 0.0
  %v726 = vmax.f32 %v673, 0.0
  %v727 = vmax.f32 %v676, 0.0
  %v728 = vmax.f32 %v678, 0.0
  %v729 = vmax.f32 %v681, 0.0
  %v730 = vmax.f32 %v683, 0.0
  %v731 = vmax.f32 %v686, 0.0
  %v732 = vmax.f32 %v688, 0.0
  %v733 = vmax.f32 %v691, 0.0
  %v734 = vmax.f32 %v693, 0.0
  %v735 = vmax.f32 %v696, 0.0
  %v736 = vmax.f32 %v698, 0.0
  %v737 = vmax.f32 %v701, 0.0
  %v738 = vmax.f32 %v703, 0.0
  %v739 = vmax.f32 %v706, 0.0
  %v740 = vmax.f32 %v708, 0.0
  %v741 = vmax.f32 %v711, 0.0
  %v742 = vmax.f32 %v713, 0.0
  %v743 = vmax.f32 %v716, 0.0
  %s744 = scalar_lea.vmem %s0, 300
  %v745 = vld [vmem:[%s744] sm:$0xf]
  %v746 = vld [vmem:[%s744 + $0x4] sm:$0xf]
  %v747 = vld [vmem:[%s744 + $0x8] sm:$0xf]
  %v748 = vld [vmem:[%s744 + $0xc] sm:$0xf]
  %v749 = vld [vmem:[%s744 + $0x10] sm:$0xf]
  %v750 = vld [vmem:[%s744 + $0x14] sm:$0xf]
  %v751 = vld [vmem:[%s744 + $0x18] sm:$0xf]
  %v752 = vld [vmem:[%s744 + $0x1c] sm:$0xf]
  %v753 = vld [vmem:[%s744 + $0x20] sm:$0xf]
  %v754 = vld [vmem:[%s744 + $0x24] sm:$0xf]
  %v755 = vld [vmem:[%s744 + $0x28] sm:$0xf]
  %v756 = vld [vmem:[%s744 + $0x2c] sm:$0xf]
  %v757 = vld [vmem:[%s744 + $0x30] sm:$0xf]
  %v758 = vld [vmem:[%s744 + $0x34] sm:$0xf]
  %v759 = vld [vmem:[%s744 + $0x38] sm:$0xf]
  %v760 = vld [vmem:[%s744 + $0x3c] sm:$0xf]
  %v761 = vld [vmem:[%s744 + $0x40] sm:$0xf]
  %v762 = vld [vmem:[%s744 + $0x44] sm:$0xf]
  %v763 = vld [vmem:[%s744 + $0x48] sm:$0xf]
  %v764 = vld [vmem:[%s744 + $0x4c] sm:$0xf]
  %v765 = vld [vmem:[%s744 + $0x50] sm:$0xf]
  %v766 = vld [vmem:[%s744 + $0x54] sm:$0xf]
  %v767 = vld [vmem:[%s744 + $0x58] sm:$0xf]
  %v768 = vld [vmem:[%s744 + $0x5c] sm:$0xf]
  %v769 = vld [vmem:[%s744 + $0x60] sm:$0x3]
  %v795 = vunpack.c.l.b16 %v745
  %v796 = vunpack.c.l.b16 %v746
  %v797 = vunpack.c.l.b16 %v747
  %v798 = vunpack.c.l.b16 %v748
  %v799 = vunpack.c.l.b16 %v749
  %v800 = vunpack.c.l.b16 %v750
  %v801 = vunpack.c.l.b16 %v751
  %v802 = vunpack.c.l.b16 %v752
  %v803 = vunpack.c.l.b16 %v753
  %v804 = vunpack.c.l.b16 %v754
  %v805 = vunpack.c.l.b16 %v755
  %v806 = vunpack.c.l.b16 %v756
  %v807 = vunpack.c.l.b16 %v757
  %v808 = vunpack.c.l.b16 %v758
  %v809 = vunpack.c.l.b16 %v759
  %v810 = vunpack.c.l.b16 %v760
  %v811 = vunpack.c.l.b16 %v761
  %v812 = vunpack.c.l.b16 %v762
  %v813 = vunpack.c.l.b16 %v763
  %v814 = vunpack.c.l.b16 %v764
  %v815 = vunpack.c.l.b16 %v765
  %v816 = vunpack.c.l.b16 %v766
  %v817 = vunpack.c.l.b16 %v767
  %v818 = vunpack.c.l.b16 %v768
  %v819 = vunpack.c.l.b16 %v769
  %v820 = vpack.c.b16 %v796, %v795
  %v821 = vpack.c.b16 %v798, %v797
  %v822 = vpack.c.b16 %v800, %v799
  %v823 = vpack.c.b16 %v802, %v801
  %v824 = vpack.c.b16 %v804, %v803
  %v825 = vpack.c.b16 %v806, %v805
  %v826 = vpack.c.b16 %v808, %v807
  %v827 = vpack.c.b16 %v810, %v809
  %v828 = vpack.c.b16 %v812, %v811
  %v829 = vpack.c.b16 %v814, %v813
  %v830 = vpack.c.b16 %v816, %v815
  %v831 = vpack.c.b16 %v818, %v817
  %v832 = vpack.c.b16 %v819, %v819
  %v834 = vsel %vm122, %v820, 0
  %v837 = vsel %vm122, %v821, 0
  %v840 = vsel %vm122, %v822, 0
  %v843 = vsel %vm122, %v823, 0
  %v846 = vsel %vm122, %v824, 0
  %v849 = vsel %vm122, %v825, 0
  %v852 = vsel %vm122, %v826, 0
  %v855 = vsel %vm122, %v827, 0
  %v858 = vsel %vm122, %v828, 0
  %v861 = vsel %vm122, %v829, 0
  %v864 = vsel %vm122, %v830, 0
  %v867 = vsel %vm122, %v831, 0
  %v870 = vsel %vm122, %v832, 0
  %872 = vmatpush.bf16.msra.mxu0 0
  %873 = vmatpush.bf16.msra.mxu0 0
  %874 = vmatpush.bf16.msra.mxu0 0
  %875 = vmatpush.bf16.msra.mxu0 0
  %876 = vmatpush.bf16.msra.mxu0 0
  %877 = vmatpush.bf16.msra.mxu0 0
  %878 = vmatpush.bf16.msra.mxu0 %v167
  %879 = vmatpush.bf16.msra.mxu0 %v119
  %880 = vmatmul.bf16.gmra.mxu0 %v834
  %v881 = vpop.f32.mrf.mxu0
  %v882 = vadd.f32 %v46, %v881
  %v883 = vpop.f32.mrf.mxu0
  %v884 = vadd.f32 %v46, %v883
  %885 = vmatmul.bf16.gmra.mxu0 %v837
  %v886 = vpop.f32.mrf.mxu0
  %v887 = vadd.f32 %v46, %v886
  %v888 = vpop.f32.mrf.mxu0
  %v889 = vadd.f32 %v46, %v888
  %890 = vmatmul.bf16.gmra.mxu0 %v840
  %v891 = vpop.f32.mrf.mxu0
  %v892 = vadd.f32 %v46, %v891
  %v893 = vpop.f32.mrf.mxu0
  %v894 = vadd.f32 %v46, %v893
  %895 = vmatmul.bf16.gmra.mxu0 %v843
  %v896 = vpop.f32.mrf.mxu0
  %v897 = vadd.f32 %v46, %v896
  %v898 = vpop.f32.mrf.mxu0
  %v899 = vadd.f32 %v46, %v898
  %900 = vmatmul.bf16.gmra.mxu0 %v846
  %v901 = vpop.f32.mrf.mxu0
  %v902 = vadd.f32 %v46, %v901
  %v903 = vpop.f32.mrf.mxu0
  %v904 = vadd.f32 %v46, %v903
  %905 = vmatmul.bf16.gmra.mxu0 %v849
  %v906 = vpop.f32.mrf.mxu0
  %v907 = vadd.f32 %v46, %v906
  %v908 = vpop.f32.mrf.mxu0
  %v909 = vadd.f32 %v46, %v908
  %910 = vmatmul.bf16.gmra.mxu0 %v852
  %v911 = vpop.f32.mrf.mxu0
  %v912 = vadd.f32 %v46, %v911
  %v913 = vpop.f32.mrf.mxu0
  %v914 = vadd.f32 %v46, %v913
  %915 = vmatmul.bf16.gmra.mxu0 %v855
  %v916 = vpop.f32.mrf.mxu0
  %v917 = vadd.f32 %v46, %v916
  %v918 = vpop.f32.mrf.mxu0
  %v919 = vadd.f32 %v46, %v918
  %920 = vmatmul.bf16.gmra.mxu0 %v858
  %v921 = vpop.f32.mrf.mxu0
  %v922 = vadd.f32 %v46, %v921
  %v923 = vpop.f32.mrf.mxu0
  %v924 = vadd.f32 %v46, %v923
  %925 = vmatmul.bf16.gmra.mxu0 %v861
  %v926 = vpop.f32.mrf.mxu0
  %v927 = vadd.f32 %v46, %v926
  %v928 = vpop.f32.mrf.mxu0
  %v929 = vadd.f32 %v46, %v928
  %930 = vmatmul.bf16.gmra.mxu0 %v864
  %v931 = vpop.f32.mrf.mxu0
  %v932 = vadd.f32 %v46, %v931
  %v933 = vpop.f32.mrf.mxu0
  %v934 = vadd.f32 %v46, %v933
  %935 = vmatmul.bf16.gmra.mxu0 %v867
  %v936 = vpop.f32.mrf.mxu0
  %v937 = vadd.f32 %v46, %v936
  %v938 = vpop.f32.mrf.mxu0
  %v939 = vadd.f32 %v46, %v938
  %940 = vmatmul.bf16.gmra.mxu0 %v870
  %v941 = vpop.f32.mrf.mxu0
  %v942 = vadd.f32 %v46, %v941
  %v943 = vpop.f32.mrf.mxu0
  %944 = vdwg.mxu0
  %v945 = vmax.f32 %v882, 0.0
  %v946 = vmax.f32 %v884, 0.0
  %v947 = vmax.f32 %v887, 0.0
  %v948 = vmax.f32 %v889, 0.0
  %v949 = vmax.f32 %v892, 0.0
  %v950 = vmax.f32 %v894, 0.0
  %v951 = vmax.f32 %v897, 0.0
  %v952 = vmax.f32 %v899, 0.0
  %v953 = vmax.f32 %v902, 0.0
  %v954 = vmax.f32 %v904, 0.0
  %v955 = vmax.f32 %v907, 0.0
  %v956 = vmax.f32 %v909, 0.0
  %v957 = vmax.f32 %v912, 0.0
  %v958 = vmax.f32 %v914, 0.0
  %v959 = vmax.f32 %v917, 0.0
  %v960 = vmax.f32 %v919, 0.0
  %v961 = vmax.f32 %v922, 0.0
  %v962 = vmax.f32 %v924, 0.0
  %v963 = vmax.f32 %v927, 0.0
  %v964 = vmax.f32 %v929, 0.0
  %v965 = vmax.f32 %v932, 0.0
  %v966 = vmax.f32 %v934, 0.0
  %v967 = vmax.f32 %v937, 0.0
  %v968 = vmax.f32 %v939, 0.0
  %v969 = vmax.f32 %v942, 0.0
  %v970 = vmax.f32 %v719, %v945
  %v971 = vmax.f32 %v720, %v946
  %v972 = vmax.f32 %v721, %v947
  %v973 = vmax.f32 %v722, %v948
  %v974 = vmax.f32 %v723, %v949
  %v975 = vmax.f32 %v724, %v950
  %v976 = vmax.f32 %v725, %v951
  %v977 = vmax.f32 %v726, %v952
  %v978 = vmax.f32 %v727, %v953
  %v979 = vmax.f32 %v728, %v954
  %v980 = vmax.f32 %v729, %v955
  %v981 = vmax.f32 %v730, %v956
  %v982 = vmax.f32 %v731, %v957
  %v983 = vmax.f32 %v732, %v958
  %v984 = vmax.f32 %v733, %v959
  %v985 = vmax.f32 %v734, %v960
  %v986 = vmax.f32 %v735, %v961
  %v987 = vmax.f32 %v736, %v962
  %v988 = vmax.f32 %v737, %v963
  %v989 = vmax.f32 %v738, %v964
  %v990 = vmax.f32 %v739, %v965
  %v991 = vmax.f32 %v740, %v966
  %v992 = vmax.f32 %v741, %v967
  %v993 = vmax.f32 %v742, %v968
  %v994 = vmax.f32 %v743, %v969
  %v995 = vmax.f32 %v493, %v970
  %v996 = vmax.f32 %v494, %v971
  %v997 = vmax.f32 %v495, %v972
  %v998 = vmax.f32 %v496, %v973
  %v999 = vmax.f32 %v497, %v974
  %v1000 = vmax.f32 %v498, %v975
  %v1001 = vmax.f32 %v499, %v976
  %v1002 = vmax.f32 %v500, %v977
  %v1003 = vmax.f32 %v501, %v978
  %v1004 = vmax.f32 %v502, %v979
  %v1005 = vmax.f32 %v503, %v980
  %v1006 = vmax.f32 %v504, %v981
  %v1007 = vmax.f32 %v505, %v982
  %v1008 = vmax.f32 %v506, %v983
  %v1009 = vmax.f32 %v507, %v984
  %v1010 = vmax.f32 %v508, %v985
  %v1011 = vmax.f32 %v509, %v986
  %v1012 = vmax.f32 %v510, %v987
  %v1013 = vmax.f32 %v511, %v988
  %v1014 = vmax.f32 %v512, %v989
  %v1015 = vmax.f32 %v513, %v990
  %v1016 = vmax.f32 %v514, %v991
  %v1017 = vmax.f32 %v515, %v992
  %v1018 = vmax.f32 %v516, %v993
  %v1019 = vmax.f32 %v517, %v994
  %v1020 = vpack.c.bf16 %v995, %v995
  %v1021 = vpack.c.bf16 %v996, %v996
  %v1022 = vpack.c.bf16 %v997, %v997
  %v1023 = vpack.c.bf16 %v998, %v998
  %v1024 = vpack.c.bf16 %v999, %v999
  %v1025 = vpack.c.bf16 %v1000, %v1000
  %v1026 = vpack.c.bf16 %v1001, %v1001
  %v1027 = vpack.c.bf16 %v1002, %v1002
  %v1028 = vpack.c.bf16 %v1003, %v1003
  %v1029 = vpack.c.bf16 %v1004, %v1004
  %v1030 = vpack.c.bf16 %v1005, %v1005
  %v1031 = vpack.c.bf16 %v1006, %v1006
  %v1032 = vpack.c.bf16 %v1007, %v1007
  %v1033 = vpack.c.bf16 %v1008, %v1008
  %v1034 = vpack.c.bf16 %v1009, %v1009
  %v1035 = vpack.c.bf16 %v1010, %v1010
  %v1036 = vpack.c.bf16 %v1011, %v1011
  %v1037 = vpack.c.bf16 %v1012, %v1012
  %v1038 = vpack.c.bf16 %v1013, %v1013
  %v1039 = vpack.c.bf16 %v1014, %v1014
  %v1040 = vpack.c.bf16 %v1015, %v1015
  %v1041 = vpack.c.bf16 %v1016, %v1016
  %v1042 = vpack.c.bf16 %v1017, %v1017
  %v1043 = vpack.c.bf16 %v1018, %v1018
  %v1044 = vpack.c.bf16 %v1019, %v1019
  %vm1045 = vcmask 257024
  %1046 = vst.msk [vmem:[%s3] sm:$0xf] %vm1045, %v1020
  %1047 = vst.msk [vmem:[%s3 + $0x4] sm:$0xf] %vm1045, %v1021
  %1048 = vst.msk [vmem:[%s3 + $0x8] sm:$0xf] %vm1045, %v1022
  %1049 = vst.msk [vmem:[%s3 + $0xc] sm:$0xf] %vm1045, %v1023
  %1050 = vst.msk [vmem:[%s3 + $0x10] sm:$0xf] %vm1045, %v1024
  %1051 = vst.msk [vmem:[%s3 + $0x14] sm:$0xf] %vm1045, %v1025
  %1052 = vst.msk [vmem:[%s3 + $0x18] sm:$0xf] %vm1045, %v1026
  %1053 = vst.msk [vmem:[%s3 + $0x1c] sm:$0xf] %vm1045, %v1027
  %1054 = vst.msk [vmem:[%s3 + $0x20] sm:$0xf] %vm1045, %v1028
  %1055 = vst.msk [vmem:[%s3 + $0x24] sm:$0xf] %vm1045, %v1029
  %1056 = vst.msk [vmem:[%s3 + $0x28] sm:$0xf] %vm1045, %v1030
  %1057 = vst.msk [vmem:[%s3 + $0x2c] sm:$0xf] %vm1045, %v1031
  %1058 = vst.msk [vmem:[%s3 + $0x30] sm:$0xf] %vm1045, %v1032
  %1059 = vst.msk [vmem:[%s3 + $0x34] sm:$0xf] %vm1045, %v1033
  %1060 = vst.msk [vmem:[%s3 + $0x38] sm:$0xf] %vm1045, %v1034
  %1061 = vst.msk [vmem:[%s3 + $0x3c] sm:$0xf] %vm1045, %v1035
  %1062 = vst.msk [vmem:[%s3 + $0x40] sm:$0xf] %vm1045, %v1036
  %1063 = vst.msk [vmem:[%s3 + $0x44] sm:$0xf] %vm1045, %v1037
  %1064 = vst.msk [vmem:[%s3 + $0x48] sm:$0xf] %vm1045, %v1038
  %1065 = vst.msk [vmem:[%s3 + $0x4c] sm:$0xf] %vm1045, %v1039
  %1066 = vst.msk [vmem:[%s3 + $0x50] sm:$0xf] %vm1045, %v1040
  %1067 = vst.msk [vmem:[%s3 + $0x54] sm:$0xf] %vm1045, %v1041
  %1068 = vst.msk [vmem:[%s3 + $0x58] sm:$0xf] %vm1045, %v1042
  %1069 = vst.msk [vmem:[%s3 + $0x5c] sm:$0xf] %vm1045, %v1043
  %vm1070 = vcmask 254976
  %1071 = vst.msk [vmem:[%s3 + $0x60] sm:$0x3] %vm1070, %v1044
  // Predicated region
  $region14: #{simple_convnet_forward.3} parent=0 // pred_check
    _
  $region15: #{simple_convnet_forward.3} parent=0 // pred_check_branch
    %1073 = sbr.rel (0) target = $region17
  $region16: #{simple_convnet_forward.3} parent=0 // pred_region
    _
  $region17: #{simple_convnet_forward.3} parent=0 // pred_fallthru
    _
  // Predicated region
  $region18: #{simple_convnet_forward.3} parent=0 // pred_check
    _
  $region19: #{simple_convnet_forward.3} parent=0 // pred_check_branch
    %1075 = sbr.rel (0) target = $region21
  $region20: #{simple_convnet_forward.3} parent=0 // pred_region
    _
  $region21: #{simple_convnet_forward.3} parent=0 // pred_fallthru
    _

// kernel: le.1
$region0: #{le.1}
  #allocation2 [shape = 's32[1]{0}', space=sflag, size = 0x4, scoped, tag = 'scoped memory for le.1']
  %s0 = inlined_call_operand.vmem [shape: s32[2], index: 0, kind: input, shape index: {}]
  %s1 = inlined_call_operand.vmem [shape: s32[2], index: 1, kind: input, shape index: {}]
  %s2 = inlined_call_operand.hbm [shape: pred[2], index: 2, kind: output, shape index: {}]
  $region1: #{le.1} parent=0
    #allocation0 [shape = 'u8[512]{0}', space=vmem, size = 0x400, scoped, tag = 'operand span for operand 2']
    #allocation1 [shape = 's32[1]{0}', space=sflag, size = 0x4, scoped, tag = 'scoped memory for le.1']
    %3 = vsyncpa [#allocation1], 0
    %v4 = vld [vmem:[%s0] sm:$0x1]
    %v5 = vld [vmem:[%s1] sm:$0x1]
    %6 = xla_tuple %v4, %v5
    %7 = xla_tuple %6
    %vm8 = vcmp.le.s32.totalorder %v4, %v5
    %v9 = vsel %vm8, 1, 0
    %10 = xla_tuple %v9
    %v11 = vpack.c.b16 0, %v9
    %v12 = vpack.c.b8 0, %v11
    %s14 = ssub.s32 2, 1
    %15 = vst [vmem:[#allocation0] sm:%s14] %v12
    %17 = vsyncadd [#allocation1], 0
    %s19 = sshll.u32 [#allocation0], 4
    %s20 = int_to_ptr.vmem [resolvable:$true] %s19
    %s21 = sshll.u32 %s2, 4
    %s22 = int_to_ptr.hbm [resolvable:$true] %s21
    %24 = dma.vmem_to_hbm [thread:$0]  %s20, 16, %s22, [#allocation1]
    %26 = dma.done [#allocation1], 16
    %27 = vsyncpa [#allocation1], 1

// kernel: simple_convnet_forward.4
$region0: #{simple_convnet_forward.4}
  #allocation0 [shape = 'u32[]', space=smem, size = 0x4, offset = 0x4, fixed_abs, tag = 'smem constant byte address 0x4 - core index']
  #allocation1 [shape = 'u32[72,128]{1,0:T(1,128)}', space=vmem, size = 0x9000, scoped, tag = 'internal scratch']
  %s0 = inlined_call_operand.vmem [shape: bf16[4,64,512], index: 0, kind: input, shape index: {}]
  %s1 = inlined_call_operand.vmem [shape: bf16[512,64], index: 1, kind: input, shape index: {}]
  %s2 = inlined_call_operand.vmem [shape: f32[1,64], index: 2, kind: input, shape index: {}]
  %s3 = inlined_call_operand.vmem [shape: bf16[64,64], index: 3, kind: output, shape index: {}]
  %s4 = sld [smem:[#allocation0]]
  $region22: #{simple_convnet_forward.4} parent=0
    _
  %s6 = ssub.s32 1, %s4
  %s7 = scalar_select 0, %s6, %s4
  // Predicated region
  $region2: #{simple_convnet_forward.4} parent=0 // pred_check
    _
  $region3: #{simple_convnet_forward.4} parent=0 // pred_check_branch
    %9 = sbr.rel (0) target = $region5
  $region4: #{simple_convnet_forward.4} parent=0 // pred_region
    _
  $region5: #{simple_convnet_forward.4} parent=0 // pred_fallthru
    _
  // Predicated region
  $region6: #{simple_convnet_forward.4} parent=0 // pred_check
    _
  $region7: #{simple_convnet_forward.4} parent=0 // pred_check_branch
    %11 = sbr.rel (0) target = $region9
  $region8: #{simple_convnet_forward.4} parent=0 // pred_region
    _
  $region9: #{simple_convnet_forward.4} parent=0 // pred_fallthru
    _
  // Predicated region
  $region10: #{simple_convnet_forward.4} parent=0 // pred_check
    _
  $region11: #{simple_convnet_forward.4} parent=0 // pred_check_branch
    %13 = sbr.rel (0) target = $region13
  $region12: #{simple_convnet_forward.4} parent=0 // pred_region
    _
  $region13: #{simple_convnet_forward.4} parent=0 // pred_fallthru
    _
  %v14 = vld [vmem:[%s1] sm:$0xf]
  %v15 = vld [vmem:[%s1 + $0x4] sm:$0xf]
  %v16 = vld [vmem:[%s1 + $0x8] sm:$0xf]
  %v17 = vld [vmem:[%s1 + $0xc] sm:$0xf]
  %v18 = vld [vmem:[%s1 + $0x10] sm:$0xf]
  %v19 = vld [vmem:[%s1 + $0x14] sm:$0xf]
  %v20 = vld [vmem:[%s1 + $0x18] sm:$0xf]
  %v21 = vld [vmem:[%s1 + $0x1c] sm:$0xf]
  %v22 = vld [vmem:[%s1 + $0x20] sm:$0xf]
  %v23 = vld [vmem:[%s1 + $0x24] sm:$0xf]
  %v24 = vld [vmem:[%s1 + $0x28] sm:$0xf]
  %v25 = vld [vmem:[%s1 + $0x2c] sm:$0xf]
  %v26 = vld [vmem:[%s1 + $0x30] sm:$0xf]
  %v27 = vld [vmem:[%s1 + $0x34] sm:$0xf]
  %v28 = vld [vmem:[%s1 + $0x38] sm:$0xf]
  %v29 = vld [vmem:[%s1 + $0x3c] sm:$0xf]
  %v30 = vld [vmem:[%s1 + $0x40] sm:$0xf]
  %v31 = vld [vmem:[%s1 + $0x44] sm:$0xf]
  %v32 = vld [vmem:[%s1 + $0x48] sm:$0xf]
  %v33 = vld [vmem:[%s1 + $0x4c] sm:$0xf]
  %v34 = vld [vmem:[%s1 + $0x50] sm:$0xf]
  %v35 = vld [vmem:[%s1 + $0x54] sm:$0xf]
  %v36 = vld [vmem:[%s1 + $0x58] sm:$0xf]
  %v37 = vld [vmem:[%s1 + $0x5c] sm:$0xf]
  %v38 = vld [vmem:[%s1 + $0x60] sm:$0xf]
  %v39 = vld [vmem:[%s1 + $0x64] sm:$0xf]
  %v40 = vld [vmem:[%s1 + $0x68] sm:$0xf]
  %v41 = vld [vmem:[%s1 + $0x6c] sm:$0xf]
  %v42 = vld [vmem:[%s1 + $0x70] sm:$0xf]
  %v43 = vld [vmem:[%s1 + $0x74] sm:$0xf]
  %v44 = vld [vmem:[%s1 + $0x78] sm:$0xf]
  %v45 = vld [vmem:[%s1 + $0x7c] sm:$0xf]
  %v46 = vld [vmem:[%s1 + $0x80] sm:$0xf]
  %v47 = vld [vmem:[%s1 + $0x84] sm:$0xf]
  %v48 = vld [vmem:[%s1 + $0x88] sm:$0xf]
  %v49 = vld [vmem:[%s1 + $0x8c] sm:$0xf]
  %v50 = vld [vmem:[%s1 + $0x90] sm:$0xf]
  %v51 = vld [vmem:[%s1 + $0x94] sm:$0xf]
  %v52 = vld [vmem:[%s1 + $0x98] sm:$0xf]
  %v53 = vld [vmem:[%s1 + $0x9c] sm:$0xf]
  %v54 = vld [vmem:[%s1 + $0xa0] sm:$0xf]
  %v55 = vld [vmem:[%s1 + $0xa4] sm:$0xf]
  %v56 = vld [vmem:[%s1 + $0xa8] sm:$0xf]
  %v57 = vld [vmem:[%s1 + $0xac] sm:$0xf]
  %v58 = vld [vmem:[%s1 + $0xb0] sm:$0xf]
  %v59 = vld [vmem:[%s1 + $0xb4] sm:$0xf]
  %v60 = vld [vmem:[%s1 + $0xb8] sm:$0xf]
  %v61 = vld [vmem:[%s1 + $0xbc] sm:$0xf]
  %v62 = vld [vmem:[%s1 + $0xc0] sm:$0xf]
  %v63 = vld [vmem:[%s1 + $0xc4] sm:$0xf]
  %v64 = vld [vmem:[%s1 + $0xc8] sm:$0xf]
  %v65 = vld [vmem:[%s1 + $0xcc] sm:$0xf]
  %v66 = vld [vmem:[%s1 + $0xd0] sm:$0xf]
  %v67 = vld [vmem:[%s1 + $0xd4] sm:$0xf]
  %v68 = vld [vmem:[%s1 + $0xd8] sm:$0xf]
  %v69 = vld [vmem:[%s1 + $0xdc] sm:$0xf]
  %v70 = vld [vmem:[%s1 + $0xe0] sm:$0xf]
  %v71 = vld [vmem:[%s1 + $0xe4] sm:$0xf]
  %v72 = vld [vmem:[%s1 + $0xe8] sm:$0xf]
  %v73 = vld [vmem:[%s1 + $0xec] sm:$0xf]
  %v74 = vld [vmem:[%s1 + $0xf0] sm:$0xf]
  %v75 = vld [vmem:[%s1 + $0xf4] sm:$0xf]
  %v76 = vld [vmem:[%s1 + $0xf8] sm:$0xf]
  %v77 = vld [vmem:[%s1 + $0xfc] sm:$0xf]
  %v78 = vld [vmem:[%s2] sm:$0x1]
  %v79 = vld [vmem:[%s0] sm:$0xff]
  %v80 = vld [vmem:[%s0 + $0x8] sm:$0xff]
  %v81 = vld [vmem:[%s0 + $0x10] sm:$0xff]
  %v82 = vld [vmem:[%s0 + $0x18] sm:$0xff]
  %v83 = vld [vmem:[%s0 + $0x20] sm:$0xff]
  %v84 = vld [vmem:[%s0 + $0x28] sm:$0xff]
  %v85 = vld [vmem:[%s0 + $0x30] sm:$0xff]
  %v86 = vld [vmem:[%s0 + $0x38] sm:$0xff]
  %v87 = vld [vmem:[%s0 + $0x40] sm:$0xff]
  %v88 = vld [vmem:[%s0 + $0x48] sm:$0xff]
  %v89 = vld [vmem:[%s0 + $0x50] sm:$0xff]
  %v90 = vld [vmem:[%s0 + $0x58] sm:$0xff]
  %v91 = vld [vmem:[%s0 + $0x60] sm:$0xff]
  %v92 = vld [vmem:[%s0 + $0x68] sm:$0xff]
  %v93 = vld [vmem:[%s0 + $0x70] sm:$0xff]
  %v94 = vld [vmem:[%s0 + $0x78] sm:$0xff]
  %v96 = vperm.slane %v78, 0
  %v114 = vunpack.c.l.b16 %v79
  %v115 = vunpack.c.h.b16 %v79
  %v116 = vunpack.c.l.b16 %v80
  %v117 = vunpack.c.h.b16 %v80
  %v118 = vunpack.c.l.b16 %v81
  %v119 = vunpack.c.h.b16 %v81
  %v120 = vunpack.c.l.b16 %v82
  %v121 = vunpack.c.h.b16 %v82
  %v122 = vunpack.c.l.b16 %v83
  %v123 = vunpack.c.h.b16 %v83
  %v124 = vunpack.c.l.b16 %v84
  %v125 = vunpack.c.h.b16 %v84
  %v126 = vunpack.c.l.b16 %v85
  %v127 = vunpack.c.h.b16 %v85
  %v128 = vunpack.c.l.b16 %v86
  %v129 = vunpack.c.h.b16 %v86
  %v130 = vunpack.c.l.b16 %v87
  %v131 = vunpack.c.h.b16 %v87
  %v132 = vunpack.c.l.b16 %v88
  %v133 = vunpack.c.h.b16 %v88
  %v134 = vunpack.c.l.b16 %v89
  %v135 = vunpack.c.h.b16 %v89
  %v136 = vunpack.c.l.b16 %v90
  %v137 = vunpack.c.h.b16 %v90
  %v138 = vunpack.c.l.b16 %v91
  %v139 = vunpack.c.h.b16 %v91
  %v140 = vunpack.c.l.b16 %v92
  %v141 = vunpack.c.h.b16 %v92
  %v142 = vunpack.c.l.b16 %v93
  %v143 = vunpack.c.h.b16 %v93
  %v144 = vunpack.c.l.b16 %v94
  %v145 = vunpack.c.h.b16 %v94
  %v146 = vpack.c.b16 %v118, %v114
  %v147 = vpack.c.b16 %v119, %v115
  %v148 = vpack.c.b16 %v120, %v116
  %v149 = vpack.c.b16 %v121, %v117
  %v150 = vpack.c.b16 %v126, %v122
  %v151 = vpack.c.b16 %v127, %v123
  %v152 = vpack.c.b16 %v128, %v124
  %v153 = vpack.c.b16 %v129, %v125
  %v154 = vpack.c.b16 %v134, %v130
  %v155 = vpack.c.b16 %v135, %v131
  %v156 = vpack.c.b16 %v136, %v132
  %v157 = vpack.c.b16 %v137, %v133
  %v158 = vpack.c.b16 %v142, %v138
  %v159 = vpack.c.b16 %v143, %v139
  %v160 = vpack.c.b16 %v144, %v140
  %v161 = vpack.c.b16 %v145, %v141
  %v242 = vunpack.c.l.b16 %v14
  %v243 = vunpack.c.l.b16 %v15
  %v244 = vunpack.c.l.b16 %v16
  %v245 = vunpack.c.l.b16 %v17
  %v246 = vunpack.c.l.b16 %v18
  %v247 = vunpack.c.l.b16 %v19
  %v248 = vunpack.c.l.b16 %v20
  %v249 = vunpack.c.l.b16 %v21
  %v250 = vunpack.c.l.b16 %v22
  %v251 = vunpack.c.l.b16 %v23
  %v252 = vunpack.c.l.b16 %v24
  %v253 = vunpack.c.l.b16 %v25
  %v254 = vunpack.c.l.b16 %v26
  %v255 = vunpack.c.l.b16 %v27
  %v256 = vunpack.c.l.b16 %v28
  %v257 = vunpack.c.l.b16 %v29
  %v258 = vunpack.c.l.b16 %v30
  %v259 = vunpack.c.l.b16 %v31
  %v260 = vunpack.c.l.b16 %v32
  %v261 = vunpack.c.l.b16 %v33
  %v262 = vunpack.c.l.b16 %v34
  %v263 = vunpack.c.l.b16 %v35
  %v264 = vunpack.c.l.b16 %v36
  %v265 = vunpack.c.l.b16 %v37
  %v266 = vunpack.c.l.b16 %v38
  %v267 = vunpack.c.l.b16 %v39
  %v268 = vunpack.c.l.b16 %v40
  %v269 = vunpack.c.l.b16 %v41
  %v270 = vunpack.c.l.b16 %v42
  %v271 = vunpack.c.l.b16 %v43
  %v272 = vunpack.c.l.b16 %v44
  %v273 = vunpack.c.l.b16 %v45
  %v274 = vunpack.c.l.b16 %v46
  %v275 = vunpack.c.l.b16 %v47
  %v276 = vunpack.c.l.b16 %v48
  %v277 = vunpack.c.l.b16 %v49
  %v278 = vunpack.c.l.b16 %v50
  %v279 = vunpack.c.l.b16 %v51
  %v280 = vunpack.c.l.b16 %v52
  %v281 = vunpack.c.l.b16 %v53
  %v282 = vunpack.c.l.b16 %v54
  %v283 = vunpack.c.l.b16 %v55
  %v284 = vunpack.c.l.b16 %v56
  %v285 = vunpack.c.l.b16 %v57
  %v286 = vunpack.c.l.b16 %v58
  %v287 = vunpack.c.l.b16 %v59
  %v288 = vunpack.c.l.b16 %v60
  %v289 = vunpack.c.l.b16 %v61
  %v290 = vunpack.c.l.b16 %v62
  %v291 = vunpack.c.l.b16 %v63
  %v292 = vunpack.c.l.b16 %v64
  %v293 = vunpack.c.l.b16 %v65
  %v294 = vunpack.c.l.b16 %v66
  %v295 = vunpack.c.l.b16 %v67
  %v296 = vunpack.c.l.b16 %v68
  %v297 = vunpack.c.l.b16 %v69
  %v298 = vunpack.c.l.b16 %v70
  %v299 = vunpack.c.l.b16 %v71
  %v300 = vunpack.c.l.b16 %v72
  %v301 = vunpack.c.l.b16 %v73
  %v302 = vunpack.c.l.b16 %v74
  %v303 = vunpack.c.l.b16 %v75
  %v304 = vunpack.c.l.b16 %v76
  %v305 = vunpack.c.l.b16 %v77
  %v306 = vpack.c.b16 %v243, %v242
  %v307 = vpack.c.b16 %v245, %v244
  %v308 = vpack.c.b16 %v247, %v246
  %v309 = vpack.c.b16 %v249, %v248
  %v310 = vpack.c.b16 %v251, %v250
  %v311 = vpack.c.b16 %v253, %v252
  %v312 = vpack.c.b16 %v255, %v254
  %v313 = vpack.c.b16 %v257, %v256
  %v314 = vpack.c.b16 %v259, %v258
  %v315 = vpack.c.b16 %v261, %v260
  %v316 = vpack.c.b16 %v263, %v262
  %v317 = vpack.c.b16 %v265, %v264
  %v318 = vpack.c.b16 %v267, %v266
  %v319 = vpack.c.b16 %v269, %v268
  %v320 = vpack.c.b16 %v271, %v270
  %v321 = vpack.c.b16 %v273, %v272
  %v322 = vpack.c.b16 %v275, %v274
  %v323 = vpack.c.b16 %v277, %v276
  %v324 = vpack.c.b16 %v279, %v278
  %v325 = vpack.c.b16 %v281, %v280
  %v326 = vpack.c.b16 %v283, %v282
  %v327 = vpack.c.b16 %v285, %v284
  %v328 = vpack.c.b16 %v287, %v286
  %v329 = vpack.c.b16 %v289, %v288
  %v330 = vpack.c.b16 %v291, %v290
  %v331 = vpack.c.b16 %v293, %v292
  %v332 = vpack.c.b16 %v295, %v294
  %v333 = vpack.c.b16 %v297, %v296
  %v334 = vpack.c.b16 %v299, %v298
  %v335 = vpack.c.b16 %v301, %v300
  %v336 = vpack.c.b16 %v303, %v302
  %v337 = vpack.c.b16 %v305, %v304
  %370 = vmatpush.bf16.msra.mxu0 %v313
  %371 = vmatpush.bf16.msra.mxu0 %v312
  %372 = vmatpush.bf16.msra.mxu0 %v311
  %373 = vmatpush.bf16.msra.mxu0 %v310
  %374 = vmatpush.bf16.msra.mxu0 %v309
  %375 = vmatpush.bf16.msra.mxu0 %v308
  %376 = vmatpush.bf16.msra.mxu0 %v307
  %377 = vmatpush.bf16.msra.mxu0 %v306
  %378 = vmatmul.bf16.gmra.mxu0 %v146
  %v379 = vpop.f32.mrf.mxu0
  %v380 = vadd.f32 %v96, %v379
  %v381 = vpop.f32.mrf.mxu0
  %v382 = vadd.f32 %v96, %v381
  %383 = vmatmul.bf16.gmra.mxu0 %v150
  %v384 = vpop.f32.mrf.mxu0
  %v385 = vadd.f32 %v96, %v384
  %v386 = vpop.f32.mrf.mxu0
  %v387 = vadd.f32 %v96, %v386
  %388 = vmatmul.bf16.gmra.mxu0 %v154
  %v389 = vpop.f32.mrf.mxu0
  %v390 = vadd.f32 %v96, %v389
  %v391 = vpop.f32.mrf.mxu0
  %v392 = vadd.f32 %v96, %v391
  %393 = vmatmul.bf16.gmra.mxu0 %v158
  %v394 = vpop.f32.mrf.mxu0
  %v395 = vadd.f32 %v96, %v394
  %v396 = vpop.f32.mrf.mxu0
  %v397 = vadd.f32 %v96, %v396
  %398 = vdwg.mxu0
  %399 = vmatpush.bf16.msra.mxu0 %v321
  %400 = vmatpush.bf16.msra.mxu0 %v320
  %401 = vmatpush.bf16.msra.mxu0 %v319
  %402 = vmatpush.bf16.msra.mxu0 %v318
  %403 = vmatpush.bf16.msra.mxu0 %v317
  %404 = vmatpush.bf16.msra.mxu0 %v316
  %405 = vmatpush.bf16.msra.mxu0 %v315
  %406 = vmatpush.bf16.msra.mxu0 %v314
  %407 = vmatmul.bf16.gmra.mxu0 %v147
  %v408 = vpop.f32.mrf.mxu0
  %v409 = vadd.f32 %v380, %v408
  %v410 = vpop.f32.mrf.mxu0
  %v411 = vadd.f32 %v382, %v410
  %412 = vmatmul.bf16.gmra.mxu0 %v151
  %v413 = vpop.f32.mrf.mxu0
  %v414 = vadd.f32 %v385, %v413
  %v415 = vpop.f32.mrf.mxu0
  %v416 = vadd.f32 %v387, %v415
  %417 = vmatmul.bf16.gmra.mxu0 %v155
  %v418 = vpop.f32.mrf.mxu0
  %v419 = vadd.f32 %v390, %v418
  %v420 = vpop.f32.mrf.mxu0
  %v421 = vadd.f32 %v392, %v420
  %422 = vmatmul.bf16.gmra.mxu0 %v159
  %v423 = vpop.f32.mrf.mxu0
  %v424 = vadd.f32 %v395, %v423
  %v425 = vpop.f32.mrf.mxu0
  %v426 = vadd.f32 %v397, %v425
  %427 = vdwg.mxu0
  %428 = vmatpush.bf16.msra.mxu0 %v329
  %429 = vmatpush.bf16.msra.mxu0 %v328
  %430 = vmatpush.bf16.msra.mxu0 %v327
  %431 = vmatpush.bf16.msra.mxu0 %v326
  %432 = vmatpush.bf16.msra.mxu0 %v325
  %433 = vmatpush.bf16.msra.mxu0 %v324
  %434 = vmatpush.bf16.msra.mxu0 %v323
  %435 = vmatpush.bf16.msra.mxu0 %v322
  %436 = vmatmul.bf16.gmra.mxu0 %v148
  %v437 = vpop.f32.mrf.mxu0
  %v438 = vadd.f32 %v409, %v437
  %v439 = vpop.f32.mrf.mxu0
  %v440 = vadd.f32 %v411, %v439
  %441 = vmatmul.bf16.gmra.mxu0 %v152
  %v442 = vpop.f32.mrf.mxu0
  %v443 = vadd.f32 %v414, %v442
  %v444 = vpop.f32.mrf.mxu0
  %v445 = vadd.f32 %v416, %v444
  %446 = vmatmul.bf16.gmra.mxu0 %v156
  %v447 = vpop.f32.mrf.mxu0
  %v448 = vadd.f32 %v419, %v447
  %v449 = vpop.f32.mrf.mxu0
  %v450 = vadd.f32 %v421, %v449
  %451 = vmatmul.bf16.gmra.mxu0 %v160
  %v452 = vpop.f32.mrf.mxu0
  %v453 = vadd.f32 %v424, %v452
  %v454 = vpop.f32.mrf.mxu0
  %v455 = vadd.f32 %v426, %v454
  %456 = vdwg.mxu0
  %457 = vmatpush.bf16.msra.mxu0 %v337
  %458 = vmatpush.bf16.msra.mxu0 %v336
  %459 = vmatpush.bf16.msra.mxu0 %v335
  %460 = vmatpush.bf16.msra.mxu0 %v334
  %461 = vmatpush.bf16.msra.mxu0 %v333
  %462 = vmatpush.bf16.msra.mxu0 %v332
  %463 = vmatpush.bf16.msra.mxu0 %v331
  %464 = vmatpush.bf16.msra.mxu0 %v330
  %465 = vmatmul.bf16.gmra.mxu0 %v149
  %v466 = vpop.f32.mrf.mxu0
  %v467 = vadd.f32 %v438, %v466
  %v468 = vpop.f32.mrf.mxu0
  %v469 = vadd.f32 %v440, %v468
  %470 = vmatmul.bf16.gmra.mxu0 %v153
  %v471 = vpop.f32.mrf.mxu0
  %v472 = vadd.f32 %v443, %v471
  %v473 = vpop.f32.mrf.mxu0
  %v474 = vadd.f32 %v445, %v473
  %475 = vmatmul.bf16.gmra.mxu0 %v157
  %v476 = vpop.f32.mrf.mxu0
  %v477 = vadd.f32 %v448, %v476
  %v478 = vpop.f32.mrf.mxu0
  %v479 = vadd.f32 %v450, %v478
  %480 = vmatmul.bf16.gmra.mxu0 %v161
  %v481 = vpop.f32.mrf.mxu0
  %v482 = vadd.f32 %v453, %v481
  %v483 = vpop.f32.mrf.mxu0
  %v484 = vadd.f32 %v455, %v483
  %485 = vdwg.mxu0
  %v486 = vmax.f32 %v467, 0.0
  %v487 = vmax.f32 %v469, 0.0
  %v488 = vmax.f32 %v472, 0.0
  %v489 = vmax.f32 %v474, 0.0
  %v490 = vmax.f32 %v477, 0.0
  %v491 = vmax.f32 %v479, 0.0
  %v492 = vmax.f32 %v482, 0.0
  %v493 = vmax.f32 %v484, 0.0
  %s494 = scalar_lea.vmem %s0, 128
  %v495 = vld [vmem:[%s494] sm:$0xff]
  %v496 = vld [vmem:[%s494 + $0x8] sm:$0xff]
  %v497 = vld [vmem:[%s494 + $0x10] sm:$0xff]
  %v498 = vld [vmem:[%s494 + $0x18] sm:$0xff]
  %v499 = vld [vmem:[%s494 + $0x20] sm:$0xff]
  %v500 = vld [vmem:[%s494 + $0x28] sm:$0xff]
  %v501 = vld [vmem:[%s494 + $0x30] sm:$0xff]
  %v502 = vld [vmem:[%s494 + $0x38] sm:$0xff]
  %v503 = vld [vmem:[%s494 + $0x40] sm:$0xff]
  %v504 = vld [vmem:[%s494 + $0x48] sm:$0xff]
  %v505 = vld [vmem:[%s494 + $0x50] sm:$0xff]
  %v506 = vld [vmem:[%s494 + $0x58] sm:$0xff]
  %v507 = vld [vmem:[%s494 + $0x60] sm:$0xff]
  %v508 = vld [vmem:[%s494 + $0x68] sm:$0xff]
  %v509 = vld [vmem:[%s494 + $0x70] sm:$0xff]
  %v510 = vld [vmem:[%s494 + $0x78] sm:$0xff]
  %v527 = vunpack.c.l.b16 %v495
  %v528 = vunpack.c.h.b16 %v495
  %v529 = vunpack.c.l.b16 %v496
  %v530 = vunpack.c.h.b16 %v496
  %v531 = vunpack.c.l.b16 %v497
  %v532 = vunpack.c.h.b16 %v497
  %v533 = vunpack.c.l.b16 %v498
  %v534 = vunpack.c.h.b16 %v498
  %v535 = vunpack.c.l.b16 %v499
  %v536 = vunpack.c.h.b16 %v499
  %v537 = vunpack.c.l.b16 %v500
  %v538 = vunpack.c.h.b16 %v500
  %v539 = vunpack.c.l.b16 %v501
  %v540 = vunpack.c.h.b16 %v501
  %v541 = vunpack.c.l.b16 %v502
  %v542 = vunpack.c.h.b16 %v502
  %v543 = vunpack.c.l.b16 %v503
  %v544 = vunpack.c.h.b16 %v503
  %v545 = vunpack.c.l.b16 %v504
  %v546 = vunpack.c.h.b16 %v504
  %v547 = vunpack.c.l.b16 %v505
  %v548 = vunpack.c.h.b16 %v505
  %v549 = vunpack.c.l.b16 %v506
  %v550 = vunpack.c.h.b16 %v506
  %v551 = vunpack.c.l.b16 %v507
  %v552 = vunpack.c.h.b16 %v507
  %v553 = vunpack.c.l.b16 %v508
  %v554 = vunpack.c.h.b16 %v508
  %v555 = vunpack.c.l.b16 %v509
  %v556 = vunpack.c.h.b16 %v509
  %v557 = vunpack.c.l.b16 %v510
  %v558 = vunpack.c.h.b16 %v510
  %v559 = vpack.c.b16 %v531, %v527
  %v560 = vpack.c.b16 %v532, %v528
  %v561 = vpack.c.b16 %v533, %v529
  %v562 = vpack.c.b16 %v534, %v530
  %v563 = vpack.c.b16 %v539, %v535
  %v564 = vpack.c.b16 %v540, %v536
  %v565 = vpack.c.b16 %v541, %v537
  %v566 = vpack.c.b16 %v542, %v538
  %v567 = vpack.c.b16 %v547, %v543
  %v568 = vpack.c.b16 %v548, %v544
  %v569 = vpack.c.b16 %v549, %v545
  %v570 = vpack.c.b16 %v550, %v546
  %v571 = vpack.c.b16 %v555, %v551
  %v572 = vpack.c.b16 %v556, %v552
  %v573 = vpack.c.b16 %v557, %v553
  %v574 = vpack.c.b16 %v558, %v554
  %591 = vmatpush.bf16.msra.mxu0 %v313
  %592 = vmatpush.bf16.msra.mxu0 %v312
  %593 = vmatpush.bf16.msra.mxu0 %v311
  %594 = vmatpush.bf16.msra.mxu0 %v310
  %595 = vmatpush.bf16.msra.mxu0 %v309
  %596 = vmatpush.bf16.msra.mxu0 %v308
  %597 = vmatpush.bf16.msra.mxu0 %v307
  %598 = vmatpush.bf16.msra.mxu0 %v306
  %599 = vmatmul.bf16.gmra.mxu0 %v559
  %v600 = vpop.f32.mrf.mxu0
  %v601 = vadd.f32 %v96, %v600
  %v602 = vpop.f32.mrf.mxu0
  %v603 = vadd.f32 %v96, %v602
  %604 = vmatmul.bf16.gmra.mxu0 %v563
  %v605 = vpop.f32.mrf.mxu0
  %v606 = vadd.f32 %v96, %v605
  %v607 = vpop.f32.mrf.mxu0
  %v608 = vadd.f32 %v96, %v607
  %609 = vmatmul.bf16.gmra.mxu0 %v567
  %v610 = vpop.f32.mrf.mxu0
  %v611 = vadd.f32 %v96, %v610
  %v612 = vpop.f32.mrf.mxu0
  %v613 = vadd.f32 %v96, %v612
  %614 = vmatmul.bf16.gmra.mxu0 %v571
  %v615 = vpop.f32.mrf.mxu0
  %v616 = vadd.f32 %v96, %v615
  %v617 = vpop.f32.mrf.mxu0
  %v618 = vadd.f32 %v96, %v617
  %619 = vdwg.mxu0
  %620 = vmatpush.bf16.msra.mxu0 %v321
  %621 = vmatpush.bf16.msra.mxu0 %v320
  %622 = vmatpush.bf16.msra.mxu0 %v319
  %623 = vmatpush.bf16.msra.mxu0 %v318
  %624 = vmatpush.bf16.msra.mxu0 %v317
  %625 = vmatpush.bf16.msra.mxu0 %v316
  %626 = vmatpush.bf16.msra.mxu0 %v315
  %627 = vmatpush.bf16.msra.mxu0 %v314
  %628 = vmatmul.bf16.gmra.mxu0 %v560
  %v629 = vpop.f32.mrf.mxu0
  %v630 = vadd.f32 %v601, %v629
  %v631 = vpop.f32.mrf.mxu0
  %v632 = vadd.f32 %v603, %v631
  %633 = vmatmul.bf16.gmra.mxu0 %v564
  %v634 = vpop.f32.mrf.mxu0
  %v635 = vadd.f32 %v606, %v634
  %v636 = vpop.f32.mrf.mxu0
  %v637 = vadd.f32 %v608, %v636
  %638 = vmatmul.bf16.gmra.mxu0 %v568
  %v639 = vpop.f32.mrf.mxu0
  %v640 = vadd.f32 %v611, %v639
  %v641 = vpop.f32.mrf.mxu0
  %v642 = vadd.f32 %v613, %v641
  %643 = vmatmul.bf16.gmra.mxu0 %v572
  %v644 = vpop.f32.mrf.mxu0
  %v645 = vadd.f32 %v616, %v644
  %v646 = vpop.f32.mrf.mxu0
  %v647 = vadd.f32 %v618, %v646
  %648 = vdwg.mxu0
  %649 = vmatpush.bf16.msra.mxu0 %v329
  %650 = vmatpush.bf16.msra.mxu0 %v328
  %651 = vmatpush.bf16.msra.mxu0 %v327
  %652 = vmatpush.bf16.msra.mxu0 %v326
  %653 = vmatpush.bf16.msra.mxu0 %v325
  %654 = vmatpush.bf16.msra.mxu0 %v324
  %655 = vmatpush.bf16.msra.mxu0 %v323
  %656 = vmatpush.bf16.msra.mxu0 %v322
  %657 = vmatmul.bf16.gmra.mxu0 %v561
  %v658 = vpop.f32.mrf.mxu0
  %v659 = vadd.f32 %v630, %v658
  %v660 = vpop.f32.mrf.mxu0
  %v661 = vadd.f32 %v632, %v660
  %662 = vmatmul.bf16.gmra.mxu0 %v565
  %v663 = vpop.f32.mrf.mxu0
  %v664 = vadd.f32 %v635, %v663
  %v665 = vpop.f32.mrf.mxu0
  %v666 = vadd.f32 %v637, %v665
  %667 = vmatmul.bf16.gmra.mxu0 %v569
  %v668 = vpop.f32.mrf.mxu0
  %v669 = vadd.f32 %v640, %v668
  %v670 = vpop.f32.mrf.mxu0
  %v671 = vadd.f32 %v642, %v670
  %672 = vmatmul.bf16.gmra.mxu0 %v573
  %v673 = vpop.f32.mrf.mxu0
  %v674 = vadd.f32 %v645, %v673
  %v675 = vpop.f32.mrf.mxu0
  %v676 = vadd.f32 %v647, %v675
  %677 = vdwg.mxu0
  %678 = vmatpush.bf16.msra.mxu0 %v337
  %679 = vmatpush.bf16.msra.mxu0 %v336
  %680 = vmatpush.bf16.msra.mxu0 %v335
  %681 = vmatpush.bf16.msra.mxu0 %v334
  %682 = vmatpush.bf16.msra.mxu0 %v333
  %683 = vmatpush.bf16.msra.mxu0 %v332
  %684 = vmatpush.bf16.msra.mxu0 %v331
  %685 = vmatpush.bf16.msra.mxu0 %v330
  %686 = vmatmul.bf16.gmra.mxu0 %v562
  %v687 = vpop.f32.mrf.mxu0
  %v688 = vadd.f32 %v659, %v687
  %v689 = vpop.f32.mrf.mxu0
  %v690 = vadd.f32 %v661, %v689
  %691 = vmatmul.bf16.gmra.mxu0 %v566
  %v692 = vpop.f32.mrf.mxu0
  %v693 = vadd.f32 %v664, %v692
  %v694 = vpop.f32.mrf.mxu0
  %v695 = vadd.f32 %v666, %v694
  %696 = vmatmul.bf16.gmra.mxu0 %v570
  %v697 = vpop.f32.mrf.mxu0
  %v698 = vadd.f32 %v669, %v697
  %v699 = vpop.f32.mrf.mxu0
  %v700 = vadd.f32 %v671, %v699
  %701 = vmatmul.bf16.gmra.mxu0 %v574
  %v702 = vpop.f32.mrf.mxu0
  %v703 = vadd.f32 %v674, %v702
  %v704 = vpop.f32.mrf.mxu0
  %v705 = vadd.f32 %v676, %v704
  %706 = vdwg.mxu0
  %v707 = vmax.f32 %v688, 0.0
  %v708 = vmax.f32 %v690, 0.0
  %v709 = vmax.f32 %v693, 0.0
  %v710 = vmax.f32 %v695, 0.0
  %v711 = vmax.f32 %v698, 0.0
  %v712 = vmax.f32 %v700, 0.0
  %v713 = vmax.f32 %v703, 0.0
  %v714 = vmax.f32 %v705, 0.0
  %v715 = vmax.f32 %v486, %v707
  %v716 = vmax.f32 %v487, %v708
  %v717 = vmax.f32 %v488, %v709
  %v718 = vmax.f32 %v489, %v710
  %v719 = vmax.f32 %v490, %v711
  %v720 = vmax.f32 %v491, %v712
  %v721 = vmax.f32 %v492, %v713
  %v722 = vmax.f32 %v493, %v714
  %s723 = scalar_lea.vmem %s0, 256
  %v724 = vld [vmem:[%s723] sm:$0xff]
  %v725 = vld [vmem:[%s723 + $0x8] sm:$0xff]
  %v726 = vld [vmem:[%s723 + $0x10] sm:$0xff]
  %v727 = vld [vmem:[%s723 + $0x18] sm:$0xff]
  %v728 = vld [vmem:[%s723 + $0x20] sm:$0xff]
  %v729 = vld [vmem:[%s723 + $0x28] sm:$0xff]
  %v730 = vld [vmem:[%s723 + $0x30] sm:$0xff]
  %v731 = vld [vmem:[%s723 + $0x38] sm:$0xff]
  %v732 = vld [vmem:[%s723 + $0x40] sm:$0xff]
  %v733 = vld [vmem:[%s723 + $0x48] sm:$0xff]
  %v734 = vld [vmem:[%s723 + $0x50] sm:$0xff]
  %v735 = vld [vmem:[%s723 + $0x58] sm:$0xff]
  %v736 = vld [vmem:[%s723 + $0x60] sm:$0xff]
  %v737 = vld [vmem:[%s723 + $0x68] sm:$0xff]
  %v738 = vld [vmem:[%s723 + $0x70] sm:$0xff]
  %v739 = vld [vmem:[%s723 + $0x78] sm:$0xff]
  %v756 = vunpack.c.l.b16 %v724
  %v757 = vunpack.c.h.b16 %v724
  %v758 = vunpack.c.l.b16 %v725
  %v759 = vunpack.c.h.b16 %v725
  %v760 = vunpack.c.l.b16 %v726
  %v761 = vunpack.c.h.b16 %v726
  %v762 = vunpack.c.l.b16 %v727
  %v763 = vunpack.c.h.b16 %v727
  %v764 = vunpack.c.l.b16 %v728
  %v765 = vunpack.c.h.b16 %v728
  %v766 = vunpack.c.l.b16 %v729
  %v767 = vunpack.c.h.b16 %v729
  %v768 = vunpack.c.l.b16 %v730
  %v769 = vunpack.c.h.b16 %v730
  %v770 = vunpack.c.l.b16 %v731
  %v771 = vunpack.c.h.b16 %v731
  %v772 = vunpack.c.l.b16 %v732
  %v773 = vunpack.c.h.b16 %v732
  %v774 = vunpack.c.l.b16 %v733
  %v775 = vunpack.c.h.b16 %v733
  %v776 = vunpack.c.l.b16 %v734
  %v777 = vunpack.c.h.b16 %v734
  %v778 = vunpack.c.l.b16 %v735
  %v779 = vunpack.c.h.b16 %v735
  %v780 = vunpack.c.l.b16 %v736
  %v781 = vunpack.c.h.b16 %v736
  %v782 = vunpack.c.l.b16 %v737
  %v783 = vunpack.c.h.b16 %v737
  %v784 = vunpack.c.l.b16 %v738
  %v785 = vunpack.c.h.b16 %v738
  %v786 = vunpack.c.l.b16 %v739
  %v787 = vunpack.c.h.b16 %v739
  %v788 = vpack.c.b16 %v760, %v756
  %v789 = vpack.c.b16 %v761, %v757
  %v790 = vpack.c.b16 %v762, %v758
  %v791 = vpack.c.b16 %v763, %v759
  %v792 = vpack.c.b16 %v768, %v764
  %v793 = vpack.c.b16 %v769, %v765
  %v794 = vpack.c.b16 %v770, %v766
  %v795 = vpack.c.b16 %v771, %v767
  %v796 = vpack.c.b16 %v776, %v772
  %v797 = vpack.c.b16 %v777, %v773
  %v798 = vpack.c.b16 %v778, %v774
  %v799 = vpack.c.b16 %v779, %v775
  %v800 = vpack.c.b16 %v784, %v780
  %v801 = vpack.c.b16 %v785, %v781
  %v802 = vpack.c.b16 %v786, %v782
  %v803 = vpack.c.b16 %v787, %v783
  %820 = vmatpush.bf16.msra.mxu0 %v313
  %821 = vmatpush.bf16.msra.mxu0 %v312
  %822 = vmatpush.bf16.msra.mxu0 %v311
  %823 = vmatpush.bf16.msra.mxu0 %v310
  %824 = vmatpush.bf16.msra.mxu0 %v309
  %825 = vmatpush.bf16.msra.mxu0 %v308
  %826 = vmatpush.bf16.msra.mxu0 %v307
  %827 = vmatpush.bf16.msra.mxu0 %v306
  %828 = vmatmul.bf16.gmra.mxu0 %v788
  %v829 = vpop.f32.mrf.mxu0
  %v830 = vadd.f32 %v96, %v829
  %v831 = vpop.f32.mrf.mxu0
  %v832 = vadd.f32 %v96, %v831
  %833 = vmatmul.bf16.gmra.mxu0 %v792
  %v834 = vpop.f32.mrf.mxu0
  %v835 = vadd.f32 %v96, %v834
  %v836 = vpop.f32.mrf.mxu0
  %v837 = vadd.f32 %v96, %v836
  %838 = vmatmul.bf16.gmra.mxu0 %v796
  %v839 = vpop.f32.mrf.mxu0
  %v840 = vadd.f32 %v96, %v839
  %v841 = vpop.f32.mrf.mxu0
  %v842 = vadd.f32 %v96, %v841
  %843 = vmatmul.bf16.gmra.mxu0 %v800
  %v844 = vpop.f32.mrf.mxu0
  %v845 = vadd.f32 %v96, %v844
  %v846 = vpop.f32.mrf.mxu0
  %v847 = vadd.f32 %v96, %v846
  %848 = vdwg.mxu0
  %849 = vmatpush.bf16.msra.mxu0 %v321
  %850 = vmatpush.bf16.msra.mxu0 %v320
  %851 = vmatpush.bf16.msra.mxu0 %v319
  %852 = vmatpush.bf16.msra.mxu0 %v318
  %853 = vmatpush.bf16.msra.mxu0 %v317
  %854 = vmatpush.bf16.msra.mxu0 %v316
  %855 = vmatpush.bf16.msra.mxu0 %v315
  %856 = vmatpush.bf16.msra.mxu0 %v314
  %857 = vmatmul.bf16.gmra.mxu0 %v789
  %v858 = vpop.f32.mrf.mxu0
  %v859 = vadd.f32 %v830, %v858
  %v860 = vpop.f32.mrf.mxu0
  %v861 = vadd.f32 %v832, %v860
  %862 = vmatmul.bf16.gmra.mxu0 %v793
  %v863 = vpop.f32.mrf.mxu0
  %v864 = vadd.f32 %v835, %v863
  %v865 = vpop.f32.mrf.mxu0
  %v866 = vadd.f32 %v837, %v865
  %867 = vmatmul.bf16.gmra.mxu0 %v797
  %v868 = vpop.f32.mrf.mxu0
  %v869 = vadd.f32 %v840, %v868
  %v870 = vpop.f32.mrf.mxu0
  %v871 = vadd.f32 %v842, %v870
  %872 = vmatmul.bf16.gmra.mxu0 %v801
  %v873 = vpop.f32.mrf.mxu0
  %v874 = vadd.f32 %v845, %v873
  %v875 = vpop.f32.mrf.mxu0
  %v876 = vadd.f32 %v847, %v875
  %877 = vdwg.mxu0
  %878 = vmatpush.bf16.msra.mxu0 %v329
  %879 = vmatpush.bf16.msra.mxu0 %v328
  %880 = vmatpush.bf16.msra.mxu0 %v327
  %881 = vmatpush.bf16.msra.mxu0 %v326
  %882 = vmatpush.bf16.msra.mxu0 %v325
  %883 = vmatpush.bf16.msra.mxu0 %v324
  %884 = vmatpush.bf16.msra.mxu0 %v323
  %885 = vmatpush.bf16.msra.mxu0 %v322
  %886 = vmatmul.bf16.gmra.mxu0 %v790
  %v887 = vpop.f32.mrf.mxu0
  %v888 = vadd.f32 %v859, %v887
  %v889 = vpop.f32.mrf.mxu0
  %v890 = vadd.f32 %v861, %v889
  %891 = vmatmul.bf16.gmra.mxu0 %v794
  %v892 = vpop.f32.mrf.mxu0
  %v893 = vadd.f32 %v864, %v892
  %v894 = vpop.f32.mrf.mxu0
  %v895 = vadd.f32 %v866, %v894
  %896 = vmatmul.bf16.gmra.mxu0 %v798
  %v897 = vpop.f32.mrf.mxu0
  %v898 = vadd.f32 %v869, %v897
  %v899 = vpop.f32.mrf.mxu0
  %v900 = vadd.f32 %v871, %v899
  %901 = vmatmul.bf16.gmra.mxu0 %v802
  %v902 = vpop.f32.mrf.mxu0
  %v903 = vadd.f32 %v874, %v902
  %v904 = vpop.f32.mrf.mxu0
  %v905 = vadd.f32 %v876, %v904
  %906 = vdwg.mxu0
  %907 = vmatpush.bf16.msra.mxu0 %v337
  %908 = vmatpush.bf16.msra.mxu0 %v336
  %909 = vmatpush.bf16.msra.mxu0 %v335
  %910 = vmatpush.bf16.msra.mxu0 %v334
  %911 = vmatpush.bf16.msra.mxu0 %v333
  %912 = vmatpush.bf16.msra.mxu0 %v332
  %913 = vmatpush.bf16.msra.mxu0 %v331
  %914 = vmatpush.bf16.msra.mxu0 %v330
  %915 = vmatmul.bf16.gmra.mxu0 %v791
  %v916 = vpop.f32.mrf.mxu0
  %v917 = vadd.f32 %v888, %v916
  %v918 = vpop.f32.mrf.mxu0
  %v919 = vadd.f32 %v890, %v918
  %920 = vmatmul.bf16.gmra.mxu0 %v795
  %v921 = vpop.f32.mrf.mxu0
  %v922 = vadd.f32 %v893, %v921
  %v923 = vpop.f32.mrf.mxu0
  %v924 = vadd.f32 %v895, %v923
  %925 = vmatmul.bf16.gmra.mxu0 %v799
  %v926 = vpop.f32.mrf.mxu0
  %v927 = vadd.f32 %v898, %v926
  %v928 = vpop.f32.mrf.mxu0
  %v929 = vadd.f32 %v900, %v928
  %930 = vmatmul.bf16.gmra.mxu0 %v803
  %v931 = vpop.f32.mrf.mxu0
  %v932 = vadd.f32 %v903, %v931
  %v933 = vpop.f32.mrf.mxu0
  %v934 = vadd.f32 %v905, %v933
  %935 = vdwg.mxu0
  %v936 = vmax.f32 %v917, 0.0
  %v937 = vmax.f32 %v919, 0.0
  %v938 = vmax.f32 %v922, 0.0
  %v939 = vmax.f32 %v924, 0.0
  %v940 = vmax.f32 %v927, 0.0
  %v941 = vmax.f32 %v929, 0.0
  %v942 = vmax.f32 %v932, 0.0
  %v943 = vmax.f32 %v934, 0.0
  %s944 = scalar_lea.vmem %s0, 384
  %v945 = vld [vmem:[%s944] sm:$0xff]
  %v946 = vld [vmem:[%s944 + $0x8] sm:$0xff]
  %v947 = vld [vmem:[%s944 + $0x10] sm:$0xff]
  %v948 = vld [vmem:[%s944 + $0x18] sm:$0xff]
  %v949 = vld [vmem:[%s944 + $0x20] sm:$0xff]
  %v950 = vld [vmem:[%s944 + $0x28] sm:$0xff]
  %v951 = vld [vmem:[%s944 + $0x30] sm:$0xff]
  %v952 = vld [vmem:[%s944 + $0x38] sm:$0xff]
  %v953 = vld [vmem:[%s944 + $0x40] sm:$0xff]
  %v954 = vld [vmem:[%s944 + $0x48] sm:$0xff]
  %v955 = vld [vmem:[%s944 + $0x50] sm:$0xff]
  %v956 = vld [vmem:[%s944 + $0x58] sm:$0xff]
  %v957 = vld [vmem:[%s944 + $0x60] sm:$0xff]
  %v958 = vld [vmem:[%s944 + $0x68] sm:$0xff]
  %v959 = vld [vmem:[%s944 + $0x70] sm:$0xff]
  %v960 = vld [vmem:[%s944 + $0x78] sm:$0xff]
  %v977 = vunpack.c.l.b16 %v945
  %v978 = vunpack.c.h.b16 %v945
  %v979 = vunpack.c.l.b16 %v946
  %v980 = vunpack.c.h.b16 %v946
  %v981 = vunpack.c.l.b16 %v947
  %v982 = vunpack.c.h.b16 %v947
  %v983 = vunpack.c.l.b16 %v948
  %v984 = vunpack.c.h.b16 %v948
  %v985 = vunpack.c.l.b16 %v949
  %v986 = vunpack.c.h.b16 %v949
  %v987 = vunpack.c.l.b16 %v950
  %v988 = vunpack.c.h.b16 %v950
  %v989 = vunpack.c.l.b16 %v951
  %v990 = vunpack.c.h.b16 %v951
  %v991 = vunpack.c.l.b16 %v952
  %v992 = vunpack.c.h.b16 %v952
  %v993 = vunpack.c.l.b16 %v953
  %v994 = vunpack.c.h.b16 %v953
  %v995 = vunpack.c.l.b16 %v954
  %v996 = vunpack.c.h.b16 %v954
  %v997 = vunpack.c.l.b16 %v955
  %v998 = vunpack.c.h.b16 %v955
  %v999 = vunpack.c.l.b16 %v956
  %v1000 = vunpack.c.h.b16 %v956
  %v1001 = vunpack.c.l.b16 %v957
  %v1002 = vunpack.c.h.b16 %v957
  %v1003 = vunpack.c.l.b16 %v958
  %v1004 = vunpack.c.h.b16 %v958
  %v1005 = vunpack.c.l.b16 %v959
  %v1006 = vunpack.c.h.b16 %v959
  %v1007 = vunpack.c.l.b16 %v960
  %v1008 = vunpack.c.h.b16 %v960
  %v1009 = vpack.c.b16 %v981, %v977
  %v1010 = vpack.c.b16 %v982, %v978
  %v1011 = vpack.c.b16 %v983, %v979
  %v1012 = vpack.c.b16 %v984, %v980
  %v1013 = vpack.c.b16 %v989, %v985
  %v1014 = vpack.c.b16 %v990, %v986
  %v1015 = vpack.c.b16 %v991, %v987
  %v1016 = vpack.c.b16 %v992, %v988
  %v1017 = vpack.c.b16 %v997, %v993
  %v1018 = vpack.c.b16 %v998, %v994
  %v1019 = vpack.c.b16 %v999, %v995
  %v1020 = vpack.c.b16 %v1000, %v996
  %v1021 = vpack.c.b16 %v1005, %v1001
  %v1022 = vpack.c.b16 %v1006, %v1002
  %v1023 = vpack.c.b16 %v1007, %v1003
  %v1024 = vpack.c.b16 %v1008, %v1004
  %1041 = vmatpush.bf16.msra.mxu0 %v313
  %1042 = vmatpush.bf16.msra.mxu0 %v312
  %1043 = vmatpush.bf16.msra.mxu0 %v311
  %1044 = vmatpush.bf16.msra.mxu0 %v310
  %1045 = vmatpush.bf16.msra.mxu0 %v309
  %1046 = vmatpush.bf16.msra.mxu0 %v308
  %1047 = vmatpush.bf16.msra.mxu0 %v307
  %1048 = vmatpush.bf16.msra.mxu0 %v306
  %1049 = vmatmul.bf16.gmra.mxu0 %v1009
  %v1050 = vpop.f32.mrf.mxu0
  %v1051 = vadd.f32 %v96, %v1050
  %v1052 = vpop.f32.mrf.mxu0
  %v1053 = vadd.f32 %v96, %v1052
  %1054 = vmatmul.bf16.gmra.mxu0 %v1013
  %v1055 = vpop.f32.mrf.mxu0
  %v1056 = vadd.f32 %v96, %v1055
  %v1057 = vpop.f32.mrf.mxu0
  %v1058 = vadd.f32 %v96, %v1057
  %1059 = vmatmul.bf16.gmra.mxu0 %v1017
  %v1060 = vpop.f32.mrf.mxu0
  %v1061 = vadd.f32 %v96, %v1060
  %v1062 = vpop.f32.mrf.mxu0
  %v1063 = vadd.f32 %v96, %v1062
  %1064 = vmatmul.bf16.gmra.mxu0 %v1021
  %v1065 = vpop.f32.mrf.mxu0
  %v1066 = vadd.f32 %v96, %v1065
  %v1067 = vpop.f32.mrf.mxu0
  %v1068 = vadd.f32 %v96, %v1067
  %1069 = vdwg.mxu0
  %1070 = vmatpush.bf16.msra.mxu0 %v321
  %1071 = vmatpush.bf16.msra.mxu0 %v320
  %1072 = vmatpush.bf16.msra.mxu0 %v319
  %1073 = vmatpush.bf16.msra.mxu0 %v318
  %1074 = vmatpush.bf16.msra.mxu0 %v317
  %1075 = vmatpush.bf16.msra.mxu0 %v316
  %1076 = vmatpush.bf16.msra.mxu0 %v315
  %1077 = vmatpush.bf16.msra.mxu0 %v314
  %1078 = vmatmul.bf16.gmra.mxu0 %v1010
  %v1079 = vpop.f32.mrf.mxu0
  %v1080 = vadd.f32 %v1051, %v1079
  %v1081 = vpop.f32.mrf.mxu0
  %v1082 = vadd.f32 %v1053, %v1081
  %1083 = vmatmul.bf16.gmra.mxu0 %v1014
  %v1084 = vpop.f32.mrf.mxu0
  %v1085 = vadd.f32 %v1056, %v1084
  %v1086 = vpop.f32.mrf.mxu0
  %v1087 = vadd.f32 %v1058, %v1086
  %1088 = vmatmul.bf16.gmra.mxu0 %v1018
  %v1089 = vpop.f32.mrf.mxu0
  %v1090 = vadd.f32 %v1061, %v1089
  %v1091 = vpop.f32.mrf.mxu0
  %v1092 = vadd.f32 %v1063, %v1091
  %1093 = vmatmul.bf16.gmra.mxu0 %v1022
  %v1094 = vpop.f32.mrf.mxu0
  %v1095 = vadd.f32 %v1066, %v1094
  %v1096 = vpop.f32.mrf.mxu0
  %v1097 = vadd.f32 %v1068, %v1096
  %1098 = vdwg.mxu0
  %1099 = vmatpush.bf16.msra.mxu0 %v329
  %1100 = vmatpush.bf16.msra.mxu0 %v328
  %1101 = vmatpush.bf16.msra.mxu0 %v327
  %1102 = vmatpush.bf16.msra.mxu0 %v326
  %1103 = vmatpush.bf16.msra.mxu0 %v325
  %1104 = vmatpush.bf16.msra.mxu0 %v324
  %1105 = vmatpush.bf16.msra.mxu0 %v323
  %1106 = vmatpush.bf16.msra.mxu0 %v322
  %1107 = vmatmul.bf16.gmra.mxu0 %v1011
  %v1108 = vpop.f32.mrf.mxu0
  %v1109 = vadd.f32 %v1080, %v1108
  %v1110 = vpop.f32.mrf.mxu0
  %v1111 = vadd.f32 %v1082, %v1110
  %1112 = vmatmul.bf16.gmra.mxu0 %v1015
  %v1113 = vpop.f32.mrf.mxu0
  %v1114 = vadd.f32 %v1085, %v1113
  %v1115 = vpop.f32.mrf.mxu0
  %v1116 = vadd.f32 %v1087, %v1115
  %1117 = vmatmul.bf16.gmra.mxu0 %v1019
  %v1118 = vpop.f32.mrf.mxu0
  %v1119 = vadd.f32 %v1090, %v1118
  %v1120 = vpop.f32.mrf.mxu0
  %v1121 = vadd.f32 %v1092, %v1120
  %1122 = vmatmul.bf16.gmra.mxu0 %v1023
  %v1123 = vpop.f32.mrf.mxu0
  %v1124 = vadd.f32 %v1095, %v1123
  %v1125 = vpop.f32.mrf.mxu0
  %v1126 = vadd.f32 %v1097, %v1125
  %1127 = vdwg.mxu0
  %1128 = vmatpush.bf16.msra.mxu0 %v337
  %1129 = vmatpush.bf16.msra.mxu0 %v336
  %1130 = vmatpush.bf16.msra.mxu0 %v335
  %1131 = vmatpush.bf16.msra.mxu0 %v334
  %1132 = vmatpush.bf16.msra.mxu0 %v333
  %1133 = vmatpush.bf16.msra.mxu0 %v332
  %1134 = vmatpush.bf16.msra.mxu0 %v331
  %1135 = vmatpush.bf16.msra.mxu0 %v330
  %1136 = vmatmul.bf16.gmra.mxu0 %v1012
  %v1137 = vpop.f32.mrf.mxu0
  %v1138 = vadd.f32 %v1109, %v1137
  %v1139 = vpop.f32.mrf.mxu0
  %v1140 = vadd.f32 %v1111, %v1139
  %1141 = vmatmul.bf16.gmra.mxu0 %v1016
  %v1142 = vpop.f32.mrf.mxu0
  %v1143 = vadd.f32 %v1114, %v1142
  %v1144 = vpop.f32.mrf.mxu0
  %v1145 = vadd.f32 %v1116, %v1144
  %1146 = vmatmul.bf16.gmra.mxu0 %v1020
  %v1147 = vpop.f32.mrf.mxu0
  %v1148 = vadd.f32 %v1119, %v1147
  %v1149 = vpop.f32.mrf.mxu0
  %v1150 = vadd.f32 %v1121, %v1149
  %1151 = vmatmul.bf16.gmra.mxu0 %v1024
  %v1152 = vpop.f32.mrf.mxu0
  %v1153 = vadd.f32 %v1124, %v1152
  %v1154 = vpop.f32.mrf.mxu0
  %v1155 = vadd.f32 %v1126, %v1154
  %1156 = vdwg.mxu0
  %v1157 = vmax.f32 %v1138, 0.0
  %v1158 = vmax.f32 %v1140, 0.0
  %v1159 = vmax.f32 %v1143, 0.0
  %v1160 = vmax.f32 %v1145, 0.0
  %v1161 = vmax.f32 %v1148, 0.0
  %v1162 = vmax.f32 %v1150, 0.0
  %v1163 = vmax.f32 %v1153, 0.0
  %v1164 = vmax.f32 %v1155, 0.0
  %v1165 = vmax.f32 %v936, %v1157
  %v1166 = vmax.f32 %v937, %v1158
  %v1167 = vmax.f32 %v938, %v1159
  %v1168 = vmax.f32 %v939, %v1160
  %v1169 = vmax.f32 %v940, %v1161
  %v1170 = vmax.f32 %v941, %v1162
  %v1171 = vmax.f32 %v942, %v1163
  %v1172 = vmax.f32 %v943, %v1164
  %v1173 = vmax.f32 %v715, %v1165
  %v1174 = vmax.f32 %v716, %v1166
  %v1175 = vmax.f32 %v717, %v1167
  %v1176 = vmax.f32 %v718, %v1168
  %v1177 = vmax.f32 %v719, %v1169
  %v1178 = vmax.f32 %v720, %v1170
  %v1179 = vmax.f32 %v721, %v1171
  %v1180 = vmax.f32 %v722, %v1172
  %v1181 = vpack.c.bf16 %v1173, %v1173
  %v1182 = vpack.c.bf16 %v1174, %v1174
  %v1183 = vpack.c.bf16 %v1175, %v1175
  %v1184 = vpack.c.bf16 %v1176, %v1176
  %v1185 = vpack.c.bf16 %v1177, %v1177
  %v1186 = vpack.c.bf16 %v1178, %v1178
  %v1187 = vpack.c.bf16 %v1179, %v1179
  %v1188 = vpack.c.bf16 %v1180, %v1180
  %vm1189 = vcmask 519168
  %1190 = vst.msk [vmem:[%s3] sm:$0xf] %vm1189, %v1181
  %1191 = vst.msk [vmem:[%s3 + $0x4] sm:$0xf] %vm1189, %v1182
  %1192 = vst.msk [vmem:[%s3 + $0x8] sm:$0xf] %vm1189, %v1183
  %1193 = vst.msk [vmem:[%s3 + $0xc] sm:$0xf] %vm1189, %v1184
  %1194 = vst.msk [vmem:[%s3 + $0x10] sm:$0xf] %vm1189, %v1185
  %1195 = vst.msk [vmem:[%s3 + $0x14] sm:$0xf] %vm1189, %v1186
  %1196 = vst.msk [vmem:[%s3 + $0x18] sm:$0xf] %vm1189, %v1187
  %1197 = vst.msk [vmem:[%s3 + $0x1c] sm:$0xf] %vm1189, %v1188
  // Predicated region
  $region14: #{simple_convnet_forward.4} parent=0 // pred_check
    _
  $region15: #{simple_convnet_forward.4} parent=0 // pred_check_branch
    %1199 = sbr.rel (0) target = $region17
  $region16: #{simple_convnet_forward.4} parent=0 // pred_region
    _
  $region17: #{simple_convnet_forward.4} parent=0 // pred_fallthru
    _
  // Predicated region
  $region18: #{simple_convnet_forward.4} parent=0 // pred_check
    _
  $region19: #{simple_convnet_forward.4} parent=0 // pred_check_branch
    %1201 = sbr.rel (0) target = $region21
  $region20: #{simple_convnet_forward.4} parent=0 // pred_region
    _
  $region21: #{simple_convnet_forward.4} parent=0 // pred_fallthru
    _

// kernel: simple_convnet_forward.5
$region0: #{simple_convnet_forward.5}
  #allocation0 [shape = 'u32[]', space=smem, size = 0x4, offset = 0x4, fixed_abs, tag = 'smem constant byte address 0x4 - core index']
  #allocation1 [shape = 'u32[72,128]{1,0:T(1,128)}', space=vmem, size = 0x9000, scoped, tag = 'internal scratch']
  %s0 = inlined_call_operand.vmem [shape: bf16[4,1024], index: 0, kind: input, shape index: {}]
  %s1 = inlined_call_operand.vmem [shape: bf16[1024,1000], index: 1, kind: input, shape index: {}]
  %s2 = inlined_call_operand.vmem [shape: f32[1,1000], index: 2, kind: input, shape index: {}]
  %s3 = inlined_call_operand.vmem [shape: bf16[1000,10], index: 3, kind: input, shape index: {}]
  %s4 = inlined_call_operand.vmem [shape: f32[1,10], index: 4, kind: input, shape index: {}]
  %s5 = inlined_call_operand.vmem [shape: f32[4,10], index: 5, kind: output, shape index: {}]
  %s6 = sld [smem:[#allocation0]]
  $region30: #{simple_convnet_forward.5} parent=0
    _
  %s8 = ssub.s32 1, %s6
  %s9 = scalar_select 0, %s8, %s6
  // Predicated region
  $region2: #{simple_convnet_forward.5} parent=0 // pred_check
    _
  $region3: #{simple_convnet_forward.5} parent=0 // pred_check_branch
    %11 = sbr.rel (0) target = $region5
  $region4: #{simple_convnet_forward.5} parent=0 // pred_region
    _
  $region5: #{simple_convnet_forward.5} parent=0 // pred_fallthru
    _
  // Predicated region
  $region6: #{simple_convnet_forward.5} parent=0 // pred_check
    _
  $region7: #{simple_convnet_forward.5} parent=0 // pred_check_branch
    %13 = sbr.rel (0) target = $region9
  $region8: #{simple_convnet_forward.5} parent=0 // pred_region
    _
  $region9: #{simple_convnet_forward.5} parent=0 // pred_fallthru
    _
  // Predicated region
  $region10: #{simple_convnet_forward.5} parent=0 // pred_check
    _
  $region11: #{simple_convnet_forward.5} parent=0 // pred_check_branch
    %15 = sbr.rel (0) target = $region13
  $region12: #{simple_convnet_forward.5} parent=0 // pred_region
    _
  $region13: #{simple_convnet_forward.5} parent=0 // pred_fallthru
    _
  // Predicated region
  $region14: #{simple_convnet_forward.5} parent=0 // pred_check
    _
  $region15: #{simple_convnet_forward.5} parent=0 // pred_check_branch
    %17 = sbr.rel (0) target = $region17
  $region16: #{simple_convnet_forward.5} parent=0 // pred_region
    _
  $region17: #{simple_convnet_forward.5} parent=0 // pred_fallthru
    _
  // Predicated region
  $region18: #{simple_convnet_forward.5} parent=0 // pred_check
    _
  $region19: #{simple_convnet_forward.5} parent=0 // pred_check_branch
    %19 = sbr.rel (0) target = $region21
  $region20: #{simple_convnet_forward.5} parent=0 // pred_region
    _
  $region21: #{simple_convnet_forward.5} parent=0 // pred_fallthru
    _
  %v21 = vld [vmem:[%s0] sm:$0xff]
  %v22 = vld [vmem:[%s0 + $0x8] sm:$0xff]
  %v23 = vld [vmem:[%s1] sm:$0xff]
  %v24 = vld [vmem:[%s1 + $0x8] sm:$0xff]
  %v25 = vld [vmem:[%s1 + $0x10] sm:$0xff]
  %v26 = vld [vmem:[%s1 + $0x18] sm:$0xff]
  %v27 = vld [vmem:[%s1 + $0x20] sm:$0xff]
  %v28 = vld [vmem:[%s1 + $0x28] sm:$0xff]
  %v29 = vld [vmem:[%s1 + $0x30] sm:$0xff]
  %v30 = vld [vmem:[%s1 + $0x38] sm:$0xff]
  %v31 = vld [vmem:[%s1 + $0x40] sm:$0xff]
  %v32 = vld [vmem:[%s1 + $0x48] sm:$0xff]
  %v33 = vld [vmem:[%s1 + $0x50] sm:$0xff]
  %v34 = vld [vmem:[%s1 + $0x58] sm:$0xff]
  %v35 = vld [vmem:[%s1 + $0x60] sm:$0xff]
  %v36 = vld [vmem:[%s1 + $0x68] sm:$0xff]
  %v37 = vld [vmem:[%s1 + $0x70] sm:$0xff]
  %v38 = vld [vmem:[%s1 + $0x78] sm:$0xff]
  %v39 = vld [vmem:[%s1 + $0x80] sm:$0xff]
  %v40 = vld [vmem:[%s1 + $0x88] sm:$0xff]
  %v41 = vld [vmem:[%s1 + $0x90] sm:$0xff]
  %v42 = vld [vmem:[%s1 + $0x98] sm:$0xff]
  %v43 = vld [vmem:[%s1 + $0xa0] sm:$0xff]
  %v44 = vld [vmem:[%s1 + $0xa8] sm:$0xff]
  %v45 = vld [vmem:[%s1 + $0xb0] sm:$0xff]
  %v46 = vld [vmem:[%s1 + $0xb8] sm:$0xff]
  %v47 = vld [vmem:[%s1 + $0xc0] sm:$0xff]
  %v48 = vld [vmem:[%s1 + $0xc8] sm:$0xff]
  %v49 = vld [vmem:[%s1 + $0xd0] sm:$0xff]
  %v50 = vld [vmem:[%s1 + $0xd8] sm:$0xff]
  %v51 = vld [vmem:[%s1 + $0xe0] sm:$0xff]
  %v52 = vld [vmem:[%s1 + $0xe8] sm:$0xff]
  %v53 = vld [vmem:[%s1 + $0xf0] sm:$0xff]
  %v54 = vld [vmem:[%s1 + $0xf8] sm:$0xff]
  %v55 = vld [vmem:[%s1 + $0x100] sm:$0xff]
  %v56 = vld [vmem:[%s1 + $0x108] sm:$0xff]
  %v57 = vld [vmem:[%s1 + $0x110] sm:$0xff]
  %v58 = vld [vmem:[%s1 + $0x118] sm:$0xff]
  %v59 = vld [vmem:[%s1 + $0x120] sm:$0xff]
  %v60 = vld [vmem:[%s1 + $0x128] sm:$0xff]
  %v61 = vld [vmem:[%s1 + $0x130] sm:$0xff]
  %v62 = vld [vmem:[%s1 + $0x138] sm:$0xff]
  %v63 = vld [vmem:[%s1 + $0x140] sm:$0xff]
  %v64 = vld [vmem:[%s1 + $0x148] sm:$0xff]
  %v65 = vld [vmem:[%s1 + $0x150] sm:$0xff]
  %v66 = vld [vmem:[%s1 + $0x158] sm:$0xff]
  %v67 = vld [vmem:[%s1 + $0x160] sm:$0xff]
  %v68 = vld [vmem:[%s1 + $0x168] sm:$0xff]
  %v69 = vld [vmem:[%s1 + $0x170] sm:$0xff]
  %v70 = vld [vmem:[%s1 + $0x178] sm:$0xff]
  %v71 = vld [vmem:[%s1 + $0x180] sm:$0xff]
  %v72 = vld [vmem:[%s1 + $0x188] sm:$0xff]
  %v73 = vld [vmem:[%s1 + $0x190] sm:$0xff]
  %v74 = vld [vmem:[%s1 + $0x198] sm:$0xff]
  %v75 = vld [vmem:[%s1 + $0x1a0] sm:$0xff]
  %v76 = vld [vmem:[%s1 + $0x1a8] sm:$0xff]
  %v77 = vld [vmem:[%s1 + $0x1b0] sm:$0xff]
  %v78 = vld [vmem:[%s1 + $0x1b8] sm:$0xff]
  %v79 = vld [vmem:[%s1 + $0x1c0] sm:$0xff]
  %v80 = vld [vmem:[%s1 + $0x1c8] sm:$0xff]
  %v81 = vld [vmem:[%s1 + $0x1d0] sm:$0xff]
  %v82 = vld [vmem:[%s1 + $0x1d8] sm:$0xff]
  %v83 = vld [vmem:[%s1 + $0x1e0] sm:$0xff]
  %v84 = vld [vmem:[%s1 + $0x1e8] sm:$0xff]
  %v85 = vld [vmem:[%s1 + $0x1f0] sm:$0xff]
  %v86 = vld [vmem:[%s1 + $0x1f8] sm:$0xff]
  %v87 = vld [vmem:[%s1 + $0x200] sm:$0xff]
  %v88 = vld [vmem:[%s1 + $0x208] sm:$0xff]
  %v89 = vld [vmem:[%s1 + $0x210] sm:$0xff]
  %v90 = vld [vmem:[%s1 + $0x218] sm:$0xff]
  %v91 = vld [vmem:[%s1 + $0x220] sm:$0xff]
  %v92 = vld [vmem:[%s1 + $0x228] sm:$0xff]
  %v93 = vld [vmem:[%s1 + $0x230] sm:$0xff]
  %v94 = vld [vmem:[%s1 + $0x238] sm:$0xff]
  %v95 = vld [vmem:[%s1 + $0x240] sm:$0xff]
  %v96 = vld [vmem:[%s1 + $0x248] sm:$0xff]
  %v97 = vld [vmem:[%s1 + $0x250] sm:$0xff]
  %v98 = vld [vmem:[%s1 + $0x258] sm:$0xff]
  %v99 = vld [vmem:[%s1 + $0x260] sm:$0xff]
  %v100 = vld [vmem:[%s1 + $0x268] sm:$0xff]
  %v101 = vld [vmem:[%s1 + $0x270] sm:$0xff]
  %v102 = vld [vmem:[%s1 + $0x278] sm:$0xff]
  %v103 = vld [vmem:[%s1 + $0x280] sm:$0xff]
  %v104 = vld [vmem:[%s1 + $0x288] sm:$0xff]
  %v105 = vld [vmem:[%s1 + $0x290] sm:$0xff]
  %v106 = vld [vmem:[%s1 + $0x298] sm:$0xff]
  %v107 = vld [vmem:[%s1 + $0x2a0] sm:$0xff]
  %v108 = vld [vmem:[%s1 + $0x2a8] sm:$0xff]
  %v109 = vld [vmem:[%s1 + $0x2b0] sm:$0xff]
  %v110 = vld [vmem:[%s1 + $0x2b8] sm:$0xff]
  %v111 = vld [vmem:[%s1 + $0x2c0] sm:$0xff]
  %v112 = vld [vmem:[%s1 + $0x2c8] sm:$0xff]
  %v113 = vld [vmem:[%s1 + $0x2d0] sm:$0xff]
  %v114 = vld [vmem:[%s1 + $0x2d8] sm:$0xff]
  %v115 = vld [vmem:[%s1 + $0x2e0] sm:$0xff]
  %v116 = vld [vmem:[%s1 + $0x2e8] sm:$0xff]
  %v117 = vld [vmem:[%s1 + $0x2f0] sm:$0xff]
  %v118 = vld [vmem:[%s1 + $0x2f8] sm:$0xff]
  %v119 = vld [vmem:[%s1 + $0x300] sm:$0xff]
  %v120 = vld [vmem:[%s1 + $0x308] sm:$0xff]
  %v121 = vld [vmem:[%s1 + $0x310] sm:$0xff]
  %v122 = vld [vmem:[%s1 + $0x318] sm:$0xff]
  %v123 = vld [vmem:[%s1 + $0x320] sm:$0xff]
  %v124 = vld [vmem:[%s1 + $0x328] sm:$0xff]
  %v125 = vld [vmem:[%s1 + $0x330] sm:$0xff]
  %v126 = vld [vmem:[%s1 + $0x338] sm:$0xff]
  %v127 = vld [vmem:[%s1 + $0x340] sm:$0xff]
  %v128 = vld [vmem:[%s1 + $0x348] sm:$0xff]
  %v129 = vld [vmem:[%s1 + $0x350] sm:$0xff]
  %v130 = vld [vmem:[%s1 + $0x358] sm:$0xff]
  %v131 = vld [vmem:[%s1 + $0x360] sm:$0xff]
  %v132 = vld [vmem:[%s1 + $0x368] sm:$0xff]
  %v133 = vld [vmem:[%s1 + $0x370] sm:$0xff]
  %v134 = vld [vmem:[%s1 + $0x378] sm:$0xff]
  %v135 = vld [vmem:[%s1 + $0x380] sm:$0xff]
  %v136 = vld [vmem:[%s1 + $0x388] sm:$0xff]
  %v137 = vld [vmem:[%s1 + $0x390] sm:$0xff]
  %v138 = vld [vmem:[%s1 + $0x398] sm:$0xff]
  %v139 = vld [vmem:[%s1 + $0x3a0] sm:$0xff]
  %v140 = vld [vmem:[%s1 + $0x3a8] sm:$0xff]
  %v141 = vld [vmem:[%s1 + $0x3b0] sm:$0xff]
  %v142 = vld [vmem:[%s1 + $0x3b8] sm:$0xff]
  %v143 = vld [vmem:[%s1 + $0x3c0] sm:$0xff]
  %v144 = vld [vmem:[%s1 + $0x3c8] sm:$0xff]
  %v145 = vld [vmem:[%s1 + $0x3d0] sm:$0xff]
  %v146 = vld [vmem:[%s1 + $0x3d8] sm:$0xff]
  %v147 = vld [vmem:[%s1 + $0x3e0] sm:$0xff]
  %v148 = vld [vmem:[%s1 + $0x3e8] sm:$0xff]
  %v149 = vld [vmem:[%s1 + $0x3f0] sm:$0xff]
  %v150 = vld [vmem:[%s1 + $0x3f8] sm:$0xff]
  %v151 = vld [vmem:[%s1 + $0x400] sm:$0xff]
  %v152 = vld [vmem:[%s1 + $0x408] sm:$0xff]
  %v153 = vld [vmem:[%s1 + $0x410] sm:$0xff]
  %v154 = vld [vmem:[%s1 + $0x418] sm:$0xff]
  %v155 = vld [vmem:[%s1 + $0x420] sm:$0xff]
  %v156 = vld [vmem:[%s1 + $0x428] sm:$0xff]
  %v157 = vld [vmem:[%s1 + $0x430] sm:$0xff]
  %v158 = vld [vmem:[%s1 + $0x438] sm:$0xff]
  %v159 = vld [vmem:[%s1 + $0x440] sm:$0xff]
  %v160 = vld [vmem:[%s1 + $0x448] sm:$0xff]
  %v161 = vld [vmem:[%s1 + $0x450] sm:$0xff]
  %v162 = vld [vmem:[%s1 + $0x458] sm:$0xff]
  %v163 = vld [vmem:[%s1 + $0x460] sm:$0xff]
  %v164 = vld [vmem:[%s1 + $0x468] sm:$0xff]
  %v165 = vld [vmem:[%s1 + $0x470] sm:$0xff]
  %v166 = vld [vmem:[%s1 + $0x478] sm:$0xff]
  %v167 = vld [vmem:[%s1 + $0x480] sm:$0xff]
  %v168 = vld [vmem:[%s1 + $0x488] sm:$0xff]
  %v169 = vld [vmem:[%s1 + $0x490] sm:$0xff]
  %v170 = vld [vmem:[%s1 + $0x498] sm:$0xff]
  %v171 = vld [vmem:[%s1 + $0x4a0] sm:$0xff]
  %v172 = vld [vmem:[%s1 + $0x4a8] sm:$0xff]
  %v173 = vld [vmem:[%s1 + $0x4b0] sm:$0xff]
  %v174 = vld [vmem:[%s1 + $0x4b8] sm:$0xff]
  %v175 = vld [vmem:[%s1 + $0x4c0] sm:$0xff]
  %v176 = vld [vmem:[%s1 + $0x4c8] sm:$0xff]
  %v177 = vld [vmem:[%s1 + $0x4d0] sm:$0xff]
  %v178 = vld [vmem:[%s1 + $0x4d8] sm:$0xff]
  %v179 = vld [vmem:[%s1 + $0x4e0] sm:$0xff]
  %v180 = vld [vmem:[%s1 + $0x4e8] sm:$0xff]
  %v181 = vld [vmem:[%s1 + $0x4f0] sm:$0xff]
  %v182 = vld [vmem:[%s1 + $0x4f8] sm:$0xff]
  %v183 = vld [vmem:[%s1 + $0x500] sm:$0xff]
  %v184 = vld [vmem:[%s1 + $0x508] sm:$0xff]
  %v185 = vld [vmem:[%s1 + $0x510] sm:$0xff]
  %v186 = vld [vmem:[%s1 + $0x518] sm:$0xff]
  %v187 = vld [vmem:[%s1 + $0x520] sm:$0xff]
  %v188 = vld [vmem:[%s1 + $0x528] sm:$0xff]
  %v189 = vld [vmem:[%s1 + $0x530] sm:$0xff]
  %v190 = vld [vmem:[%s1 + $0x538] sm:$0xff]
  %v191 = vld [vmem:[%s1 + $0x540] sm:$0xff]
  %v192 = vld [vmem:[%s1 + $0x548] sm:$0xff]
  %v193 = vld [vmem:[%s1 + $0x550] sm:$0xff]
  %v194 = vld [vmem:[%s1 + $0x558] sm:$0xff]
  %v195 = vld [vmem:[%s1 + $0x560] sm:$0xff]
  %v196 = vld [vmem:[%s1 + $0x568] sm:$0xff]
  %v197 = vld [vmem:[%s1 + $0x570] sm:$0xff]
  %v198 = vld [vmem:[%s1 + $0x578] sm:$0xff]
  %v199 = vld [vmem:[%s1 + $0x580] sm:$0xff]
  %v200 = vld [vmem:[%s1 + $0x588] sm:$0xff]
  %v201 = vld [vmem:[%s1 + $0x590] sm:$0xff]
  %v202 = vld [vmem:[%s1 + $0x598] sm:$0xff]
  %v203 = vld [vmem:[%s1 + $0x5a0] sm:$0xff]
  %v204 = vld [vmem:[%s1 + $0x5a8] sm:$0xff]
  %v205 = vld [vmem:[%s1 + $0x5b0] sm:$0xff]
  %v206 = vld [vmem:[%s1 + $0x5b8] sm:$0xff]
  %v207 = vld [vmem:[%s1 + $0x5c0] sm:$0xff]
  %v208 = vld [vmem:[%s1 + $0x5c8] sm:$0xff]
  %v209 = vld [vmem:[%s1 + $0x5d0] sm:$0xff]
  %v210 = vld [vmem:[%s1 + $0x5d8] sm:$0xff]
  %v211 = vld [vmem:[%s1 + $0x5e0] sm:$0xff]
  %v212 = vld [vmem:[%s1 + $0x5e8] sm:$0xff]
  %v213 = vld [vmem:[%s1 + $0x5f0] sm:$0xff]
  %v214 = vld [vmem:[%s1 + $0x5f8] sm:$0xff]
  %v215 = vld [vmem:[%s1 + $0x600] sm:$0xff]
  %v216 = vld [vmem:[%s1 + $0x608] sm:$0xff]
  %v217 = vld [vmem:[%s1 + $0x610] sm:$0xff]
  %v218 = vld [vmem:[%s1 + $0x618] sm:$0xff]
  %v219 = vld [vmem:[%s1 + $0x620] sm:$0xff]
  %v220 = vld [vmem:[%s1 + $0x628] sm:$0xff]
  %v221 = vld [vmem:[%s1 + $0x630] sm:$0xff]
  %v222 = vld [vmem:[%s1 + $0x638] sm:$0xff]
  %v223 = vld [vmem:[%s1 + $0x640] sm:$0xff]
  %v224 = vld [vmem:[%s1 + $0x648] sm:$0xff]
  %v225 = vld [vmem:[%s1 + $0x650] sm:$0xff]
  %v226 = vld [vmem:[%s1 + $0x658] sm:$0xff]
  %v227 = vld [vmem:[%s1 + $0x660] sm:$0xff]
  %v228 = vld [vmem:[%s1 + $0x668] sm:$0xff]
  %v229 = vld [vmem:[%s1 + $0x670] sm:$0xff]
  %v230 = vld [vmem:[%s1 + $0x678] sm:$0xff]
  %v231 = vld [vmem:[%s1 + $0x680] sm:$0xff]
  %v232 = vld [vmem:[%s1 + $0x688] sm:$0xff]
  %v233 = vld [vmem:[%s1 + $0x690] sm:$0xff]
  %v234 = vld [vmem:[%s1 + $0x698] sm:$0xff]
  %v235 = vld [vmem:[%s1 + $0x6a0] sm:$0xff]
  %v236 = vld [vmem:[%s1 + $0x6a8] sm:$0xff]
  %v237 = vld [vmem:[%s1 + $0x6b0] sm:$0xff]
  %v238 = vld [vmem:[%s1 + $0x6b8] sm:$0xff]
  %v239 = vld [vmem:[%s1 + $0x6c0] sm:$0xff]
  %v240 = vld [vmem:[%s1 + $0x6c8] sm:$0xff]
  %v241 = vld [vmem:[%s1 + $0x6d0] sm:$0xff]
  %v242 = vld [vmem:[%s1 + $0x6d8] sm:$0xff]
  %v243 = vld [vmem:[%s1 + $0x6e0] sm:$0xff]
  %v244 = vld [vmem:[%s1 + $0x6e8] sm:$0xff]
  %v245 = vld [vmem:[%s1 + $0x6f0] sm:$0xff]
  %v246 = vld [vmem:[%s1 + $0x6f8] sm:$0xff]
  %v247 = vld [vmem:[%s1 + $0x700] sm:$0xff]
  %v248 = vld [vmem:[%s1 + $0x708] sm:$0xff]
  %v249 = vld [vmem:[%s1 + $0x710] sm:$0xff]
  %v250 = vld [vmem:[%s1 + $0x718] sm:$0xff]
  %v251 = vld [vmem:[%s1 + $0x720] sm:$0xff]
  %v252 = vld [vmem:[%s1 + $0x728] sm:$0xff]
  %v253 = vld [vmem:[%s1 + $0x730] sm:$0xff]
  %v254 = vld [vmem:[%s1 + $0x738] sm:$0xff]
  %v255 = vld [vmem:[%s1 + $0x740] sm:$0xff]
  %v256 = vld [vmem:[%s1 + $0x748] sm:$0xff]
  %v257 = vld [vmem:[%s1 + $0x750] sm:$0xff]
  %v258 = vld [vmem:[%s1 + $0x758] sm:$0xff]
  %v259 = vld [vmem:[%s1 + $0x760] sm:$0xff]
  %v260 = vld [vmem:[%s1 + $0x768] sm:$0xff]
  %v261 = vld [vmem:[%s1 + $0x770] sm:$0xff]
  %v262 = vld [vmem:[%s1 + $0x778] sm:$0xff]
  %v263 = vld [vmem:[%s1 + $0x780] sm:$0xff]
  %v264 = vld [vmem:[%s1 + $0x788] sm:$0xff]
  %v265 = vld [vmem:[%s1 + $0x790] sm:$0xff]
  %v266 = vld [vmem:[%s1 + $0x798] sm:$0xff]
  %v267 = vld [vmem:[%s1 + $0x7a0] sm:$0xff]
  %v268 = vld [vmem:[%s1 + $0x7a8] sm:$0xff]
  %v269 = vld [vmem:[%s1 + $0x7b0] sm:$0xff]
  %v270 = vld [vmem:[%s1 + $0x7b8] sm:$0xff]
  %v271 = vld [vmem:[%s1 + $0x7c0] sm:$0xff]
  %v272 = vld [vmem:[%s1 + $0x7c8] sm:$0xff]
  %v273 = vld [vmem:[%s1 + $0x7d0] sm:$0xff]
  %v274 = vld [vmem:[%s1 + $0x7d8] sm:$0xff]
  %v275 = vld [vmem:[%s1 + $0x7e0] sm:$0xff]
  %v276 = vld [vmem:[%s1 + $0x7e8] sm:$0xff]
  %v277 = vld [vmem:[%s1 + $0x7f0] sm:$0xff]
  %v278 = vld [vmem:[%s1 + $0x7f8] sm:$0xff]
  %v279 = vld [vmem:[%s1 + $0x800] sm:$0xff]
  %v280 = vld [vmem:[%s1 + $0x808] sm:$0xff]
  %v281 = vld [vmem:[%s1 + $0x810] sm:$0xff]
  %v282 = vld [vmem:[%s1 + $0x818] sm:$0xff]
  %v283 = vld [vmem:[%s1 + $0x820] sm:$0xff]
  %v284 = vld [vmem:[%s1 + $0x828] sm:$0xff]
  %v285 = vld [vmem:[%s1 + $0x830] sm:$0xff]
  %v286 = vld [vmem:[%s1 + $0x838] sm:$0xff]
  %v287 = vld [vmem:[%s1 + $0x840] sm:$0xff]
  %v288 = vld [vmem:[%s1 + $0x848] sm:$0xff]
  %v289 = vld [vmem:[%s1 + $0x850] sm:$0xff]
  %v290 = vld [vmem:[%s1 + $0x858] sm:$0xff]
  %v291 = vld [vmem:[%s1 + $0x860] sm:$0xff]
  %v292 = vld [vmem:[%s1 + $0x868] sm:$0xff]
  %v293 = vld [vmem:[%s1 + $0x870] sm:$0xff]
  %v294 = vld [vmem:[%s1 + $0x878] sm:$0xff]
  %v295 = vld [vmem:[%s1 + $0x880] sm:$0xff]
  %v296 = vld [vmem:[%s1 + $0x888] sm:$0xff]
  %v297 = vld [vmem:[%s1 + $0x890] sm:$0xff]
  %v298 = vld [vmem:[%s1 + $0x898] sm:$0xff]
  %v299 = vld [vmem:[%s1 + $0x8a0] sm:$0xff]
  %v300 = vld [vmem:[%s1 + $0x8a8] sm:$0xff]
  %v301 = vld [vmem:[%s1 + $0x8b0] sm:$0xff]
  %v302 = vld [vmem:[%s1 + $0x8b8] sm:$0xff]
  %v303 = vld [vmem:[%s1 + $0x8c0] sm:$0xff]
  %v304 = vld [vmem:[%s1 + $0x8c8] sm:$0xff]
  %v305 = vld [vmem:[%s1 + $0x8d0] sm:$0xff]
  %v306 = vld [vmem:[%s1 + $0x8d8] sm:$0xff]
  %v307 = vld [vmem:[%s1 + $0x8e0] sm:$0xff]
  %v308 = vld [vmem:[%s1 + $0x8e8] sm:$0xff]
  %v309 = vld [vmem:[%s1 + $0x8f0] sm:$0xff]
  %v310 = vld [vmem:[%s1 + $0x8f8] sm:$0xff]
  %v311 = vld [vmem:[%s1 + $0x900] sm:$0xff]
  %v312 = vld [vmem:[%s1 + $0x908] sm:$0xff]
  %v313 = vld [vmem:[%s1 + $0x910] sm:$0xff]
  %v314 = vld [vmem:[%s1 + $0x918] sm:$0xff]
  %v315 = vld [vmem:[%s1 + $0x920] sm:$0xff]
  %v316 = vld [vmem:[%s1 + $0x928] sm:$0xff]
  %v317 = vld [vmem:[%s1 + $0x930] sm:$0xff]
  %v318 = vld [vmem:[%s1 + $0x938] sm:$0xff]
  %v319 = vld [vmem:[%s1 + $0x940] sm:$0xff]
  %v320 = vld [vmem:[%s1 + $0x948] sm:$0xff]
  %v321 = vld [vmem:[%s1 + $0x950] sm:$0xff]
  %v322 = vld [vmem:[%s1 + $0x958] sm:$0xff]
  %v323 = vld [vmem:[%s1 + $0x960] sm:$0xff]
  %v324 = vld [vmem:[%s1 + $0x968] sm:$0xff]
  %v325 = vld [vmem:[%s1 + $0x970] sm:$0xff]
  %v326 = vld [vmem:[%s1 + $0x978] sm:$0xff]
  %v327 = vld [vmem:[%s1 + $0x980] sm:$0xff]
  %v328 = vld [vmem:[%s1 + $0x988] sm:$0xff]
  %v329 = vld [vmem:[%s1 + $0x990] sm:$0xff]
  %v330 = vld [vmem:[%s1 + $0x998] sm:$0xff]
  %v331 = vld [vmem:[%s1 + $0x9a0] sm:$0xff]
  %v332 = vld [vmem:[%s1 + $0x9a8] sm:$0xff]
  %v333 = vld [vmem:[%s1 + $0x9b0] sm:$0xff]
  %v334 = vld [vmem:[%s1 + $0x9b8] sm:$0xff]
  %v335 = vld [vmem:[%s1 + $0x9c0] sm:$0xff]
  %v336 = vld [vmem:[%s1 + $0x9c8] sm:$0xff]
  %v337 = vld [vmem:[%s1 + $0x9d0] sm:$0xff]
  %v338 = vld [vmem:[%s1 + $0x9d8] sm:$0xff]
  %v339 = vld [vmem:[%s1 + $0x9e0] sm:$0xff]
  %v340 = vld [vmem:[%s1 + $0x9e8] sm:$0xff]
  %v341 = vld [vmem:[%s1 + $0x9f0] sm:$0xff]
  %v342 = vld [vmem:[%s1 + $0x9f8] sm:$0xff]
  %v343 = vld [vmem:[%s1 + $0xa00] sm:$0xff]
  %v344 = vld [vmem:[%s1 + $0xa08] sm:$0xff]
  %v345 = vld [vmem:[%s1 + $0xa10] sm:$0xff]
  %v346 = vld [vmem:[%s1 + $0xa18] sm:$0xff]
  %v347 = vld [vmem:[%s1 + $0xa20] sm:$0xff]
  %v348 = vld [vmem:[%s1 + $0xa28] sm:$0xff]
  %v349 = vld [vmem:[%s1 + $0xa30] sm:$0xff]
  %v350 = vld [vmem:[%s1 + $0xa38] sm:$0xff]
  %v351 = vld [vmem:[%s1 + $0xa40] sm:$0xff]
  %v352 = vld [vmem:[%s1 + $0xa48] sm:$0xff]
  %v353 = vld [vmem:[%s1 + $0xa50] sm:$0xff]
  %v354 = vld [vmem:[%s1 + $0xa58] sm:$0xff]
  %v355 = vld [vmem:[%s1 + $0xa60] sm:$0xff]
  %v356 = vld [vmem:[%s1 + $0xa68] sm:$0xff]
  %v357 = vld [vmem:[%s1 + $0xa70] sm:$0xff]
  %v358 = vld [vmem:[%s1 + $0xa78] sm:$0xff]
  %v359 = vld [vmem:[%s1 + $0xa80] sm:$0xff]
  %v360 = vld [vmem:[%s1 + $0xa88] sm:$0xff]
  %v361 = vld [vmem:[%s1 + $0xa90] sm:$0xff]
  %v362 = vld [vmem:[%s1 + $0xa98] sm:$0xff]
  %v363 = vld [vmem:[%s1 + $0xaa0] sm:$0xff]
  %v364 = vld [vmem:[%s1 + $0xaa8] sm:$0xff]
  %v365 = vld [vmem:[%s1 + $0xab0] sm:$0xff]
  %v366 = vld [vmem:[%s1 + $0xab8] sm:$0xff]
  %v367 = vld [vmem:[%s1 + $0xac0] sm:$0xff]
  %v368 = vld [vmem:[%s1 + $0xac8] sm:$0xff]
  %v369 = vld [vmem:[%s1 + $0xad0] sm:$0xff]
  %v370 = vld [vmem:[%s1 + $0xad8] sm:$0xff]
  %v371 = vld [vmem:[%s1 + $0xae0] sm:$0xff]
  %v372 = vld [vmem:[%s1 + $0xae8] sm:$0xff]
  %v373 = vld [vmem:[%s1 + $0xaf0] sm:$0xff]
  %v374 = vld [vmem:[%s1 + $0xaf8] sm:$0xff]
  %v375 = vld [vmem:[%s1 + $0xb00] sm:$0xff]
  %v376 = vld [vmem:[%s1 + $0xb08] sm:$0xff]
  %v377 = vld [vmem:[%s1 + $0xb10] sm:$0xff]
  %v378 = vld [vmem:[%s1 + $0xb18] sm:$0xff]
  %v379 = vld [vmem:[%s1 + $0xb20] sm:$0xff]
  %v380 = vld [vmem:[%s1 + $0xb28] sm:$0xff]
  %v381 = vld [vmem:[%s1 + $0xb30] sm:$0xff]
  %v382 = vld [vmem:[%s1 + $0xb38] sm:$0xff]
  %v383 = vld [vmem:[%s1 + $0xb40] sm:$0xff]
  %v384 = vld [vmem:[%s1 + $0xb48] sm:$0xff]
  %v385 = vld [vmem:[%s1 + $0xb50] sm:$0xff]
  %v386 = vld [vmem:[%s1 + $0xb58] sm:$0xff]
  %v387 = vld [vmem:[%s1 + $0xb60] sm:$0xff]
  %v388 = vld [vmem:[%s1 + $0xb68] sm:$0xff]
  %v389 = vld [vmem:[%s1 + $0xb70] sm:$0xff]
  %v390 = vld [vmem:[%s1 + $0xb78] sm:$0xff]
  %v391 = vld [vmem:[%s1 + $0xb80] sm:$0xff]
  %v392 = vld [vmem:[%s1 + $0xb88] sm:$0xff]
  %v393 = vld [vmem:[%s1 + $0xb90] sm:$0xff]
  %v394 = vld [vmem:[%s1 + $0xb98] sm:$0xff]
  %v395 = vld [vmem:[%s1 + $0xba0] sm:$0xff]
  %v396 = vld [vmem:[%s1 + $0xba8] sm:$0xff]
  %v397 = vld [vmem:[%s1 + $0xbb0] sm:$0xff]
  %v398 = vld [vmem:[%s1 + $0xbb8] sm:$0xff]
  %v399 = vld [vmem:[%s1 + $0xbc0] sm:$0xff]
  %v400 = vld [vmem:[%s1 + $0xbc8] sm:$0xff]
  %v401 = vld [vmem:[%s1 + $0xbd0] sm:$0xff]
  %v402 = vld [vmem:[%s1 + $0xbd8] sm:$0xff]
  %v403 = vld [vmem:[%s1 + $0xbe0] sm:$0xff]
  %v404 = vld [vmem:[%s1 + $0xbe8] sm:$0xff]
  %v405 = vld [vmem:[%s1 + $0xbf0] sm:$0xff]
  %v406 = vld [vmem:[%s1 + $0xbf8] sm:$0xff]
  %v407 = vld [vmem:[%s1 + $0xc00] sm:$0xff]
  %v408 = vld [vmem:[%s1 + $0xc08] sm:$0xff]
  %v409 = vld [vmem:[%s1 + $0xc10] sm:$0xff]
  %v410 = vld [vmem:[%s1 + $0xc18] sm:$0xff]
  %v411 = vld [vmem:[%s1 + $0xc20] sm:$0xff]
  %v412 = vld [vmem:[%s1 + $0xc28] sm:$0xff]
  %v413 = vld [vmem:[%s1 + $0xc30] sm:$0xff]
  %v414 = vld [vmem:[%s1 + $0xc38] sm:$0xff]
  %v415 = vld [vmem:[%s1 + $0xc40] sm:$0xff]
  %v416 = vld [vmem:[%s1 + $0xc48] sm:$0xff]
  %v417 = vld [vmem:[%s1 + $0xc50] sm:$0xff]
  %v418 = vld [vmem:[%s1 + $0xc58] sm:$0xff]
  %v419 = vld [vmem:[%s1 + $0xc60] sm:$0xff]
  %v420 = vld [vmem:[%s1 + $0xc68] sm:$0xff]
  %v421 = vld [vmem:[%s1 + $0xc70] sm:$0xff]
  %v422 = vld [vmem:[%s1 + $0xc78] sm:$0xff]
  %v423 = vld [vmem:[%s1 + $0xc80] sm:$0xff]
  %v424 = vld [vmem:[%s1 + $0xc88] sm:$0xff]
  %v425 = vld [vmem:[%s1 + $0xc90] sm:$0xff]
  %v426 = vld [vmem:[%s1 + $0xc98] sm:$0xff]
  %v427 = vld [vmem:[%s1 + $0xca0] sm:$0xff]
  %v428 = vld [vmem:[%s1 + $0xca8] sm:$0xff]
  %v429 = vld [vmem:[%s1 + $0xcb0] sm:$0xff]
  %v430 = vld [vmem:[%s1 + $0xcb8] sm:$0xff]
  %v431 = vld [vmem:[%s1 + $0xcc0] sm:$0xff]
  %v432 = vld [vmem:[%s1 + $0xcc8] sm:$0xff]
  %v433 = vld [vmem:[%s1 + $0xcd0] sm:$0xff]
  %v434 = vld [vmem:[%s1 + $0xcd8] sm:$0xff]
  %v435 = vld [vmem:[%s1 + $0xce0] sm:$0xff]
  %v436 = vld [vmem:[%s1 + $0xce8] sm:$0xff]
  %v437 = vld [vmem:[%s1 + $0xcf0] sm:$0xff]
  %v438 = vld [vmem:[%s1 + $0xcf8] sm:$0xff]
  %v439 = vld [vmem:[%s1 + $0xd00] sm:$0xff]
  %v440 = vld [vmem:[%s1 + $0xd08] sm:$0xff]
  %v441 = vld [vmem:[%s1 + $0xd10] sm:$0xff]
  %v442 = vld [vmem:[%s1 + $0xd18] sm:$0xff]
  %v443 = vld [vmem:[%s1 + $0xd20] sm:$0xff]
  %v444 = vld [vmem:[%s1 + $0xd28] sm:$0xff]
  %v445 = vld [vmem:[%s1 + $0xd30] sm:$0xff]
  %v446 = vld [vmem:[%s1 + $0xd38] sm:$0xff]
  %v447 = vld [vmem:[%s1 + $0xd40] sm:$0xff]
  %v448 = vld [vmem:[%s1 + $0xd48] sm:$0xff]
  %v449 = vld [vmem:[%s1 + $0xd50] sm:$0xff]
  %v450 = vld [vmem:[%s1 + $0xd58] sm:$0xff]
  %v451 = vld [vmem:[%s1 + $0xd60] sm:$0xff]
  %v452 = vld [vmem:[%s1 + $0xd68] sm:$0xff]
  %v453 = vld [vmem:[%s1 + $0xd70] sm:$0xff]
  %v454 = vld [vmem:[%s1 + $0xd78] sm:$0xff]
  %v455 = vld [vmem:[%s1 + $0xd80] sm:$0xff]
  %v456 = vld [vmem:[%s1 + $0xd88] sm:$0xff]
  %v457 = vld [vmem:[%s1 + $0xd90] sm:$0xff]
  %v458 = vld [vmem:[%s1 + $0xd98] sm:$0xff]
  %v459 = vld [vmem:[%s1 + $0xda0] sm:$0xff]
  %v460 = vld [vmem:[%s1 + $0xda8] sm:$0xff]
  %v461 = vld [vmem:[%s1 + $0xdb0] sm:$0xff]
  %v462 = vld [vmem:[%s1 + $0xdb8] sm:$0xff]
  %v463 = vld [vmem:[%s1 + $0xdc0] sm:$0xff]
  %v464 = vld [vmem:[%s1 + $0xdc8] sm:$0xff]
  %v465 = vld [vmem:[%s1 + $0xdd0] sm:$0xff]
  %v466 = vld [vmem:[%s1 + $0xdd8] sm:$0xff]
  %v467 = vld [vmem:[%s1 + $0xde0] sm:$0xff]
  %v468 = vld [vmem:[%s1 + $0xde8] sm:$0xff]
  %v469 = vld [vmem:[%s1 + $0xdf0] sm:$0xff]
  %v470 = vld [vmem:[%s1 + $0xdf8] sm:$0xff]
  %v471 = vld [vmem:[%s1 + $0xe00] sm:$0xff]
  %v472 = vld [vmem:[%s1 + $0xe08] sm:$0xff]
  %v473 = vld [vmem:[%s1 + $0xe10] sm:$0xff]
  %v474 = vld [vmem:[%s1 + $0xe18] sm:$0xff]
  %v475 = vld [vmem:[%s1 + $0xe20] sm:$0xff]
  %v476 = vld [vmem:[%s1 + $0xe28] sm:$0xff]
  %v477 = vld [vmem:[%s1 + $0xe30] sm:$0xff]
  %v478 = vld [vmem:[%s1 + $0xe38] sm:$0xff]
  %v479 = vld [vmem:[%s1 + $0xe40] sm:$0xff]
  %v480 = vld [vmem:[%s1 + $0xe48] sm:$0xff]
  %v481 = vld [vmem:[%s1 + $0xe50] sm:$0xff]
  %v482 = vld [vmem:[%s1 + $0xe58] sm:$0xff]
  %v483 = vld [vmem:[%s1 + $0xe60] sm:$0xff]
  %v484 = vld [vmem:[%s1 + $0xe68] sm:$0xff]
  %v485 = vld [vmem:[%s1 + $0xe70] sm:$0xff]
  %v486 = vld [vmem:[%s1 + $0xe78] sm:$0xff]
  %v487 = vld [vmem:[%s1 + $0xe80] sm:$0xff]
  %v488 = vld [vmem:[%s1 + $0xe88] sm:$0xff]
  %v489 = vld [vmem:[%s1 + $0xe90] sm:$0xff]
  %v490 = vld [vmem:[%s1 + $0xe98] sm:$0xff]
  %v491 = vld [vmem:[%s1 + $0xea0] sm:$0xff]
  %v492 = vld [vmem:[%s1 + $0xea8] sm:$0xff]
  %v493 = vld [vmem:[%s1 + $0xeb0] sm:$0xff]
  %v494 = vld [vmem:[%s1 + $0xeb8] sm:$0xff]
  %v495 = vld [vmem:[%s1 + $0xec0] sm:$0xff]
  %v496 = vld [vmem:[%s1 + $0xec8] sm:$0xff]
  %v497 = vld [vmem:[%s1 + $0xed0] sm:$0xff]
  %v498 = vld [vmem:[%s1 + $0xed8] sm:$0xff]
  %v499 = vld [vmem:[%s1 + $0xee0] sm:$0xff]
  %v500 = vld [vmem:[%s1 + $0xee8] sm:$0xff]
  %v501 = vld [vmem:[%s1 + $0xef0] sm:$0xff]
  %v502 = vld [vmem:[%s1 + $0xef8] sm:$0xff]
  %v503 = vld [vmem:[%s1 + $0xf00] sm:$0xff]
  %v504 = vld [vmem:[%s1 + $0xf08] sm:$0xff]
  %v505 = vld [vmem:[%s1 + $0xf10] sm:$0xff]
  %v506 = vld [vmem:[%s1 + $0xf18] sm:$0xff]
  %v507 = vld [vmem:[%s1 + $0xf20] sm:$0xff]
  %v508 = vld [vmem:[%s1 + $0xf28] sm:$0xff]
  %v509 = vld [vmem:[%s1 + $0xf30] sm:$0xff]
  %v510 = vld [vmem:[%s1 + $0xf38] sm:$0xff]
  %v511 = vld [vmem:[%s1 + $0xf40] sm:$0xff]
  %v512 = vld [vmem:[%s1 + $0xf48] sm:$0xff]
  %v513 = vld [vmem:[%s1 + $0xf50] sm:$0xff]
  %v514 = vld [vmem:[%s1 + $0xf58] sm:$0xff]
  %v515 = vld [vmem:[%s1 + $0xf60] sm:$0xff]
  %v516 = vld [vmem:[%s1 + $0xf68] sm:$0xff]
  %v517 = vld [vmem:[%s1 + $0xf70] sm:$0xff]
  %v518 = vld [vmem:[%s1 + $0xf78] sm:$0xff]
  %v519 = vld [vmem:[%s1 + $0xf80] sm:$0xff]
  %v520 = vld [vmem:[%s1 + $0xf88] sm:$0xff]
  %v521 = vld [vmem:[%s1 + $0xf90] sm:$0xff]
  %v522 = vld [vmem:[%s1 + $0xf98] sm:$0xff]
  %v523 = vld [vmem:[%s1 + $0xfa0] sm:$0xff]
  %v524 = vld [vmem:[%s1 + $0xfa8] sm:$0xff]
  %v525 = vld [vmem:[%s1 + $0xfb0] sm:$0xff]
  %v526 = vld [vmem:[%s1 + $0xfb8] sm:$0xff]
  %v527 = vld [vmem:[%s1 + $0xfc0] sm:$0xff]
  %v528 = vld [vmem:[%s1 + $0xfc8] sm:$0xff]
  %v529 = vld [vmem:[%s1 + $0xfd0] sm:$0xff]
  %v530 = vld [vmem:[%s1 + $0xfd8] sm:$0xff]
  %v531 = vld [vmem:[%s1 + $0xfe0] sm:$0xff]
  %v532 = vld [vmem:[%s1 + $0xfe8] sm:$0xff]
  %v533 = vld [vmem:[%s1 + $0xff0] sm:$0xff]
  %v534 = vld [vmem:[%s1 + $0xff8] sm:$0xff]
  %v535 = vld [vmem:[%s2] sm:$0xff]
  %v537 = vperm.slane %v535, 0
  %v538 = vperm.slane %v535, 1
  %v539 = vperm.slane %v535, 2
  %v540 = vperm.slane %v535, 3
  %v541 = vperm.slane %v535, 4
  %v542 = vperm.slane %v535, 5
  %v543 = vperm.slane %v535, 6
  %v544 = vperm.slane %v535, 7
  %554 = vst [vmem:[#allocation1] ss:$4 sm:$0xff] %v21
  %s556 = scalar_lea.vmem [#allocation1], 32
  %557 = vst [vmem:[%s556] ss:$4 sm:$0xff] %v22
  %v558 = vld.sshfl [vmem:[#allocation1] sm:$0xff pattern:$0x73625140]
  %v559 = vld.sshfl [vmem:[#allocation1 + $0x8] sm:$0xff pattern:$0x73625140]
  %v560 = vld.sshfl [vmem:[#allocation1 + $0x10] sm:$0xff pattern:$0x73625140]
  %v561 = vld.sshfl [vmem:[#allocation1 + $0x18] sm:$0xff pattern:$0x73625140]
  %v562 = vld.sshfl [vmem:[#allocation1 + $0x20] sm:$0xff pattern:$0x73625140]
  %v563 = vld.sshfl [vmem:[#allocation1 + $0x28] sm:$0xff pattern:$0x73625140]
  %v564 = vld.sshfl [vmem:[#allocation1 + $0x30] sm:$0xff pattern:$0x73625140]
  %v565 = vld.sshfl [vmem:[#allocation1 + $0x38] sm:$0xff pattern:$0x73625140]
  %v1086 = vunpack.c.l.b16 %v23
  %v1087 = vunpack.c.h.b16 %v23
  %v1088 = vunpack.c.l.b16 %v24
  %v1089 = vunpack.c.h.b16 %v24
  %v1090 = vunpack.c.l.b16 %v25
  %v1091 = vunpack.c.h.b16 %v25
  %v1092 = vunpack.c.l.b16 %v26
  %v1093 = vunpack.c.h.b16 %v26
  %v1094 = vunpack.c.l.b16 %v27
  %v1095 = vunpack.c.h.b16 %v27
  %v1096 = vunpack.c.l.b16 %v28
  %v1097 = vunpack.c.h.b16 %v28
  %v1098 = vunpack.c.l.b16 %v29
  %v1099 = vunpack.c.h.b16 %v29
  %v1100 = vunpack.c.l.b16 %v30
  %v1101 = vunpack.c.h.b16 %v30
  %v1102 = vunpack.c.l.b16 %v31
  %v1103 = vunpack.c.h.b16 %v31
  %v1104 = vunpack.c.l.b16 %v32
  %v1105 = vunpack.c.h.b16 %v32
  %v1106 = vunpack.c.l.b16 %v33
  %v1107 = vunpack.c.h.b16 %v33
  %v1108 = vunpack.c.l.b16 %v34
  %v1109 = vunpack.c.h.b16 %v34
  %v1110 = vunpack.c.l.b16 %v35
  %v1111 = vunpack.c.h.b16 %v35
  %v1112 = vunpack.c.l.b16 %v36
  %v1113 = vunpack.c.h.b16 %v36
  %v1114 = vunpack.c.l.b16 %v37
  %v1115 = vunpack.c.h.b16 %v37
  %v1116 = vunpack.c.l.b16 %v38
  %v1117 = vunpack.c.h.b16 %v38
  %v1118 = vunpack.c.l.b16 %v39
  %v1119 = vunpack.c.h.b16 %v39
  %v1120 = vunpack.c.l.b16 %v40
  %v1121 = vunpack.c.h.b16 %v40
  %v1122 = vunpack.c.l.b16 %v41
  %v1123 = vunpack.c.h.b16 %v41
  %v1124 = vunpack.c.l.b16 %v42
  %v1125 = vunpack.c.h.b16 %v42
  %v1126 = vunpack.c.l.b16 %v43
  %v1127 = vunpack.c.h.b16 %v43
  %v1128 = vunpack.c.l.b16 %v44
  %v1129 = vunpack.c.h.b16 %v44
  %v1130 = vunpack.c.l.b16 %v45
  %v1131 = vunpack.c.h.b16 %v45
  %v1132 = vunpack.c.l.b16 %v46
  %v1133 = vunpack.c.h.b16 %v46
  %v1134 = vunpack.c.l.b16 %v47
  %v1135 = vunpack.c.h.b16 %v47
  %v1136 = vunpack.c.l.b16 %v48
  %v1137 = vunpack.c.h.b16 %v48
  %v1138 = vunpack.c.l.b16 %v49
  %v1139 = vunpack.c.h.b16 %v49
  %v1140 = vunpack.c.l.b16 %v50
  %v1141 = vunpack.c.h.b16 %v50
  %v1142 = vunpack.c.l.b16 %v51
  %v1143 = vunpack.c.h.b16 %v51
  %v1144 = vunpack.c.l.b16 %v52
  %v1145 = vunpack.c.h.b16 %v52
  %v1146 = vunpack.c.l.b16 %v53
  %v1147 = vunpack.c.h.b16 %v53
  %v1148 = vunpack.c.l.b16 %v54
  %v1149 = vunpack.c.h.b16 %v54
  %v1150 = vunpack.c.l.b16 %v55
  %v1151 = vunpack.c.h.b16 %v55
  %v1152 = vunpack.c.l.b16 %v56
  %v1153 = vunpack.c.h.b16 %v56
  %v1154 = vunpack.c.l.b16 %v57
  %v1155 = vunpack.c.h.b16 %v57
  %v1156 = vunpack.c.l.b16 %v58
  %v1157 = vunpack.c.h.b16 %v58
  %v1158 = vunpack.c.l.b16 %v59
  %v1159 = vunpack.c.h.b16 %v59
  %v1160 = vunpack.c.l.b16 %v60
  %v1161 = vunpack.c.h.b16 %v60
  %v1162 = vunpack.c.l.b16 %v61
  %v1163 = vunpack.c.h.b16 %v61
  %v1164 = vunpack.c.l.b16 %v62
  %v1165 = vunpack.c.h.b16 %v62
  %v1166 = vunpack.c.l.b16 %v63
  %v1167 = vunpack.c.h.b16 %v63
  %v1168 = vunpack.c.l.b16 %v64
  %v1169 = vunpack.c.h.b16 %v64
  %v1170 = vunpack.c.l.b16 %v65
  %v1171 = vunpack.c.h.b16 %v65
  %v1172 = vunpack.c.l.b16 %v66
  %v1173 = vunpack.c.h.b16 %v66
  %v1174 = vunpack.c.l.b16 %v67
  %v1175 = vunpack.c.h.b16 %v67
  %v1176 = vunpack.c.l.b16 %v68
  %v1177 = vunpack.c.h.b16 %v68
  %v1178 = vunpack.c.l.b16 %v69
  %v1179 = vunpack.c.h.b16 %v69
  %v1180 = vunpack.c.l.b16 %v70
  %v1181 = vunpack.c.h.b16 %v70
  %v1182 = vunpack.c.l.b16 %v71
  %v1183 = vunpack.c.h.b16 %v71
  %v1184 = vunpack.c.l.b16 %v72
  %v1185 = vunpack.c.h.b16 %v72
  %v1186 = vunpack.c.l.b16 %v73
  %v1187 = vunpack.c.h.b16 %v73
  %v1188 = vunpack.c.l.b16 %v74
  %v1189 = vunpack.c.h.b16 %v74
  %v1190 = vunpack.c.l.b16 %v75
  %v1191 = vunpack.c.h.b16 %v75
  %v1192 = vunpack.c.l.b16 %v76
  %v1193 = vunpack.c.h.b16 %v76
  %v1194 = vunpack.c.l.b16 %v77
  %v1195 = vunpack.c.h.b16 %v77
  %v1196 = vunpack.c.l.b16 %v78
  %v1197 = vunpack.c.h.b16 %v78
  %v1198 = vunpack.c.l.b16 %v79
  %v1199 = vunpack.c.h.b16 %v79
  %v1200 = vunpack.c.l.b16 %v80
  %v1201 = vunpack.c.h.b16 %v80
  %v1202 = vunpack.c.l.b16 %v81
  %v1203 = vunpack.c.h.b16 %v81
  %v1204 = vunpack.c.l.b16 %v82
  %v1205 = vunpack.c.h.b16 %v82
  %v1206 = vunpack.c.l.b16 %v83
  %v1207 = vunpack.c.h.b16 %v83
  %v1208 = vunpack.c.l.b16 %v84
  %v1209 = vunpack.c.h.b16 %v84
  %v1210 = vunpack.c.l.b16 %v85
  %v1211 = vunpack.c.h.b16 %v85
  %v1212 = vunpack.c.l.b16 %v86
  %v1213 = vunpack.c.h.b16 %v86
  %v1214 = vunpack.c.l.b16 %v87
  %v1215 = vunpack.c.h.b16 %v87
  %v1216 = vunpack.c.l.b16 %v88
  %v1217 = vunpack.c.h.b16 %v88
  %v1218 = vunpack.c.l.b16 %v89
  %v1219 = vunpack.c.h.b16 %v89
  %v1220 = vunpack.c.l.b16 %v90
  %v1221 = vunpack.c.h.b16 %v90
  %v1222 = vunpack.c.l.b16 %v91
  %v1223 = vunpack.c.h.b16 %v91
  %v1224 = vunpack.c.l.b16 %v92
  %v1225 = vunpack.c.h.b16 %v92
  %v1226 = vunpack.c.l.b16 %v93
  %v1227 = vunpack.c.h.b16 %v93
  %v1228 = vunpack.c.l.b16 %v94
  %v1229 = vunpack.c.h.b16 %v94
  %v1230 = vunpack.c.l.b16 %v95
  %v1231 = vunpack.c.h.b16 %v95
  %v1232 = vunpack.c.l.b16 %v96
  %v1233 = vunpack.c.h.b16 %v96
  %v1234 = vunpack.c.l.b16 %v97
  %v1235 = vunpack.c.h.b16 %v97
  %v1236 = vunpack.c.l.b16 %v98
  %v1237 = vunpack.c.h.b16 %v98
  %v1238 = vunpack.c.l.b16 %v99
  %v1239 = vunpack.c.h.b16 %v99
  %v1240 = vunpack.c.l.b16 %v100
  %v1241 = vunpack.c.h.b16 %v100
  %v1242 = vunpack.c.l.b16 %v101
  %v1243 = vunpack.c.h.b16 %v101
  %v1244 = vunpack.c.l.b16 %v102
  %v1245 = vunpack.c.h.b16 %v102
  %v1246 = vunpack.c.l.b16 %v103
  %v1247 = vunpack.c.h.b16 %v103
  %v1248 = vunpack.c.l.b16 %v104
  %v1249 = vunpack.c.h.b16 %v104
  %v1250 = vunpack.c.l.b16 %v105
  %v1251 = vunpack.c.h.b16 %v105
  %v1252 = vunpack.c.l.b16 %v106
  %v1253 = vunpack.c.h.b16 %v106
  %v1254 = vunpack.c.l.b16 %v107
  %v1255 = vunpack.c.h.b16 %v107
  %v1256 = vunpack.c.l.b16 %v108
  %v1257 = vunpack.c.h.b16 %v108
  %v1258 = vunpack.c.l.b16 %v109
  %v1259 = vunpack.c.h.b16 %v109
  %v1260 = vunpack.c.l.b16 %v110
  %v1261 = vunpack.c.h.b16 %v110
  %v1262 = vunpack.c.l.b16 %v111
  %v1263 = vunpack.c.h.b16 %v111
  %v1264 = vunpack.c.l.b16 %v112
  %v1265 = vunpack.c.h.b16 %v112
  %v1266 = vunpack.c.l.b16 %v113
  %v1267 = vunpack.c.h.b16 %v113
  %v1268 = vunpack.c.l.b16 %v114
  %v1269 = vunpack.c.h.b16 %v114
  %v1270 = vunpack.c.l.b16 %v115
  %v1271 = vunpack.c.h.b16 %v115
  %v1272 = vunpack.c.l.b16 %v116
  %v1273 = vunpack.c.h.b16 %v116
  %v1274 = vunpack.c.l.b16 %v117
  %v1275 = vunpack.c.h.b16 %v117
  %v1276 = vunpack.c.l.b16 %v118
  %v1277 = vunpack.c.h.b16 %v118
  %v1278 = vunpack.c.l.b16 %v119
  %v1279 = vunpack.c.h.b16 %v119
  %v1280 = vunpack.c.l.b16 %v120
  %v1281 = vunpack.c.h.b16 %v120
  %v1282 = vunpack.c.l.b16 %v121
  %v1283 = vunpack.c.h.b16 %v121
  %v1284 = vunpack.c.l.b16 %v122
  %v1285 = vunpack.c.h.b16 %v122
  %v1286 = vunpack.c.l.b16 %v123
  %v1287 = vunpack.c.h.b16 %v123
  %v1288 = vunpack.c.l.b16 %v124
  %v1289 = vunpack.c.h.b16 %v124
  %v1290 = vunpack.c.l.b16 %v125
  %v1291 = vunpack.c.h.b16 %v125
  %v1292 = vunpack.c.l.b16 %v126
  %v1293 = vunpack.c.h.b16 %v126
  %v1294 = vunpack.c.l.b16 %v127
  %v1295 = vunpack.c.h.b16 %v127
  %v1296 = vunpack.c.l.b16 %v128
  %v1297 = vunpack.c.h.b16 %v128
  %v1298 = vunpack.c.l.b16 %v129
  %v1299 = vunpack.c.h.b16 %v129
  %v1300 = vunpack.c.l.b16 %v130
  %v1301 = vunpack.c.h.b16 %v130
  %v1302 = vunpack.c.l.b16 %v131
  %v1303 = vunpack.c.h.b16 %v131
  %v1304 = vunpack.c.l.b16 %v132
  %v1305 = vunpack.c.h.b16 %v132
  %v1306 = vunpack.c.l.b16 %v133
  %v1307 = vunpack.c.h.b16 %v133
  %v1308 = vunpack.c.l.b16 %v134
  %v1309 = vunpack.c.h.b16 %v134
  %v1310 = vunpack.c.l.b16 %v135
  %v1311 = vunpack.c.h.b16 %v135
  %v1312 = vunpack.c.l.b16 %v136
  %v1313 = vunpack.c.h.b16 %v136
  %v1314 = vunpack.c.l.b16 %v137
  %v1315 = vunpack.c.h.b16 %v137
  %v1316 = vunpack.c.l.b16 %v138
  %v1317 = vunpack.c.h.b16 %v138
  %v1318 = vunpack.c.l.b16 %v139
  %v1319 = vunpack.c.h.b16 %v139
  %v1320 = vunpack.c.l.b16 %v140
  %v1321 = vunpack.c.h.b16 %v140
  %v1322 = vunpack.c.l.b16 %v141
  %v1323 = vunpack.c.h.b16 %v141
  %v1324 = vunpack.c.l.b16 %v142
  %v1325 = vunpack.c.h.b16 %v142
  %v1326 = vunpack.c.l.b16 %v143
  %v1327 = vunpack.c.h.b16 %v143
  %v1328 = vunpack.c.l.b16 %v144
  %v1329 = vunpack.c.h.b16 %v144
  %v1330 = vunpack.c.l.b16 %v145
  %v1331 = vunpack.c.h.b16 %v145
  %v1332 = vunpack.c.l.b16 %v146
  %v1333 = vunpack.c.h.b16 %v146
  %v1334 = vunpack.c.l.b16 %v147
  %v1335 = vunpack.c.h.b16 %v147
  %v1336 = vunpack.c.l.b16 %v148
  %v1337 = vunpack.c.h.b16 %v148
  %v1338 = vunpack.c.l.b16 %v149
  %v1339 = vunpack.c.h.b16 %v149
  %v1340 = vunpack.c.l.b16 %v150
  %v1341 = vunpack.c.h.b16 %v150
  %v1342 = vunpack.c.l.b16 %v151
  %v1343 = vunpack.c.h.b16 %v151
  %v1344 = vunpack.c.l.b16 %v152
  %v1345 = vunpack.c.h.b16 %v152
  %v1346 = vunpack.c.l.b16 %v153
  %v1347 = vunpack.c.h.b16 %v153
  %v1348 = vunpack.c.l.b16 %v154
  %v1349 = vunpack.c.h.b16 %v154
  %v1350 = vunpack.c.l.b16 %v155
  %v1351 = vunpack.c.h.b16 %v155
  %v1352 = vunpack.c.l.b16 %v156
  %v1353 = vunpack.c.h.b16 %v156
  %v1354 = vunpack.c.l.b16 %v157
  %v1355 = vunpack.c.h.b16 %v157
  %v1356 = vunpack.c.l.b16 %v158
  %v1357 = vunpack.c.h.b16 %v158
  %v1358 = vunpack.c.l.b16 %v159
  %v1359 = vunpack.c.h.b16 %v159
  %v1360 = vunpack.c.l.b16 %v160
  %v1361 = vunpack.c.h.b16 %v160
  %v1362 = vunpack.c.l.b16 %v161
  %v1363 = vunpack.c.h.b16 %v161
  %v1364 = vunpack.c.l.b16 %v162
  %v1365 = vunpack.c.h.b16 %v162
  %v1366 = vunpack.c.l.b16 %v163
  %v1367 = vunpack.c.h.b16 %v163
  %v1368 = vunpack.c.l.b16 %v164
  %v1369 = vunpack.c.h.b16 %v164
  %v1370 = vunpack.c.l.b16 %v165
  %v1371 = vunpack.c.h.b16 %v165
  %v1372 = vunpack.c.l.b16 %v166
  %v1373 = vunpack.c.h.b16 %v166
  %v1374 = vunpack.c.l.b16 %v167
  %v1375 = vunpack.c.h.b16 %v167
  %v1376 = vunpack.c.l.b16 %v168
  %v1377 = vunpack.c.h.b16 %v168
  %v1378 = vunpack.c.l.b16 %v169
  %v1379 = vunpack.c.h.b16 %v169
  %v1380 = vunpack.c.l.b16 %v170
  %v1381 = vunpack.c.h.b16 %v170
  %v1382 = vunpack.c.l.b16 %v171
  %v1383 = vunpack.c.h.b16 %v171
  %v1384 = vunpack.c.l.b16 %v172
  %v1385 = vunpack.c.h.b16 %v172
  %v1386 = vunpack.c.l.b16 %v173
  %v1387 = vunpack.c.h.b16 %v173
  %v1388 = vunpack.c.l.b16 %v174
  %v1389 = vunpack.c.h.b16 %v174
  %v1390 = vunpack.c.l.b16 %v175
  %v1391 = vunpack.c.h.b16 %v175
  %v1392 = vunpack.c.l.b16 %v176
  %v1393 = vunpack.c.h.b16 %v176
  %v1394 = vunpack.c.l.b16 %v177
  %v1395 = vunpack.c.h.b16 %v177
  %v1396 = vunpack.c.l.b16 %v178
  %v1397 = vunpack.c.h.b16 %v178
  %v1398 = vunpack.c.l.b16 %v179
  %v1399 = vunpack.c.h.b16 %v179
  %v1400 = vunpack.c.l.b16 %v180
  %v1401 = vunpack.c.h.b16 %v180
  %v1402 = vunpack.c.l.b16 %v181
  %v1403 = vunpack.c.h.b16 %v181
  %v1404 = vunpack.c.l.b16 %v182
  %v1405 = vunpack.c.h.b16 %v182
  %v1406 = vunpack.c.l.b16 %v183
  %v1407 = vunpack.c.h.b16 %v183
  %v1408 = vunpack.c.l.b16 %v184
  %v1409 = vunpack.c.h.b16 %v184
  %v1410 = vunpack.c.l.b16 %v185
  %v1411 = vunpack.c.h.b16 %v185
  %v1412 = vunpack.c.l.b16 %v186
  %v1413 = vunpack.c.h.b16 %v186
  %v1414 = vunpack.c.l.b16 %v187
  %v1415 = vunpack.c.h.b16 %v187
  %v1416 = vunpack.c.l.b16 %v188
  %v1417 = vunpack.c.h.b16 %v188
  %v1418 = vunpack.c.l.b16 %v189
  %v1419 = vunpack.c.h.b16 %v189
  %v1420 = vunpack.c.l.b16 %v190
  %v1421 = vunpack.c.h.b16 %v190
  %v1422 = vunpack.c.l.b16 %v191
  %v1423 = vunpack.c.h.b16 %v191
  %v1424 = vunpack.c.l.b16 %v192
  %v1425 = vunpack.c.h.b16 %v192
  %v1426 = vunpack.c.l.b16 %v193
  %v1427 = vunpack.c.h.b16 %v193
  %v1428 = vunpack.c.l.b16 %v194
  %v1429 = vunpack.c.h.b16 %v194
  %v1430 = vunpack.c.l.b16 %v195
  %v1431 = vunpack.c.h.b16 %v195
  %v1432 = vunpack.c.l.b16 %v196
  %v1433 = vunpack.c.h.b16 %v196
  %v1434 = vunpack.c.l.b16 %v197
  %v1435 = vunpack.c.h.b16 %v197
  %v1436 = vunpack.c.l.b16 %v198
  %v1437 = vunpack.c.h.b16 %v198
  %v1438 = vunpack.c.l.b16 %v199
  %v1439 = vunpack.c.h.b16 %v199
  %v1440 = vunpack.c.l.b16 %v200
  %v1441 = vunpack.c.h.b16 %v200
  %v1442 = vunpack.c.l.b16 %v201
  %v1443 = vunpack.c.h.b16 %v201
  %v1444 = vunpack.c.l.b16 %v202
  %v1445 = vunpack.c.h.b16 %v202
  %v1446 = vunpack.c.l.b16 %v203
  %v1447 = vunpack.c.h.b16 %v203
  %v1448 = vunpack.c.l.b16 %v204
  %v1449 = vunpack.c.h.b16 %v204
  %v1450 = vunpack.c.l.b16 %v205
  %v1451 = vunpack.c.h.b16 %v205
  %v1452 = vunpack.c.l.b16 %v206
  %v1453 = vunpack.c.h.b16 %v206
  %v1454 = vunpack.c.l.b16 %v207
  %v1455 = vunpack.c.h.b16 %v207
  %v1456 = vunpack.c.l.b16 %v208
  %v1457 = vunpack.c.h.b16 %v208
  %v1458 = vunpack.c.l.b16 %v209
  %v1459 = vunpack.c.h.b16 %v209
  %v1460 = vunpack.c.l.b16 %v210
  %v1461 = vunpack.c.h.b16 %v210
  %v1462 = vunpack.c.l.b16 %v211
  %v1463 = vunpack.c.h.b16 %v211
  %v1464 = vunpack.c.l.b16 %v212
  %v1465 = vunpack.c.h.b16 %v212
  %v1466 = vunpack.c.l.b16 %v213
  %v1467 = vunpack.c.h.b16 %v213
  %v1468 = vunpack.c.l.b16 %v214
  %v1469 = vunpack.c.h.b16 %v214
  %v1470 = vunpack.c.l.b16 %v215
  %v1471 = vunpack.c.h.b16 %v215
  %v1472 = vunpack.c.l.b16 %v216
  %v1473 = vunpack.c.h.b16 %v216
  %v1474 = vunpack.c.l.b16 %v217
  %v1475 = vunpack.c.h.b16 %v217
  %v1476 = vunpack.c.l.b16 %v218
  %v1477 = vunpack.c.h.b16 %v218
  %v1478 = vunpack.c.l.b16 %v219
  %v1479 = vunpack.c.h.b16 %v219
  %v1480 = vunpack.c.l.b16 %v220
  %v1481 = vunpack.c.h.b16 %v220
  %v1482 = vunpack.c.l.b16 %v221
  %v1483 = vunpack.c.h.b16 %v221
  %v1484 = vunpack.c.l.b16 %v222
  %v1485 = vunpack.c.h.b16 %v222
  %v1486 = vunpack.c.l.b16 %v223
  %v1487 = vunpack.c.h.b16 %v223
  %v1488 = vunpack.c.l.b16 %v224
  %v1489 = vunpack.c.h.b16 %v224
  %v1490 = vunpack.c.l.b16 %v225
  %v1491 = vunpack.c.h.b16 %v225
  %v1492 = vunpack.c.l.b16 %v226
  %v1493 = vunpack.c.h.b16 %v226
  %v1494 = vunpack.c.l.b16 %v227
  %v1495 = vunpack.c.h.b16 %v227
  %v1496 = vunpack.c.l.b16 %v228
  %v1497 = vunpack.c.h.b16 %v228
  %v1498 = vunpack.c.l.b16 %v229
  %v1499 = vunpack.c.h.b16 %v229
  %v1500 = vunpack.c.l.b16 %v230
  %v1501 = vunpack.c.h.b16 %v230
  %v1502 = vunpack.c.l.b16 %v231
  %v1503 = vunpack.c.h.b16 %v231
  %v1504 = vunpack.c.l.b16 %v232
  %v1505 = vunpack.c.h.b16 %v232
  %v1506 = vunpack.c.l.b16 %v233
  %v1507 = vunpack.c.h.b16 %v233
  %v1508 = vunpack.c.l.b16 %v234
  %v1509 = vunpack.c.h.b16 %v234
  %v1510 = vunpack.c.l.b16 %v235
  %v1511 = vunpack.c.h.b16 %v235
  %v1512 = vunpack.c.l.b16 %v236
  %v1513 = vunpack.c.h.b16 %v236
  %v1514 = vunpack.c.l.b16 %v237
  %v1515 = vunpack.c.h.b16 %v237
  %v1516 = vunpack.c.l.b16 %v238
  %v1517 = vunpack.c.h.b16 %v238
  %v1518 = vunpack.c.l.b16 %v239
  %v1519 = vunpack.c.h.b16 %v239
  %v1520 = vunpack.c.l.b16 %v240
  %v1521 = vunpack.c.h.b16 %v240
  %v1522 = vunpack.c.l.b16 %v241
  %v1523 = vunpack.c.h.b16 %v241
  %v1524 = vunpack.c.l.b16 %v242
  %v1525 = vunpack.c.h.b16 %v242
  %v1526 = vunpack.c.l.b16 %v243
  %v1527 = vunpack.c.h.b16 %v243
  %v1528 = vunpack.c.l.b16 %v244
  %v1529 = vunpack.c.h.b16 %v244
  %v1530 = vunpack.c.l.b16 %v245
  %v1531 = vunpack.c.h.b16 %v245
  %v1532 = vunpack.c.l.b16 %v246
  %v1533 = vunpack.c.h.b16 %v246
  %v1534 = vunpack.c.l.b16 %v247
  %v1535 = vunpack.c.h.b16 %v247
  %v1536 = vunpack.c.l.b16 %v248
  %v1537 = vunpack.c.h.b16 %v248
  %v1538 = vunpack.c.l.b16 %v249
  %v1539 = vunpack.c.h.b16 %v249
  %v1540 = vunpack.c.l.b16 %v250
  %v1541 = vunpack.c.h.b16 %v250
  %v1542 = vunpack.c.l.b16 %v251
  %v1543 = vunpack.c.h.b16 %v251
  %v1544 = vunpack.c.l.b16 %v252
  %v1545 = vunpack.c.h.b16 %v252
  %v1546 = vunpack.c.l.b16 %v253
  %v1547 = vunpack.c.h.b16 %v253
  %v1548 = vunpack.c.l.b16 %v254
  %v1549 = vunpack.c.h.b16 %v254
  %v1550 = vunpack.c.l.b16 %v255
  %v1551 = vunpack.c.h.b16 %v255
  %v1552 = vunpack.c.l.b16 %v256
  %v1553 = vunpack.c.h.b16 %v256
  %v1554 = vunpack.c.l.b16 %v257
  %v1555 = vunpack.c.h.b16 %v257
  %v1556 = vunpack.c.l.b16 %v258
  %v1557 = vunpack.c.h.b16 %v258
  %v1558 = vunpack.c.l.b16 %v259
  %v1559 = vunpack.c.h.b16 %v259
  %v1560 = vunpack.c.l.b16 %v260
  %v1561 = vunpack.c.h.b16 %v260
  %v1562 = vunpack.c.l.b16 %v261
  %v1563 = vunpack.c.h.b16 %v261
  %v1564 = vunpack.c.l.b16 %v262
  %v1565 = vunpack.c.h.b16 %v262
  %v1566 = vunpack.c.l.b16 %v263
  %v1567 = vunpack.c.h.b16 %v263
  %v1568 = vunpack.c.l.b16 %v264
  %v1569 = vunpack.c.h.b16 %v264
  %v1570 = vunpack.c.l.b16 %v265
  %v1571 = vunpack.c.h.b16 %v265
  %v1572 = vunpack.c.l.b16 %v266
  %v1573 = vunpack.c.h.b16 %v266
  %v1574 = vunpack.c.l.b16 %v267
  %v1575 = vunpack.c.h.b16 %v267
  %v1576 = vunpack.c.l.b16 %v268
  %v1577 = vunpack.c.h.b16 %v268
  %v1578 = vunpack.c.l.b16 %v269
  %v1579 = vunpack.c.h.b16 %v269
  %v1580 = vunpack.c.l.b16 %v270
  %v1581 = vunpack.c.h.b16 %v270
  %v1582 = vunpack.c.l.b16 %v271
  %v1583 = vunpack.c.h.b16 %v271
  %v1584 = vunpack.c.l.b16 %v272
  %v1585 = vunpack.c.h.b16 %v272
  %v1586 = vunpack.c.l.b16 %v273
  %v1587 = vunpack.c.h.b16 %v273
  %v1588 = vunpack.c.l.b16 %v274
  %v1589 = vunpack.c.h.b16 %v274
  %v1590 = vunpack.c.l.b16 %v275
  %v1591 = vunpack.c.h.b16 %v275
  %v1592 = vunpack.c.l.b16 %v276
  %v1593 = vunpack.c.h.b16 %v276
  %v1594 = vunpack.c.l.b16 %v277
  %v1595 = vunpack.c.h.b16 %v277
  %v1596 = vunpack.c.l.b16 %v278
  %v1597 = vunpack.c.h.b16 %v278
  %v1598 = vunpack.c.l.b16 %v279
  %v1599 = vunpack.c.h.b16 %v279
  %v1600 = vunpack.c.l.b16 %v280
  %v1601 = vunpack.c.h.b16 %v280
  %v1602 = vunpack.c.l.b16 %v281
  %v1603 = vunpack.c.h.b16 %v281
  %v1604 = vunpack.c.l.b16 %v282
  %v1605 = vunpack.c.h.b16 %v282
  %v1606 = vunpack.c.l.b16 %v283
  %v1607 = vunpack.c.h.b16 %v283
  %v1608 = vunpack.c.l.b16 %v284
  %v1609 = vunpack.c.h.b16 %v284
  %v1610 = vunpack.c.l.b16 %v285
  %v1611 = vunpack.c.h.b16 %v285
  %v1612 = vunpack.c.l.b16 %v286
  %v1613 = vunpack.c.h.b16 %v286
  %v1614 = vunpack.c.l.b16 %v287
  %v1615 = vunpack.c.h.b16 %v287
  %v1616 = vunpack.c.l.b16 %v288
  %v1617 = vunpack.c.h.b16 %v288
  %v1618 = vunpack.c.l.b16 %v289
  %v1619 = vunpack.c.h.b16 %v289
  %v1620 = vunpack.c.l.b16 %v290
  %v1621 = vunpack.c.h.b16 %v290
  %v1622 = vunpack.c.l.b16 %v291
  %v1623 = vunpack.c.h.b16 %v291
  %v1624 = vunpack.c.l.b16 %v292
  %v1625 = vunpack.c.h.b16 %v292
  %v1626 = vunpack.c.l.b16 %v293
  %v1627 = vunpack.c.h.b16 %v293
  %v1628 = vunpack.c.l.b16 %v294
  %v1629 = vunpack.c.h.b16 %v294
  %v1630 = vunpack.c.l.b16 %v295
  %v1631 = vunpack.c.h.b16 %v295
  %v1632 = vunpack.c.l.b16 %v296
  %v1633 = vunpack.c.h.b16 %v296
  %v1634 = vunpack.c.l.b16 %v297
  %v1635 = vunpack.c.h.b16 %v297
  %v1636 = vunpack.c.l.b16 %v298
  %v1637 = vunpack.c.h.b16 %v298
  %v1638 = vunpack.c.l.b16 %v299
  %v1639 = vunpack.c.h.b16 %v299
  %v1640 = vunpack.c.l.b16 %v300
  %v1641 = vunpack.c.h.b16 %v300
  %v1642 = vunpack.c.l.b16 %v301
  %v1643 = vunpack.c.h.b16 %v301
  %v1644 = vunpack.c.l.b16 %v302
  %v1645 = vunpack.c.h.b16 %v302
  %v1646 = vunpack.c.l.b16 %v303
  %v1647 = vunpack.c.h.b16 %v303
  %v1648 = vunpack.c.l.b16 %v304
  %v1649 = vunpack.c.h.b16 %v304
  %v1650 = vunpack.c.l.b16 %v305
  %v1651 = vunpack.c.h.b16 %v305
  %v1652 = vunpack.c.l.b16 %v306
  %v1653 = vunpack.c.h.b16 %v306
  %v1654 = vunpack.c.l.b16 %v307
  %v1655 = vunpack.c.h.b16 %v307
  %v1656 = vunpack.c.l.b16 %v308
  %v1657 = vunpack.c.h.b16 %v308
  %v1658 = vunpack.c.l.b16 %v309
  %v1659 = vunpack.c.h.b16 %v309
  %v1660 = vunpack.c.l.b16 %v310
  %v1661 = vunpack.c.h.b16 %v310
  %v1662 = vunpack.c.l.b16 %v311
  %v1663 = vunpack.c.h.b16 %v311
  %v1664 = vunpack.c.l.b16 %v312
  %v1665 = vunpack.c.h.b16 %v312
  %v1666 = vunpack.c.l.b16 %v313
  %v1667 = vunpack.c.h.b16 %v313
  %v1668 = vunpack.c.l.b16 %v314
  %v1669 = vunpack.c.h.b16 %v314
  %v1670 = vunpack.c.l.b16 %v315
  %v1671 = vunpack.c.h.b16 %v315
  %v1672 = vunpack.c.l.b16 %v316
  %v1673 = vunpack.c.h.b16 %v316
  %v1674 = vunpack.c.l.b16 %v317
  %v1675 = vunpack.c.h.b16 %v317
  %v1676 = vunpack.c.l.b16 %v318
  %v1677 = vunpack.c.h.b16 %v318
  %v1678 = vunpack.c.l.b16 %v319
  %v1679 = vunpack.c.h.b16 %v319
  %v1680 = vunpack.c.l.b16 %v320
  %v1681 = vunpack.c.h.b16 %v320
  %v1682 = vunpack.c.l.b16 %v321
  %v1683 = vunpack.c.h.b16 %v321
  %v1684 = vunpack.c.l.b16 %v322
  %v1685 = vunpack.c.h.b16 %v322
  %v1686 = vunpack.c.l.b16 %v323
  %v1687 = vunpack.c.h.b16 %v323
  %v1688 = vunpack.c.l.b16 %v324
  %v1689 = vunpack.c.h.b16 %v324
  %v1690 = vunpack.c.l.b16 %v325
  %v1691 = vunpack.c.h.b16 %v325
  %v1692 = vunpack.c.l.b16 %v326
  %v1693 = vunpack.c.h.b16 %v326
  %v1694 = vunpack.c.l.b16 %v327
  %v1695 = vunpack.c.h.b16 %v327
  %v1696 = vunpack.c.l.b16 %v328
  %v1697 = vunpack.c.h.b16 %v328
  %v1698 = vunpack.c.l.b16 %v329
  %v1699 = vunpack.c.h.b16 %v329
  %v1700 = vunpack.c.l.b16 %v330
  %v1701 = vunpack.c.h.b16 %v330
  %v1702 = vunpack.c.l.b16 %v331
  %v1703 = vunpack.c.h.b16 %v331
  %v1704 = vunpack.c.l.b16 %v332
  %v1705 = vunpack.c.h.b16 %v332
  %v1706 = vunpack.c.l.b16 %v333
  %v1707 = vunpack.c.h.b16 %v333
  %v1708 = vunpack.c.l.b16 %v334
  %v1709 = vunpack.c.h.b16 %v334
  %v1710 = vunpack.c.l.b16 %v335
  %v1711 = vunpack.c.h.b16 %v335
  %v1712 = vunpack.c.l.b16 %v336
  %v1713 = vunpack.c.h.b16 %v336
  %v1714 = vunpack.c.l.b16 %v337
  %v1715 = vunpack.c.h.b16 %v337
  %v1716 = vunpack.c.l.b16 %v338
  %v1717 = vunpack.c.h.b16 %v338
  %v1718 = vunpack.c.l.b16 %v339
  %v1719 = vunpack.c.h.b16 %v339
  %v1720 = vunpack.c.l.b16 %v340
  %v1721 = vunpack.c.h.b16 %v340
  %v1722 = vunpack.c.l.b16 %v341
  %v1723 = vunpack.c.h.b16 %v341
  %v1724 = vunpack.c.l.b16 %v342
  %v1725 = vunpack.c.h.b16 %v342
  %v1726 = vunpack.c.l.b16 %v343
  %v1727 = vunpack.c.h.b16 %v343
  %v1728 = vunpack.c.l.b16 %v344
  %v1729 = vunpack.c.h.b16 %v344
  %v1730 = vunpack.c.l.b16 %v345
  %v1731 = vunpack.c.h.b16 %v345
  %v1732 = vunpack.c.l.b16 %v346
  %v1733 = vunpack.c.h.b16 %v346
  %v1734 = vunpack.c.l.b16 %v347
  %v1735 = vunpack.c.h.b16 %v347
  %v1736 = vunpack.c.l.b16 %v348
  %v1737 = vunpack.c.h.b16 %v348
  %v1738 = vunpack.c.l.b16 %v349
  %v1739 = vunpack.c.h.b16 %v349
  %v1740 = vunpack.c.l.b16 %v350
  %v1741 = vunpack.c.h.b16 %v350
  %v1742 = vunpack.c.l.b16 %v351
  %v1743 = vunpack.c.h.b16 %v351
  %v1744 = vunpack.c.l.b16 %v352
  %v1745 = vunpack.c.h.b16 %v352
  %v1746 = vunpack.c.l.b16 %v353
  %v1747 = vunpack.c.h.b16 %v353
  %v1748 = vunpack.c.l.b16 %v354
  %v1749 = vunpack.c.h.b16 %v354
  %v1750 = vunpack.c.l.b16 %v355
  %v1751 = vunpack.c.h.b16 %v355
  %v1752 = vunpack.c.l.b16 %v356
  %v1753 = vunpack.c.h.b16 %v356
  %v1754 = vunpack.c.l.b16 %v357
  %v1755 = vunpack.c.h.b16 %v357
  %v1756 = vunpack.c.l.b16 %v358
  %v1757 = vunpack.c.h.b16 %v358
  %v1758 = vunpack.c.l.b16 %v359
  %v1759 = vunpack.c.h.b16 %v359
  %v1760 = vunpack.c.l.b16 %v360
  %v1761 = vunpack.c.h.b16 %v360
  %v1762 = vunpack.c.l.b16 %v361
  %v1763 = vunpack.c.h.b16 %v361
  %v1764 = vunpack.c.l.b16 %v362
  %v1765 = vunpack.c.h.b16 %v362
  %v1766 = vunpack.c.l.b16 %v363
  %v1767 = vunpack.c.h.b16 %v363
  %v1768 = vunpack.c.l.b16 %v364
  %v1769 = vunpack.c.h.b16 %v364
  %v1770 = vunpack.c.l.b16 %v365
  %v1771 = vunpack.c.h.b16 %v365
  %v1772 = vunpack.c.l.b16 %v366
  %v1773 = vunpack.c.h.b16 %v366
  %v1774 = vunpack.c.l.b16 %v367
  %v1775 = vunpack.c.h.b16 %v367
  %v1776 = vunpack.c.l.b16 %v368
  %v1777 = vunpack.c.h.b16 %v368
  %v1778 = vunpack.c.l.b16 %v369
  %v1779 = vunpack.c.h.b16 %v369
  %v1780 = vunpack.c.l.b16 %v370
  %v1781 = vunpack.c.h.b16 %v370
  %v1782 = vunpack.c.l.b16 %v371
  %v1783 = vunpack.c.h.b16 %v371
  %v1784 = vunpack.c.l.b16 %v372
  %v1785 = vunpack.c.h.b16 %v372
  %v1786 = vunpack.c.l.b16 %v373
  %v1787 = vunpack.c.h.b16 %v373
  %v1788 = vunpack.c.l.b16 %v374
  %v1789 = vunpack.c.h.b16 %v374
  %v1790 = vunpack.c.l.b16 %v375
  %v1791 = vunpack.c.h.b16 %v375
  %v1792 = vunpack.c.l.b16 %v376
  %v1793 = vunpack.c.h.b16 %v376
  %v1794 = vunpack.c.l.b16 %v377
  %v1795 = vunpack.c.h.b16 %v377
  %v1796 = vunpack.c.l.b16 %v378
  %v1797 = vunpack.c.h.b16 %v378
  %v1798 = vunpack.c.l.b16 %v379
  %v1799 = vunpack.c.h.b16 %v379
  %v1800 = vunpack.c.l.b16 %v380
  %v1801 = vunpack.c.h.b16 %v380
  %v1802 = vunpack.c.l.b16 %v381
  %v1803 = vunpack.c.h.b16 %v381
  %v1804 = vunpack.c.l.b16 %v382
  %v1805 = vunpack.c.h.b16 %v382
  %v1806 = vunpack.c.l.b16 %v383
  %v1807 = vunpack.c.h.b16 %v383
  %v1808 = vunpack.c.l.b16 %v384
  %v1809 = vunpack.c.h.b16 %v384
  %v1810 = vunpack.c.l.b16 %v385
  %v1811 = vunpack.c.h.b16 %v385
  %v1812 = vunpack.c.l.b16 %v386
  %v1813 = vunpack.c.h.b16 %v386
  %v1814 = vunpack.c.l.b16 %v387
  %v1815 = vunpack.c.h.b16 %v387
  %v1816 = vunpack.c.l.b16 %v388
  %v1817 = vunpack.c.h.b16 %v388
  %v1818 = vunpack.c.l.b16 %v389
  %v1819 = vunpack.c.h.b16 %v389
  %v1820 = vunpack.c.l.b16 %v390
  %v1821 = vunpack.c.h.b16 %v390
  %v1822 = vunpack.c.l.b16 %v391
  %v1823 = vunpack.c.h.b16 %v391
  %v1824 = vunpack.c.l.b16 %v392
  %v1825 = vunpack.c.h.b16 %v392
  %v1826 = vunpack.c.l.b16 %v393
  %v1827 = vunpack.c.h.b16 %v393
  %v1828 = vunpack.c.l.b16 %v394
  %v1829 = vunpack.c.h.b16 %v394
  %v1830 = vunpack.c.l.b16 %v395
  %v1831 = vunpack.c.h.b16 %v395
  %v1832 = vunpack.c.l.b16 %v396
  %v1833 = vunpack.c.h.b16 %v396
  %v1834 = vunpack.c.l.b16 %v397
  %v1835 = vunpack.c.h.b16 %v397
  %v1836 = vunpack.c.l.b16 %v398
  %v1837 = vunpack.c.h.b16 %v398
  %v1838 = vunpack.c.l.b16 %v399
  %v1839 = vunpack.c.h.b16 %v399
  %v1840 = vunpack.c.l.b16 %v400
  %v1841 = vunpack.c.h.b16 %v400
  %v1842 = vunpack.c.l.b16 %v401
  %v1843 = vunpack.c.h.b16 %v401
  %v1844 = vunpack.c.l.b16 %v402
  %v1845 = vunpack.c.h.b16 %v402
  %v1846 = vunpack.c.l.b16 %v403
  %v1847 = vunpack.c.h.b16 %v403
  %v1848 = vunpack.c.l.b16 %v404
  %v1849 = vunpack.c.h.b16 %v404
  %v1850 = vunpack.c.l.b16 %v405
  %v1851 = vunpack.c.h.b16 %v405
  %v1852 = vunpack.c.l.b16 %v406
  %v1853 = vunpack.c.h.b16 %v406
  %v1854 = vunpack.c.l.b16 %v407
  %v1855 = vunpack.c.h.b16 %v407
  %v1856 = vunpack.c.l.b16 %v408
  %v1857 = vunpack.c.h.b16 %v408
  %v1858 = vunpack.c.l.b16 %v409
  %v1859 = vunpack.c.h.b16 %v409
  %v1860 = vunpack.c.l.b16 %v410
  %v1861 = vunpack.c.h.b16 %v410
  %v1862 = vunpack.c.l.b16 %v411
  %v1863 = vunpack.c.h.b16 %v411
  %v1864 = vunpack.c.l.b16 %v412
  %v1865 = vunpack.c.h.b16 %v412
  %v1866 = vunpack.c.l.b16 %v413
  %v1867 = vunpack.c.h.b16 %v413
  %v1868 = vunpack.c.l.b16 %v414
  %v1869 = vunpack.c.h.b16 %v414
  %v1870 = vunpack.c.l.b16 %v415
  %v1871 = vunpack.c.h.b16 %v415
  %v1872 = vunpack.c.l.b16 %v416
  %v1873 = vunpack.c.h.b16 %v416
  %v1874 = vunpack.c.l.b16 %v417
  %v1875 = vunpack.c.h.b16 %v417
  %v1876 = vunpack.c.l.b16 %v418
  %v1877 = vunpack.c.h.b16 %v418
  %v1878 = vunpack.c.l.b16 %v419
  %v1879 = vunpack.c.h.b16 %v419
  %v1880 = vunpack.c.l.b16 %v420
  %v1881 = vunpack.c.h.b16 %v420
  %v1882 = vunpack.c.l.b16 %v421
  %v1883 = vunpack.c.h.b16 %v421
  %v1884 = vunpack.c.l.b16 %v422
  %v1885 = vunpack.c.h.b16 %v422
  %v1886 = vunpack.c.l.b16 %v423
  %v1887 = vunpack.c.h.b16 %v423
  %v1888 = vunpack.c.l.b16 %v424
  %v1889 = vunpack.c.h.b16 %v424
  %v1890 = vunpack.c.l.b16 %v425
  %v1891 = vunpack.c.h.b16 %v425
  %v1892 = vunpack.c.l.b16 %v426
  %v1893 = vunpack.c.h.b16 %v426
  %v1894 = vunpack.c.l.b16 %v427
  %v1895 = vunpack.c.h.b16 %v427
  %v1896 = vunpack.c.l.b16 %v428
  %v1897 = vunpack.c.h.b16 %v428
  %v1898 = vunpack.c.l.b16 %v429
  %v1899 = vunpack.c.h.b16 %v429
  %v1900 = vunpack.c.l.b16 %v430
  %v1901 = vunpack.c.h.b16 %v430
  %v1902 = vunpack.c.l.b16 %v431
  %v1903 = vunpack.c.h.b16 %v431
  %v1904 = vunpack.c.l.b16 %v432
  %v1905 = vunpack.c.h.b16 %v432
  %v1906 = vunpack.c.l.b16 %v433
  %v1907 = vunpack.c.h.b16 %v433
  %v1908 = vunpack.c.l.b16 %v434
  %v1909 = vunpack.c.h.b16 %v434
  %v1910 = vunpack.c.l.b16 %v435
  %v1911 = vunpack.c.h.b16 %v435
  %v1912 = vunpack.c.l.b16 %v436
  %v1913 = vunpack.c.h.b16 %v436
  %v1914 = vunpack.c.l.b16 %v437
  %v1915 = vunpack.c.h.b16 %v437
  %v1916 = vunpack.c.l.b16 %v438
  %v1917 = vunpack.c.h.b16 %v438
  %v1918 = vunpack.c.l.b16 %v439
  %v1919 = vunpack.c.h.b16 %v439
  %v1920 = vunpack.c.l.b16 %v440
  %v1921 = vunpack.c.h.b16 %v440
  %v1922 = vunpack.c.l.b16 %v441
  %v1923 = vunpack.c.h.b16 %v441
  %v1924 = vunpack.c.l.b16 %v442
  %v1925 = vunpack.c.h.b16 %v442
  %v1926 = vunpack.c.l.b16 %v443
  %v1927 = vunpack.c.h.b16 %v443
  %v1928 = vunpack.c.l.b16 %v444
  %v1929 = vunpack.c.h.b16 %v444
  %v1930 = vunpack.c.l.b16 %v445
  %v1931 = vunpack.c.h.b16 %v445
  %v1932 = vunpack.c.l.b16 %v446
  %v1933 = vunpack.c.h.b16 %v446
  %v1934 = vunpack.c.l.b16 %v447
  %v1935 = vunpack.c.h.b16 %v447
  %v1936 = vunpack.c.l.b16 %v448
  %v1937 = vunpack.c.h.b16 %v448
  %v1938 = vunpack.c.l.b16 %v449
  %v1939 = vunpack.c.h.b16 %v449
  %v1940 = vunpack.c.l.b16 %v450
  %v1941 = vunpack.c.h.b16 %v450
  %v1942 = vunpack.c.l.b16 %v451
  %v1943 = vunpack.c.h.b16 %v451
  %v1944 = vunpack.c.l.b16 %v452
  %v1945 = vunpack.c.h.b16 %v452
  %v1946 = vunpack.c.l.b16 %v453
  %v1947 = vunpack.c.h.b16 %v453
  %v1948 = vunpack.c.l.b16 %v454
  %v1949 = vunpack.c.h.b16 %v454
  %v1950 = vunpack.c.l.b16 %v455
  %v1951 = vunpack.c.h.b16 %v455
  %v1952 = vunpack.c.l.b16 %v456
  %v1953 = vunpack.c.h.b16 %v456
  %v1954 = vunpack.c.l.b16 %v457
  %v1955 = vunpack.c.h.b16 %v457
  %v1956 = vunpack.c.l.b16 %v458
  %v1957 = vunpack.c.h.b16 %v458
  %v1958 = vunpack.c.l.b16 %v459
  %v1959 = vunpack.c.h.b16 %v459
  %v1960 = vunpack.c.l.b16 %v460
  %v1961 = vunpack.c.h.b16 %v460
  %v1962 = vunpack.c.l.b16 %v461
  %v1963 = vunpack.c.h.b16 %v461
  %v1964 = vunpack.c.l.b16 %v462
  %v1965 = vunpack.c.h.b16 %v462
  %v1966 = vunpack.c.l.b16 %v463
  %v1967 = vunpack.c.h.b16 %v463
  %v1968 = vunpack.c.l.b16 %v464
  %v1969 = vunpack.c.h.b16 %v464
  %v1970 = vunpack.c.l.b16 %v465
  %v1971 = vunpack.c.h.b16 %v465
  %v1972 = vunpack.c.l.b16 %v466
  %v1973 = vunpack.c.h.b16 %v466
  %v1974 = vunpack.c.l.b16 %v467
  %v1975 = vunpack.c.h.b16 %v467
  %v1976 = vunpack.c.l.b16 %v468
  %v1977 = vunpack.c.h.b16 %v468
  %v1978 = vunpack.c.l.b16 %v469
  %v1979 = vunpack.c.h.b16 %v469
  %v1980 = vunpack.c.l.b16 %v470
  %v1981 = vunpack.c.h.b16 %v470
  %v1982 = vunpack.c.l.b16 %v471
  %v1983 = vunpack.c.h.b16 %v471
  %v1984 = vunpack.c.l.b16 %v472
  %v1985 = vunpack.c.h.b16 %v472
  %v1986 = vunpack.c.l.b16 %v473
  %v1987 = vunpack.c.h.b16 %v473
  %v1988 = vunpack.c.l.b16 %v474
  %v1989 = vunpack.c.h.b16 %v474
  %v1990 = vunpack.c.l.b16 %v475
  %v1991 = vunpack.c.h.b16 %v475
  %v1992 = vunpack.c.l.b16 %v476
  %v1993 = vunpack.c.h.b16 %v476
  %v1994 = vunpack.c.l.b16 %v477
  %v1995 = vunpack.c.h.b16 %v477
  %v1996 = vunpack.c.l.b16 %v478
  %v1997 = vunpack.c.h.b16 %v478
  %v1998 = vunpack.c.l.b16 %v479
  %v1999 = vunpack.c.h.b16 %v479
  %v2000 = vunpack.c.l.b16 %v480
  %v2001 = vunpack.c.h.b16 %v480
  %v2002 = vunpack.c.l.b16 %v481
  %v2003 = vunpack.c.h.b16 %v481
  %v2004 = vunpack.c.l.b16 %v482
  %v2005 = vunpack.c.h.b16 %v482
  %v2006 = vunpack.c.l.b16 %v483
  %v2007 = vunpack.c.h.b16 %v483
  %v2008 = vunpack.c.l.b16 %v484
  %v2009 = vunpack.c.h.b16 %v484
  %v2010 = vunpack.c.l.b16 %v485
  %v2011 = vunpack.c.h.b16 %v485
  %v2012 = vunpack.c.l.b16 %v486
  %v2013 = vunpack.c.h.b16 %v486
  %v2014 = vunpack.c.l.b16 %v487
  %v2015 = vunpack.c.h.b16 %v487
  %v2016 = vunpack.c.l.b16 %v488
  %v2017 = vunpack.c.h.b16 %v488
  %v2018 = vunpack.c.l.b16 %v489
  %v2019 = vunpack.c.h.b16 %v489
  %v2020 = vunpack.c.l.b16 %v490
  %v2021 = vunpack.c.h.b16 %v490
  %v2022 = vunpack.c.l.b16 %v491
  %v2023 = vunpack.c.h.b16 %v491
  %v2024 = vunpack.c.l.b16 %v492
  %v2025 = vunpack.c.h.b16 %v492
  %v2026 = vunpack.c.l.b16 %v493
  %v2027 = vunpack.c.h.b16 %v493
  %v2028 = vunpack.c.l.b16 %v494
  %v2029 = vunpack.c.h.b16 %v494
  %v2030 = vunpack.c.l.b16 %v495
  %v2031 = vunpack.c.h.b16 %v495
  %v2032 = vunpack.c.l.b16 %v496
  %v2033 = vunpack.c.h.b16 %v496
  %v2034 = vunpack.c.l.b16 %v497
  %v2035 = vunpack.c.h.b16 %v497
  %v2036 = vunpack.c.l.b16 %v498
  %v2037 = vunpack.c.h.b16 %v498
  %v2038 = vunpack.c.l.b16 %v499
  %v2039 = vunpack.c.h.b16 %v499
  %v2040 = vunpack.c.l.b16 %v500
  %v2041 = vunpack.c.h.b16 %v500
  %v2042 = vunpack.c.l.b16 %v501
  %v2043 = vunpack.c.h.b16 %v501
  %v2044 = vunpack.c.l.b16 %v502
  %v2045 = vunpack.c.h.b16 %v502
  %v2046 = vunpack.c.l.b16 %v503
  %v2047 = vunpack.c.h.b16 %v503
  %v2048 = vunpack.c.l.b16 %v504
  %v2049 = vunpack.c.h.b16 %v504
  %v2050 = vunpack.c.l.b16 %v505
  %v2051 = vunpack.c.h.b16 %v505
  %v2052 = vunpack.c.l.b16 %v506
  %v2053 = vunpack.c.h.b16 %v506
  %v2054 = vunpack.c.l.b16 %v507
  %v2055 = vunpack.c.h.b16 %v507
  %v2056 = vunpack.c.l.b16 %v508
  %v2057 = vunpack.c.h.b16 %v508
  %v2058 = vunpack.c.l.b16 %v509
  %v2059 = vunpack.c.h.b16 %v509
  %v2060 = vunpack.c.l.b16 %v510
  %v2061 = vunpack.c.h.b16 %v510
  %v2062 = vunpack.c.l.b16 %v511
  %v2063 = vunpack.c.h.b16 %v511
  %v2064 = vunpack.c.l.b16 %v512
  %v2065 = vunpack.c.h.b16 %v512
  %v2066 = vunpack.c.l.b16 %v513
  %v2067 = vunpack.c.h.b16 %v513
  %v2068 = vunpack.c.l.b16 %v514
  %v2069 = vunpack.c.h.b16 %v514
  %v2070 = vunpack.c.l.b16 %v515
  %v2071 = vunpack.c.h.b16 %v515
  %v2072 = vunpack.c.l.b16 %v516
  %v2073 = vunpack.c.h.b16 %v516
  %v2074 = vunpack.c.l.b16 %v517
  %v2075 = vunpack.c.h.b16 %v517
  %v2076 = vunpack.c.l.b16 %v518
  %v2077 = vunpack.c.h.b16 %v518
  %v2078 = vunpack.c.l.b16 %v519
  %v2079 = vunpack.c.h.b16 %v519
  %v2080 = vunpack.c.l.b16 %v520
  %v2081 = vunpack.c.h.b16 %v520
  %v2082 = vunpack.c.l.b16 %v521
  %v2083 = vunpack.c.h.b16 %v521
  %v2084 = vunpack.c.l.b16 %v522
  %v2085 = vunpack.c.h.b16 %v522
  %v2086 = vunpack.c.l.b16 %v523
  %v2087 = vunpack.c.h.b16 %v523
  %v2088 = vunpack.c.l.b16 %v524
  %v2089 = vunpack.c.h.b16 %v524
  %v2090 = vunpack.c.l.b16 %v525
  %v2091 = vunpack.c.h.b16 %v525
  %v2092 = vunpack.c.l.b16 %v526
  %v2093 = vunpack.c.h.b16 %v526
  %v2094 = vunpack.c.l.b16 %v527
  %v2095 = vunpack.c.h.b16 %v527
  %v2096 = vunpack.c.l.b16 %v528
  %v2097 = vunpack.c.h.b16 %v528
  %v2098 = vunpack.c.l.b16 %v529
  %v2099 = vunpack.c.h.b16 %v529
  %v2100 = vunpack.c.l.b16 %v530
  %v2101 = vunpack.c.h.b16 %v530
  %v2102 = vunpack.c.l.b16 %v531
  %v2103 = vunpack.c.h.b16 %v531
  %v2104 = vunpack.c.l.b16 %v532
  %v2105 = vunpack.c.h.b16 %v532
  %v2106 = vunpack.c.l.b16 %v533
  %v2107 = vunpack.c.h.b16 %v533
  %v2108 = vunpack.c.l.b16 %v534
  %v2109 = vunpack.c.h.b16 %v534
  %v2110 = vpack.c.b16 %v1094, %v1086
  %v2111 = vpack.c.b16 %v1095, %v1087
  %v2112 = vpack.c.b16 %v1096, %v1088
  %v2113 = vpack.c.b16 %v1097, %v1089
  %v2114 = vpack.c.b16 %v1098, %v1090
  %v2115 = vpack.c.b16 %v1099, %v1091
  %v2116 = vpack.c.b16 %v1100, %v1092
  %v2117 = vpack.c.b16 %v1101, %v1093
  %v2118 = vpack.c.b16 %v1110, %v1102
  %v2119 = vpack.c.b16 %v1111, %v1103
  %v2120 = vpack.c.b16 %v1112, %v1104
  %v2121 = vpack.c.b16 %v1113, %v1105
  %v2122 = vpack.c.b16 %v1114, %v1106
  %v2123 = vpack.c.b16 %v1115, %v1107
  %v2124 = vpack.c.b16 %v1116, %v1108
  %v2125 = vpack.c.b16 %v1117, %v1109
  %v2126 = vpack.c.b16 %v1126, %v1118
  %v2127 = vpack.c.b16 %v1127, %v1119
  %v2128 = vpack.c.b16 %v1128, %v1120
  %v2129 = vpack.c.b16 %v1129, %v1121
  %v2130 = vpack.c.b16 %v1130, %v1122
  %v2131 = vpack.c.b16 %v1131, %v1123
  %v2132 = vpack.c.b16 %v1132, %v1124
  %v2133 = vpack.c.b16 %v1133, %v1125
  %v2134 = vpack.c.b16 %v1142, %v1134
  %v2135 = vpack.c.b16 %v1143, %v1135
  %v2136 = vpack.c.b16 %v1144, %v1136
  %v2137 = vpack.c.b16 %v1145, %v1137
  %v2138 = vpack.c.b16 %v1146, %v1138
  %v2139 = vpack.c.b16 %v1147, %v1139
  %v2140 = vpack.c.b16 %v1148, %v1140
  %v2141 = vpack.c.b16 %v1149, %v1141
  %v2142 = vpack.c.b16 %v1158, %v1150
  %v2143 = vpack.c.b16 %v1159, %v1151
  %v2144 = vpack.c.b16 %v1160, %v1152
  %v2145 = vpack.c.b16 %v1161, %v1153
  %v2146 = vpack.c.b16 %v1162, %v1154
  %v2147 = vpack.c.b16 %v1163, %v1155
  %v2148 = vpack.c.b16 %v1164, %v1156
  %v2149 = vpack.c.b16 %v1165, %v1157
  %v2150 = vpack.c.b16 %v1174, %v1166
  %v2151 = vpack.c.b16 %v1175, %v1167
  %v2152 = vpack.c.b16 %v1176, %v1168
  %v2153 = vpack.c.b16 %v1177, %v1169
  %v2154 = vpack.c.b16 %v1178, %v1170
  %v2155 = vpack.c.b16 %v1179, %v1171
  %v2156 = vpack.c.b16 %v1180, %v1172
  %v2157 = vpack.c.b16 %v1181, %v1173
  %v2158 = vpack.c.b16 %v1190, %v1182
  %v2159 = vpack.c.b16 %v1191, %v1183
  %v2160 = vpack.c.b16 %v1192, %v1184
  %v2161 = vpack.c.b16 %v1193, %v1185
  %v2162 = vpack.c.b16 %v1194, %v1186
  %v2163 = vpack.c.b16 %v1195, %v1187
  %v2164 = vpack.c.b16 %v1196, %v1188
  %v2165 = vpack.c.b16 %v1197, %v1189
  %v2166 = vpack.c.b16 %v1206, %v1198
  %v2167 = vpack.c.b16 %v1207, %v1199
  %v2168 = vpack.c.b16 %v1208, %v1200
  %v2169 = vpack.c.b16 %v1209, %v1201
  %v2170 = vpack.c.b16 %v1210, %v1202
  %v2171 = vpack.c.b16 %v1211, %v1203
  %v2172 = vpack.c.b16 %v1212, %v1204
  %v2173 = vpack.c.b16 %v1213, %v1205
  %v2174 = vpack.c.b16 %v1222, %v1214
  %v2175 = vpack.c.b16 %v1223, %v1215
  %v2176 = vpack.c.b16 %v1224, %v1216
  %v2177 = vpack.c.b16 %v1225, %v1217
  %v2178 = vpack.c.b16 %v1226, %v1218
  %v2179 = vpack.c.b16 %v1227, %v1219
  %v2180 = vpack.c.b16 %v1228, %v1220
  %v2181 = vpack.c.b16 %v1229, %v1221
  %v2182 = vpack.c.b16 %v1238, %v1230
  %v2183 = vpack.c.b16 %v1239, %v1231
  %v2184 = vpack.c.b16 %v1240, %v1232
  %v2185 = vpack.c.b16 %v1241, %v1233
  %v2186 = vpack.c.b16 %v1242, %v1234
  %v2187 = vpack.c.b16 %v1243, %v1235
  %v2188 = vpack.c.b16 %v1244, %v1236
  %v2189 = vpack.c.b16 %v1245, %v1237
  %v2190 = vpack.c.b16 %v1254, %v1246
  %v2191 = vpack.c.b16 %v1255, %v1247
  %v2192 = vpack.c.b16 %v1256, %v1248
  %v2193 = vpack.c.b16 %v1257, %v1249
  %v2194 = vpack.c.b16 %v1258, %v1250
  %v2195 = vpack.c.b16 %v1259, %v1251
  %v2196 = vpack.c.b16 %v1260, %v1252
  %v2197 = vpack.c.b16 %v1261, %v1253
  %v2198 = vpack.c.b16 %v1270, %v1262
  %v2199 = vpack.c.b16 %v1271, %v1263
  %v2200 = vpack.c.b16 %v1272, %v1264
  %v2201 = vpack.c.b16 %v1273, %v1265
  %v2202 = vpack.c.b16 %v1274, %v1266
  %v2203 = vpack.c.b16 %v1275, %v1267
  %v2204 = vpack.c.b16 %v1276, %v1268
  %v2205 = vpack.c.b16 %v1277, %v1269
  %v2206 = vpack.c.b16 %v1286, %v1278
  %v2207 = vpack.c.b16 %v1287, %v1279
  %v2208 = vpack.c.b16 %v1288, %v1280
  %v2209 = vpack.c.b16 %v1289, %v1281
  %v2210 = vpack.c.b16 %v1290, %v1282
  %v2211 = vpack.c.b16 %v1291, %v1283
  %v2212 = vpack.c.b16 %v1292, %v1284
  %v2213 = vpack.c.b16 %v1293, %v1285
  %v2214 = vpack.c.b16 %v1302, %v1294
  %v2215 = vpack.c.b16 %v1303, %v1295
  %v2216 = vpack.c.b16 %v1304, %v1296
  %v2217 = vpack.c.b16 %v1305, %v1297
  %v2218 = vpack.c.b16 %v1306, %v1298
  %v2219 = vpack.c.b16 %v1307, %v1299
  %v2220 = vpack.c.b16 %v1308, %v1300
  %v2221 = vpack.c.b16 %v1309, %v1301
  %v2222 = vpack.c.b16 %v1318, %v1310
  %v2223 = vpack.c.b16 %v1319, %v1311
  %v2224 = vpack.c.b16 %v1320, %v1312
  %v2225 = vpack.c.b16 %v1321, %v1313
  %v2226 = vpack.c.b16 %v1322, %v1314
  %v2227 = vpack.c.b16 %v1323, %v1315
  %v2228 = vpack.c.b16 %v1324, %v1316
  %v2229 = vpack.c.b16 %v1325, %v1317
  %v2230 = vpack.c.b16 %v1334, %v1326
  %v2231 = vpack.c.b16 %v1335, %v1327
  %v2232 = vpack.c.b16 %v1336, %v1328
  %v2233 = vpack.c.b16 %v1337, %v1329
  %v2234 = vpack.c.b16 %v1338, %v1330
  %v2235 = vpack.c.b16 %v1339, %v1331
  %v2236 = vpack.c.b16 %v1340, %v1332
  %v2237 = vpack.c.b16 %v1341, %v1333
  %v2238 = vpack.c.b16 %v1350, %v1342
  %v2239 = vpack.c.b16 %v1351, %v1343
  %v2240 = vpack.c.b16 %v1352, %v1344
  %v2241 = vpack.c.b16 %v1353, %v1345
  %v2242 = vpack.c.b16 %v1354, %v1346
  %v2243 = vpack.c.b16 %v1355, %v1347
  %v2244 = vpack.c.b16 %v1356, %v1348
  %v2245 = vpack.c.b16 %v1357, %v1349
  %v2246 = vpack.c.b16 %v1366, %v1358
  %v2247 = vpack.c.b16 %v1367, %v1359
  %v2248 = vpack.c.b16 %v1368, %v1360
  %v2249 = vpack.c.b16 %v1369, %v1361
  %v2250 = vpack.c.b16 %v1370, %v1362
  %v2251 = vpack.c.b16 %v1371, %v1363
  %v2252 = vpack.c.b16 %v1372, %v1364
  %v2253 = vpack.c.b16 %v1373, %v1365
  %v2254 = vpack.c.b16 %v1382, %v1374
  %v2255 = vpack.c.b16 %v1383, %v1375
  %v2256 = vpack.c.b16 %v1384, %v1376
  %v2257 = vpack.c.b16 %v1385, %v1377
  %v2258 = vpack.c.b16 %v1386, %v1378
  %v2259 = vpack.c.b16 %v1387, %v1379
  %v2260 = vpack.c.b16 %v1388, %v1380
  %v2261 = vpack.c.b16 %v1389, %v1381
  %v2262 = vpack.c.b16 %v1398, %v1390
  %v2263 = vpack.c.b16 %v1399, %v1391
  %v2264 = vpack.c.b16 %v1400, %v1392
  %v2265 = vpack.c.b16 %v1401, %v1393
  %v2266 = vpack.c.b16 %v1402, %v1394
  %v2267 = vpack.c.b16 %v1403, %v1395
  %v2268 = vpack.c.b16 %v1404, %v1396
  %v2269 = vpack.c.b16 %v1405, %v1397
  %v2270 = vpack.c.b16 %v1414, %v1406
  %v2271 = vpack.c.b16 %v1415, %v1407
  %v2272 = vpack.c.b16 %v1416, %v1408
  %v2273 = vpack.c.b16 %v1417, %v1409
  %v2274 = vpack.c.b16 %v1418, %v1410
  %v2275 = vpack.c.b16 %v1419, %v1411
  %v2276 = vpack.c.b16 %v1420, %v1412
  %v2277 = vpack.c.b16 %v1421, %v1413
  %v2278 = vpack.c.b16 %v1430, %v1422
  %v2279 = vpack.c.b16 %v1431, %v1423
  %v2280 = vpack.c.b16 %v1432, %v1424
  %v2281 = vpack.c.b16 %v1433, %v1425
  %v2282 = vpack.c.b16 %v1434, %v1426
  %v2283 = vpack.c.b16 %v1435, %v1427
  %v2284 = vpack.c.b16 %v1436, %v1428
  %v2285 = vpack.c.b16 %v1437, %v1429
  %v2286 = vpack.c.b16 %v1446, %v1438
  %v2287 = vpack.c.b16 %v1447, %v1439
  %v2288 = vpack.c.b16 %v1448, %v1440
  %v2289 = vpack.c.b16 %v1449, %v1441
  %v2290 = vpack.c.b16 %v1450, %v1442
  %v2291 = vpack.c.b16 %v1451, %v1443
  %v2292 = vpack.c.b16 %v1452, %v1444
  %v2293 = vpack.c.b16 %v1453, %v1445
  %v2294 = vpack.c.b16 %v1462, %v1454
  %v2295 = vpack.c.b16 %v1463, %v1455
  %v2296 = vpack.c.b16 %v1464, %v1456
  %v2297 = vpack.c.b16 %v1465, %v1457
  %v2298 = vpack.c.b16 %v1466, %v1458
  %v2299 = vpack.c.b16 %v1467, %v1459
  %v2300 = vpack.c.b16 %v1468, %v1460
  %v2301 = vpack.c.b16 %v1469, %v1461
  %v2302 = vpack.c.b16 %v1478, %v1470
  %v2303 = vpack.c.b16 %v1479, %v1471
  %v2304 = vpack.c.b16 %v1480, %v1472
  %v2305 = vpack.c.b16 %v1481, %v1473
  %v2306 = vpack.c.b16 %v1482, %v1474
  %v2307 = vpack.c.b16 %v1483, %v1475
  %v2308 = vpack.c.b16 %v1484, %v1476
  %v2309 = vpack.c.b16 %v1485, %v1477
  %v2310 = vpack.c.b16 %v1494, %v1486
  %v2311 = vpack.c.b16 %v1495, %v1487
  %v2312 = vpack.c.b16 %v1496, %v1488
  %v2313 = vpack.c.b16 %v1497, %v1489
  %v2314 = vpack.c.b16 %v1498, %v1490
  %v2315 = vpack.c.b16 %v1499, %v1491
  %v2316 = vpack.c.b16 %v1500, %v1492
  %v2317 = vpack.c.b16 %v1501, %v1493
  %v2318 = vpack.c.b16 %v1510, %v1502
  %v2319 = vpack.c.b16 %v1511, %v1503
  %v2320 = vpack.c.b16 %v1512, %v1504
  %v2321 = vpack.c.b16 %v1513, %v1505
  %v2322 = vpack.c.b16 %v1514, %v1506
  %v2323 = vpack.c.b16 %v1515, %v1507
  %v2324 = vpack.c.b16 %v1516, %v1508
  %v2325 = vpack.c.b16 %v1517, %v1509
  %v2326 = vpack.c.b16 %v1526, %v1518
  %v2327 = vpack.c.b16 %v1527, %v1519
  %v2328 = vpack.c.b16 %v1528, %v1520
  %v2329 = vpack.c.b16 %v1529, %v1521
  %v2330 = vpack.c.b16 %v1530, %v1522
  %v2331 = vpack.c.b16 %v1531, %v1523
  %v2332 = vpack.c.b16 %v1532, %v1524
  %v2333 = vpack.c.b16 %v1533, %v1525
  %v2334 = vpack.c.b16 %v1542, %v1534
  %v2335 = vpack.c.b16 %v1543, %v1535
  %v2336 = vpack.c.b16 %v1544, %v1536
  %v2337 = vpack.c.b16 %v1545, %v1537
  %v2338 = vpack.c.b16 %v1546, %v1538
  %v2339 = vpack.c.b16 %v1547, %v1539
  %v2340 = vpack.c.b16 %v1548, %v1540
  %v2341 = vpack.c.b16 %v1549, %v1541
  %v2342 = vpack.c.b16 %v1558, %v1550
  %v2343 = vpack.c.b16 %v1559, %v1551
  %v2344 = vpack.c.b16 %v1560, %v1552
  %v2345 = vpack.c.b16 %v1561, %v1553
  %v2346 = vpack.c.b16 %v1562, %v1554
  %v2347 = vpack.c.b16 %v1563, %v1555
  %v2348 = vpack.c.b16 %v1564, %v1556
  %v2349 = vpack.c.b16 %v1565, %v1557
  %v2350 = vpack.c.b16 %v1574, %v1566
  %v2351 = vpack.c.b16 %v1575, %v1567
  %v2352 = vpack.c.b16 %v1576, %v1568
  %v2353 = vpack.c.b16 %v1577, %v1569
  %v2354 = vpack.c.b16 %v1578, %v1570
  %v2355 = vpack.c.b16 %v1579, %v1571
  %v2356 = vpack.c.b16 %v1580, %v1572
  %v2357 = vpack.c.b16 %v1581, %v1573
  %v2358 = vpack.c.b16 %v1590, %v1582
  %v2359 = vpack.c.b16 %v1591, %v1583
  %v2360 = vpack.c.b16 %v1592, %v1584
  %v2361 = vpack.c.b16 %v1593, %v1585
  %v2362 = vpack.c.b16 %v1594, %v1586
  %v2363 = vpack.c.b16 %v1595, %v1587
  %v2364 = vpack.c.b16 %v1596, %v1588
  %v2365 = vpack.c.b16 %v1597, %v1589
  %v2366 = vpack.c.b16 %v1606, %v1598
  %v2367 = vpack.c.b16 %v1607, %v1599
  %v2368 = vpack.c.b16 %v1608, %v1600
  %v2369 = vpack.c.b16 %v1609, %v1601
  %v2370 = vpack.c.b16 %v1610, %v1602
  %v2371 = vpack.c.b16 %v1611, %v1603
  %v2372 = vpack.c.b16 %v1612, %v1604
  %v2373 = vpack.c.b16 %v1613, %v1605
  %v2374 = vpack.c.b16 %v1622, %v1614
  %v2375 = vpack.c.b16 %v1623, %v1615
  %v2376 = vpack.c.b16 %v1624, %v1616
  %v2377 = vpack.c.b16 %v1625, %v1617
  %v2378 = vpack.c.b16 %v1626, %v1618
  %v2379 = vpack.c.b16 %v1627, %v1619
  %v2380 = vpack.c.b16 %v1628, %v1620
  %v2381 = vpack.c.b16 %v1629, %v1621
  %v2382 = vpack.c.b16 %v1638, %v1630
  %v2383 = vpack.c.b16 %v1639, %v1631
  %v2384 = vpack.c.b16 %v1640, %v1632
  %v2385 = vpack.c.b16 %v1641, %v1633
  %v2386 = vpack.c.b16 %v1642, %v1634
  %v2387 = vpack.c.b16 %v1643, %v1635
  %v2388 = vpack.c.b16 %v1644, %v1636
  %v2389 = vpack.c.b16 %v1645, %v1637
  %v2390 = vpack.c.b16 %v1654, %v1646
  %v2391 = vpack.c.b16 %v1655, %v1647
  %v2392 = vpack.c.b16 %v1656, %v1648
  %v2393 = vpack.c.b16 %v1657, %v1649
  %v2394 = vpack.c.b16 %v1658, %v1650
  %v2395 = vpack.c.b16 %v1659, %v1651
  %v2396 = vpack.c.b16 %v1660, %v1652
  %v2397 = vpack.c.b16 %v1661, %v1653
  %v2398 = vpack.c.b16 %v1670, %v1662
  %v2399 = vpack.c.b16 %v1671, %v1663
  %v2400 = vpack.c.b16 %v1672, %v1664
  %v2401 = vpack.c.b16 %v1673, %v1665
  %v2402 = vpack.c.b16 %v1674, %v1666
  %v2403 = vpack.c.b16 %v1675, %v1667
  %v2404 = vpack.c.b16 %v1676, %v1668
  %v2405 = vpack.c.b16 %v1677, %v1669
  %v2406 = vpack.c.b16 %v1686, %v1678
  %v2407 = vpack.c.b16 %v1687, %v1679
  %v2408 = vpack.c.b16 %v1688, %v1680
  %v2409 = vpack.c.b16 %v1689, %v1681
  %v2410 = vpack.c.b16 %v1690, %v1682
  %v2411 = vpack.c.b16 %v1691, %v1683
  %v2412 = vpack.c.b16 %v1692, %v1684
  %v2413 = vpack.c.b16 %v1693, %v1685
  %v2414 = vpack.c.b16 %v1702, %v1694
  %v2415 = vpack.c.b16 %v1703, %v1695
  %v2416 = vpack.c.b16 %v1704, %v1696
  %v2417 = vpack.c.b16 %v1705, %v1697
  %v2418 = vpack.c.b16 %v1706, %v1698
  %v2419 = vpack.c.b16 %v1707, %v1699
  %v2420 = vpack.c.b16 %v1708, %v1700
  %v2421 = vpack.c.b16 %v1709, %v1701
  %v2422 = vpack.c.b16 %v1718, %v1710
  %v2423 = vpack.c.b16 %v1719, %v1711
  %v2424 = vpack.c.b16 %v1720, %v1712
  %v2425 = vpack.c.b16 %v1721, %v1713
  %v2426 = vpack.c.b16 %v1722, %v1714
  %v2427 = vpack.c.b16 %v1723, %v1715
  %v2428 = vpack.c.b16 %v1724, %v1716
  %v2429 = vpack.c.b16 %v1725, %v1717
  %v2430 = vpack.c.b16 %v1734, %v1726
  %v2431 = vpack.c.b16 %v1735, %v1727
  %v2432 = vpack.c.b16 %v1736, %v1728
  %v2433 = vpack.c.b16 %v1737, %v1729
  %v2434 = vpack.c.b16 %v1738, %v1730
  %v2435 = vpack.c.b16 %v1739, %v1731
  %v2436 = vpack.c.b16 %v1740, %v1732
  %v2437 = vpack.c.b16 %v1741, %v1733
  %v2438 = vpack.c.b16 %v1750, %v1742
  %v2439 = vpack.c.b16 %v1751, %v1743
  %v2440 = vpack.c.b16 %v1752, %v1744
  %v2441 = vpack.c.b16 %v1753, %v1745
  %v2442 = vpack.c.b16 %v1754, %v1746
  %v2443 = vpack.c.b16 %v1755, %v1747
  %v2444 = vpack.c.b16 %v1756, %v1748
  %v2445 = vpack.c.b16 %v1757, %v1749
  %v2446 = vpack.c.b16 %v1766, %v1758
  %v2447 = vpack.c.b16 %v1767, %v1759
  %v2448 = vpack.c.b16 %v1768, %v1760
  %v2449 = vpack.c.b16 %v1769, %v1761
  %v2450 = vpack.c.b16 %v1770, %v1762
  %v2451 = vpack.c.b16 %v1771, %v1763
  %v2452 = vpack.c.b16 %v1772, %v1764
  %v2453 = vpack.c.b16 %v1773, %v1765
  %v2454 = vpack.c.b16 %v1782, %v1774
  %v2455 = vpack.c.b16 %v1783, %v1775
  %v2456 = vpack.c.b16 %v1784, %v1776
  %v2457 = vpack.c.b16 %v1785, %v1777
  %v2458 = vpack.c.b16 %v1786, %v1778
  %v2459 = vpack.c.b16 %v1787, %v1779
  %v2460 = vpack.c.b16 %v1788, %v1780
  %v2461 = vpack.c.b16 %v1789, %v1781
  %v2462 = vpack.c.b16 %v1798, %v1790
  %v2463 = vpack.c.b16 %v1799, %v1791
  %v2464 = vpack.c.b16 %v1800, %v1792
  %v2465 = vpack.c.b16 %v1801, %v1793
  %v2466 = vpack.c.b16 %v1802, %v1794
  %v2467 = vpack.c.b16 %v1803, %v1795
  %v2468 = vpack.c.b16 %v1804, %v1796
  %v2469 = vpack.c.b16 %v1805, %v1797
  %v2470 = vpack.c.b16 %v1814, %v1806
  %v2471 = vpack.c.b16 %v1815, %v1807
  %v2472 = vpack.c.b16 %v1816, %v1808
  %v2473 = vpack.c.b16 %v1817, %v1809
  %v2474 = vpack.c.b16 %v1818, %v1810
  %v2475 = vpack.c.b16 %v1819, %v1811
  %v2476 = vpack.c.b16 %v1820, %v1812
  %v2477 = vpack.c.b16 %v1821, %v1813
  %v2478 = vpack.c.b16 %v1830, %v1822
  %v2479 = vpack.c.b16 %v1831, %v1823
  %v2480 = vpack.c.b16 %v1832, %v1824
  %v2481 = vpack.c.b16 %v1833, %v1825
  %v2482 = vpack.c.b16 %v1834, %v1826
  %v2483 = vpack.c.b16 %v1835, %v1827
  %v2484 = vpack.c.b16 %v1836, %v1828
  %v2485 = vpack.c.b16 %v1837, %v1829
  %v2486 = vpack.c.b16 %v1846, %v1838
  %v2487 = vpack.c.b16 %v1847, %v1839
  %v2488 = vpack.c.b16 %v1848, %v1840
  %v2489 = vpack.c.b16 %v1849, %v1841
  %v2490 = vpack.c.b16 %v1850, %v1842
  %v2491 = vpack.c.b16 %v1851, %v1843
  %v2492 = vpack.c.b16 %v1852, %v1844
  %v2493 = vpack.c.b16 %v1853, %v1845
  %v2494 = vpack.c.b16 %v1862, %v1854
  %v2495 = vpack.c.b16 %v1863, %v1855
  %v2496 = vpack.c.b16 %v1864, %v1856
  %v2497 = vpack.c.b16 %v1865, %v1857
  %v2498 = vpack.c.b16 %v1866, %v1858
  %v2499 = vpack.c.b16 %v1867, %v1859
  %v2500 = vpack.c.b16 %v1868, %v1860
  %v2501 = vpack.c.b16 %v1869, %v1861
  %v2502 = vpack.c.b16 %v1878, %v1870
  %v2503 = vpack.c.b16 %v1879, %v1871
  %v2504 = vpack.c.b16 %v1880, %v1872
  %v2505 = vpack.c.b16 %v1881, %v1873
  %v2506 = vpack.c.b16 %v1882, %v1874
  %v2507 = vpack.c.b16 %v1883, %v1875
  %v2508 = vpack.c.b16 %v1884, %v1876
  %v2509 = vpack.c.b16 %v1885, %v1877
  %v2510 = vpack.c.b16 %v1894, %v1886
  %v2511 = vpack.c.b16 %v1895, %v1887
  %v2512 = vpack.c.b16 %v1896, %v1888
  %v2513 = vpack.c.b16 %v1897, %v1889
  %v2514 = vpack.c.b16 %v1898, %v1890
  %v2515 = vpack.c.b16 %v1899, %v1891
  %v2516 = vpack.c.b16 %v1900, %v1892
  %v2517 = vpack.c.b16 %v1901, %v1893
  %v2518 = vpack.c.b16 %v1910, %v1902
  %v2519 = vpack.c.b16 %v1911, %v1903
  %v2520 = vpack.c.b16 %v1912, %v1904
  %v2521 = vpack.c.b16 %v1913, %v1905
  %v2522 = vpack.c.b16 %v1914, %v1906
  %v2523 = vpack.c.b16 %v1915, %v1907
  %v2524 = vpack.c.b16 %v1916, %v1908
  %v2525 = vpack.c.b16 %v1917, %v1909
  %v2526 = vpack.c.b16 %v1926, %v1918
  %v2527 = vpack.c.b16 %v1927, %v1919
  %v2528 = vpack.c.b16 %v1928, %v1920
  %v2529 = vpack.c.b16 %v1929, %v1921
  %v2530 = vpack.c.b16 %v1930, %v1922
  %v2531 = vpack.c.b16 %v1931, %v1923
  %v2532 = vpack.c.b16 %v1932, %v1924
  %v2533 = vpack.c.b16 %v1933, %v1925
  %v2534 = vpack.c.b16 %v1942, %v1934
  %v2535 = vpack.c.b16 %v1943, %v1935
  %v2536 = vpack.c.b16 %v1944, %v1936
  %v2537 = vpack.c.b16 %v1945, %v1937
  %v2538 = vpack.c.b16 %v1946, %v1938
  %v2539 = vpack.c.b16 %v1947, %v1939
  %v2540 = vpack.c.b16 %v1948, %v1940
  %v2541 = vpack.c.b16 %v1949, %v1941
  %v2542 = vpack.c.b16 %v1958, %v1950
  %v2543 = vpack.c.b16 %v1959, %v1951
  %v2544 = vpack.c.b16 %v1960, %v1952
  %v2545 = vpack.c.b16 %v1961, %v1953
  %v2546 = vpack.c.b16 %v1962, %v1954
  %v2547 = vpack.c.b16 %v1963, %v1955
  %v2548 = vpack.c.b16 %v1964, %v1956
  %v2549 = vpack.c.b16 %v1965, %v1957
  %v2550 = vpack.c.b16 %v1974, %v1966
  %v2551 = vpack.c.b16 %v1975, %v1967
  %v2552 = vpack.c.b16 %v1976, %v1968
  %v2553 = vpack.c.b16 %v1977, %v1969
  %v2554 = vpack.c.b16 %v1978, %v1970
  %v2555 = vpack.c.b16 %v1979, %v1971
  %v2556 = vpack.c.b16 %v1980, %v1972
  %v2557 = vpack.c.b16 %v1981, %v1973
  %v2558 = vpack.c.b16 %v1990, %v1982
  %v2559 = vpack.c.b16 %v1991, %v1983
  %v2560 = vpack.c.b16 %v1992, %v1984
  %v2561 = vpack.c.b16 %v1993, %v1985
  %v2562 = vpack.c.b16 %v1994, %v1986
  %v2563 = vpack.c.b16 %v1995, %v1987
  %v2564 = vpack.c.b16 %v1996, %v1988
  %v2565 = vpack.c.b16 %v1997, %v1989
  %v2566 = vpack.c.b16 %v2006, %v1998
  %v2567 = vpack.c.b16 %v2007, %v1999
  %v2568 = vpack.c.b16 %v2008, %v2000
  %v2569 = vpack.c.b16 %v2009, %v2001
  %v2570 = vpack.c.b16 %v2010, %v2002
  %v2571 = vpack.c.b16 %v2011, %v2003
  %v2572 = vpack.c.b16 %v2012, %v2004
  %v2573 = vpack.c.b16 %v2013, %v2005
  %v2574 = vpack.c.b16 %v2022, %v2014
  %v2575 = vpack.c.b16 %v2023, %v2015
  %v2576 = vpack.c.b16 %v2024, %v2016
  %v2577 = vpack.c.b16 %v2025, %v2017
  %v2578 = vpack.c.b16 %v2026, %v2018
  %v2579 = vpack.c.b16 %v2027, %v2019
  %v2580 = vpack.c.b16 %v2028, %v2020
  %v2581 = vpack.c.b16 %v2029, %v2021
  %v2582 = vpack.c.b16 %v2038, %v2030
  %v2583 = vpack.c.b16 %v2039, %v2031
  %v2584 = vpack.c.b16 %v2040, %v2032
  %v2585 = vpack.c.b16 %v2041, %v2033
  %v2586 = vpack.c.b16 %v2042, %v2034
  %v2587 = vpack.c.b16 %v2043, %v2035
  %v2588 = vpack.c.b16 %v2044, %v2036
  %v2589 = vpack.c.b16 %v2045, %v2037
  %v2590 = vpack.c.b16 %v2054, %v2046
  %v2591 = vpack.c.b16 %v2055, %v2047
  %v2592 = vpack.c.b16 %v2056, %v2048
  %v2593 = vpack.c.b16 %v2057, %v2049
  %v2594 = vpack.c.b16 %v2058, %v2050
  %v2595 = vpack.c.b16 %v2059, %v2051
  %v2596 = vpack.c.b16 %v2060, %v2052
  %v2597 = vpack.c.b16 %v2061, %v2053
  %v2598 = vpack.c.b16 %v2070, %v2062
  %v2599 = vpack.c.b16 %v2071, %v2063
  %v2600 = vpack.c.b16 %v2072, %v2064
  %v2601 = vpack.c.b16 %v2073, %v2065
  %v2602 = vpack.c.b16 %v2074, %v2066
  %v2603 = vpack.c.b16 %v2075, %v2067
  %v2604 = vpack.c.b16 %v2076, %v2068
  %v2605 = vpack.c.b16 %v2077, %v2069
  %v2606 = vpack.c.b16 %v2086, %v2078
  %v2607 = vpack.c.b16 %v2087, %v2079
  %v2608 = vpack.c.b16 %v2088, %v2080
  %v2609 = vpack.c.b16 %v2089, %v2081
  %v2610 = vpack.c.b16 %v2090, %v2082
  %v2611 = vpack.c.b16 %v2091, %v2083
  %v2612 = vpack.c.b16 %v2092, %v2084
  %v2613 = vpack.c.b16 %v2093, %v2085
  %v2614 = vpack.c.b16 %v2102, %v2094
  %v2615 = vpack.c.b16 %v2103, %v2095
  %v2616 = vpack.c.b16 %v2104, %v2096
  %v2617 = vpack.c.b16 %v2105, %v2097
  %v2618 = vpack.c.b16 %v2106, %v2098
  %v2619 = vpack.c.b16 %v2107, %v2099
  %v2620 = vpack.c.b16 %v2108, %v2100
  %v2621 = vpack.c.b16 %v2109, %v2101
  %3134 = vmatpush.bf16.msra.mxu0 %v2166
  %3135 = vmatpush.bf16.msra.mxu0 %v2158
  %3136 = vmatpush.bf16.msra.mxu0 %v2150
  %3137 = vmatpush.bf16.msra.mxu0 %v2142
  %3138 = vmatpush.bf16.msra.mxu0 %v2134
  %3139 = vmatpush.bf16.msra.mxu0 %v2126
  %3140 = vmatpush.bf16.msra.mxu0 %v2118
  %3141 = vmatpush.bf16.msra.mxu0 %v2110
  %3142 = vmatmul.bf16.gmra.mxu0 %v558
  %v3143 = vpop.f32.mrf.mxu0
  %v3144 = vadd.f32 %v537, %v3143
  %v3145 = vpop.f32.mrf.mxu0
  %3146 = vdwg.mxu0
  %3147 = vmatpush.bf16.msra.mxu0 %v2230
  %3148 = vmatpush.bf16.msra.mxu0 %v2222
  %3149 = vmatpush.bf16.msra.mxu0 %v2214
  %3150 = vmatpush.bf16.msra.mxu0 %v2206
  %3151 = vmatpush.bf16.msra.mxu0 %v2198
  %3152 = vmatpush.bf16.msra.mxu0 %v2190
  %3153 = vmatpush.bf16.msra.mxu0 %v2182
  %3154 = vmatpush.bf16.msra.mxu0 %v2174
  %3155 = vmatmul.bf16.gmra.mxu0 %v559
  %v3156 = vpop.f32.mrf.mxu0
  %v3157 = vadd.f32 %v3144, %v3156
  %v3158 = vpop.f32.mrf.mxu0
  %3159 = vdwg.mxu0
  %3160 = vmatpush.bf16.msra.mxu0 %v2294
  %3161 = vmatpush.bf16.msra.mxu0 %v2286
  %3162 = vmatpush.bf16.msra.mxu0 %v2278
  %3163 = vmatpush.bf16.msra.mxu0 %v2270
  %3164 = vmatpush.bf16.msra.mxu0 %v2262
  %3165 = vmatpush.bf16.msra.mxu0 %v2254
  %3166 = vmatpush.bf16.msra.mxu0 %v2246
  %3167 = vmatpush.bf16.msra.mxu0 %v2238
  %3168 = vmatmul.bf16.gmra.mxu0 %v560
  %v3169 = vpop.f32.mrf.mxu0
  %v3170 = vadd.f32 %v3157, %v3169
  %v3171 = vpop.f32.mrf.mxu0
  %3172 = vdwg.mxu0
  %3173 = vmatpush.bf16.msra.mxu0 %v2358
  %3174 = vmatpush.bf16.msra.mxu0 %v2350
  %3175 = vmatpush.bf16.msra.mxu0 %v2342
  %3176 = vmatpush.bf16.msra.mxu0 %v2334
  %3177 = vmatpush.bf16.msra.mxu0 %v2326
  %3178 = vmatpush.bf16.msra.mxu0 %v2318
  %3179 = vmatpush.bf16.msra.mxu0 %v2310
  %3180 = vmatpush.bf16.msra.mxu0 %v2302
  %3181 = vmatmul.bf16.gmra.mxu0 %v561
  %v3182 = vpop.f32.mrf.mxu0
  %v3183 = vadd.f32 %v3170, %v3182
  %v3184 = vpop.f32.mrf.mxu0
  %3185 = vdwg.mxu0
  %3186 = vmatpush.bf16.msra.mxu0 %v2422
  %3187 = vmatpush.bf16.msra.mxu0 %v2414
  %3188 = vmatpush.bf16.msra.mxu0 %v2406
  %3189 = vmatpush.bf16.msra.mxu0 %v2398
  %3190 = vmatpush.bf16.msra.mxu0 %v2390
  %3191 = vmatpush.bf16.msra.mxu0 %v2382
  %3192 = vmatpush.bf16.msra.mxu0 %v2374
  %3193 = vmatpush.bf16.msra.mxu0 %v2366
  %3194 = vmatmul.bf16.gmra.mxu0 %v562
  %v3195 = vpop.f32.mrf.mxu0
  %v3196 = vadd.f32 %v3183, %v3195
  %v3197 = vpop.f32.mrf.mxu0
  %3198 = vdwg.mxu0
  %3199 = vmatpush.bf16.msra.mxu0 %v2486
  %3200 = vmatpush.bf16.msra.mxu0 %v2478
  %3201 = vmatpush.bf16.msra.mxu0 %v2470
  %3202 = vmatpush.bf16.msra.mxu0 %v2462
  %3203 = vmatpush.bf16.msra.mxu0 %v2454
  %3204 = vmatpush.bf16.msra.mxu0 %v2446
  %3205 = vmatpush.bf16.msra.mxu0 %v2438
  %3206 = vmatpush.bf16.msra.mxu0 %v2430
  %3207 = vmatmul.bf16.gmra.mxu0 %v563
  %v3208 = vpop.f32.mrf.mxu0
  %v3209 = vadd.f32 %v3196, %v3208
  %v3210 = vpop.f32.mrf.mxu0
  %3211 = vdwg.mxu0
  %3212 = vmatpush.bf16.msra.mxu0 %v2550
  %3213 = vmatpush.bf16.msra.mxu0 %v2542
  %3214 = vmatpush.bf16.msra.mxu0 %v2534
  %3215 = vmatpush.bf16.msra.mxu0 %v2526
  %3216 = vmatpush.bf16.msra.mxu0 %v2518
  %3217 = vmatpush.bf16.msra.mxu0 %v2510
  %3218 = vmatpush.bf16.msra.mxu0 %v2502
  %3219 = vmatpush.bf16.msra.mxu0 %v2494
  %3220 = vmatmul.bf16.gmra.mxu0 %v564
  %v3221 = vpop.f32.mrf.mxu0
  %v3222 = vadd.f32 %v3209, %v3221
  %v3223 = vpop.f32.mrf.mxu0
  %3224 = vdwg.mxu0
  %3225 = vmatpush.bf16.msra.mxu0 %v2614
  %3226 = vmatpush.bf16.msra.mxu0 %v2606
  %3227 = vmatpush.bf16.msra.mxu0 %v2598
  %3228 = vmatpush.bf16.msra.mxu0 %v2590
  %3229 = vmatpush.bf16.msra.mxu0 %v2582
  %3230 = vmatpush.bf16.msra.mxu0 %v2574
  %3231 = vmatpush.bf16.msra.mxu0 %v2566
  %3232 = vmatpush.bf16.msra.mxu0 %v2558
  %3233 = vmatmul.bf16.gmra.mxu0 %v565
  %v3234 = vpop.f32.mrf.mxu0
  %v3235 = vadd.f32 %v3222, %v3234
  %v3236 = vpop.f32.mrf.mxu0
  %3237 = vdwg.mxu0
  %3238 = vmatpush.bf16.msra.mxu0 %v2167
  %3239 = vmatpush.bf16.msra.mxu0 %v2159
  %3240 = vmatpush.bf16.msra.mxu0 %v2151
  %3241 = vmatpush.bf16.msra.mxu0 %v2143
  %3242 = vmatpush.bf16.msra.mxu0 %v2135
  %3243 = vmatpush.bf16.msra.mxu0 %v2127
  %3244 = vmatpush.bf16.msra.mxu0 %v2119
  %3245 = vmatpush.bf16.msra.mxu0 %v2111
  %3246 = vmatmul.bf16.gmra.mxu0 %v558
  %v3247 = vpop.f32.mrf.mxu0
  %v3248 = vadd.f32 %v538, %v3247
  %v3249 = vpop.f32.mrf.mxu0
  %3250 = vdwg.mxu0
  %3251 = vmatpush.bf16.msra.mxu0 %v2231
  %3252 = vmatpush.bf16.msra.mxu0 %v2223
  %3253 = vmatpush.bf16.msra.mxu0 %v2215
  %3254 = vmatpush.bf16.msra.mxu0 %v2207
  %3255 = vmatpush.bf16.msra.mxu0 %v2199
  %3256 = vmatpush.bf16.msra.mxu0 %v2191
  %3257 = vmatpush.bf16.msra.mxu0 %v2183
  %3258 = vmatpush.bf16.msra.mxu0 %v2175
  %3259 = vmatmul.bf16.gmra.mxu0 %v559
  %v3260 = vpop.f32.mrf.mxu0
  %v3261 = vadd.f32 %v3248, %v3260
  %v3262 = vpop.f32.mrf.mxu0
  %3263 = vdwg.mxu0
  %3264 = vmatpush.bf16.msra.mxu0 %v2295
  %3265 = vmatpush.bf16.msra.mxu0 %v2287
  %3266 = vmatpush.bf16.msra.mxu0 %v2279
  %3267 = vmatpush.bf16.msra.mxu0 %v2271
  %3268 = vmatpush.bf16.msra.mxu0 %v2263
  %3269 = vmatpush.bf16.msra.mxu0 %v2255
  %3270 = vmatpush.bf16.msra.mxu0 %v2247
  %3271 = vmatpush.bf16.msra.mxu0 %v2239
  %3272 = vmatmul.bf16.gmra.mxu0 %v560
  %v3273 = vpop.f32.mrf.mxu0
  %v3274 = vadd.f32 %v3261, %v3273
  %v3275 = vpop.f32.mrf.mxu0
  %3276 = vdwg.mxu0
  %3277 = vmatpush.bf16.msra.mxu0 %v2359
  %3278 = vmatpush.bf16.msra.mxu0 %v2351
  %3279 = vmatpush.bf16.msra.mxu0 %v2343
  %3280 = vmatpush.bf16.msra.mxu0 %v2335
  %3281 = vmatpush.bf16.msra.mxu0 %v2327
  %3282 = vmatpush.bf16.msra.mxu0 %v2319
  %3283 = vmatpush.bf16.msra.mxu0 %v2311
  %3284 = vmatpush.bf16.msra.mxu0 %v2303
  %3285 = vmatmul.bf16.gmra.mxu0 %v561
  %v3286 = vpop.f32.mrf.mxu0
  %v3287 = vadd.f32 %v3274, %v3286
  %v3288 = vpop.f32.mrf.mxu0
  %3289 = vdwg.mxu0
  %3290 = vmatpush.bf16.msra.mxu0 %v2423
  %3291 = vmatpush.bf16.msra.mxu0 %v2415
  %3292 = vmatpush.bf16.msra.mxu0 %v2407
  %3293 = vmatpush.bf16.msra.mxu0 %v2399
  %3294 = vmatpush.bf16.msra.mxu0 %v2391
  %3295 = vmatpush.bf16.msra.mxu0 %v2383
  %3296 = vmatpush.bf16.msra.mxu0 %v2375
  %3297 = vmatpush.bf16.msra.mxu0 %v2367
  %3298 = vmatmul.bf16.gmra.mxu0 %v562
  %v3299 = vpop.f32.mrf.mxu0
  %v3300 = vadd.f32 %v3287, %v3299
  %v3301 = vpop.f32.mrf.mxu0
  %3302 = vdwg.mxu0
  %3303 = vmatpush.bf16.msra.mxu0 %v2487
  %3304 = vmatpush.bf16.msra.mxu0 %v2479
  %3305 = vmatpush.bf16.msra.mxu0 %v2471
  %3306 = vmatpush.bf16.msra.mxu0 %v2463
  %3307 = vmatpush.bf16.msra.mxu0 %v2455
  %3308 = vmatpush.bf16.msra.mxu0 %v2447
  %3309 = vmatpush.bf16.msra.mxu0 %v2439
  %3310 = vmatpush.bf16.msra.mxu0 %v2431
  %3311 = vmatmul.bf16.gmra.mxu0 %v563
  %v3312 = vpop.f32.mrf.mxu0
  %v3313 = vadd.f32 %v3300, %v3312
  %v3314 = vpop.f32.mrf.mxu0
  %3315 = vdwg.mxu0
  %3316 = vmatpush.bf16.msra.mxu0 %v2551
  %3317 = vmatpush.bf16.msra.mxu0 %v2543
  %3318 = vmatpush.bf16.msra.mxu0 %v2535
  %3319 = vmatpush.bf16.msra.mxu0 %v2527
  %3320 = vmatpush.bf16.msra.mxu0 %v2519
  %3321 = vmatpush.bf16.msra.mxu0 %v2511
  %3322 = vmatpush.bf16.msra.mxu0 %v2503
  %3323 = vmatpush.bf16.msra.mxu0 %v2495
  %3324 = vmatmul.bf16.gmra.mxu0 %v564
  %v3325 = vpop.f32.mrf.mxu0
  %v3326 = vadd.f32 %v3313, %v3325
  %v3327 = vpop.f32.mrf.mxu0
  %3328 = vdwg.mxu0
  %3329 = vmatpush.bf16.msra.mxu0 %v2615
  %3330 = vmatpush.bf16.msra.mxu0 %v2607
  %3331 = vmatpush.bf16.msra.mxu0 %v2599
  %3332 = vmatpush.bf16.msra.mxu0 %v2591
  %3333 = vmatpush.bf16.msra.mxu0 %v2583
  %3334 = vmatpush.bf16.msra.mxu0 %v2575
  %3335 = vmatpush.bf16.msra.mxu0 %v2567
  %3336 = vmatpush.bf16.msra.mxu0 %v2559
  %3337 = vmatmul.bf16.gmra.mxu0 %v565
  %v3338 = vpop.f32.mrf.mxu0
  %v3339 = vadd.f32 %v3326, %v3338
  %v3340 = vpop.f32.mrf.mxu0
  %3341 = vdwg.mxu0
  %3342 = vmatpush.bf16.msra.mxu0 %v2168
  %3343 = vmatpush.bf16.msra.mxu0 %v2160
  %3344 = vmatpush.bf16.msra.mxu0 %v2152
  %3345 = vmatpush.bf16.msra.mxu0 %v2144
  %3346 = vmatpush.bf16.msra.mxu0 %v2136
  %3347 = vmatpush.bf16.msra.mxu0 %v2128
  %3348 = vmatpush.bf16.msra.mxu0 %v2120
  %3349 = vmatpush.bf16.msra.mxu0 %v2112
  %3350 = vmatmul.bf16.gmra.mxu0 %v558
  %v3351 = vpop.f32.mrf.mxu0
  %v3352 = vadd.f32 %v539, %v3351
  %v3353 = vpop.f32.mrf.mxu0
  %3354 = vdwg.mxu0
  %3355 = vmatpush.bf16.msra.mxu0 %v2232
  %3356 = vmatpush.bf16.msra.mxu0 %v2224
  %3357 = vmatpush.bf16.msra.mxu0 %v2216
  %3358 = vmatpush.bf16.msra.mxu0 %v2208
  %3359 = vmatpush.bf16.msra.mxu0 %v2200
  %3360 = vmatpush.bf16.msra.mxu0 %v2192
  %3361 = vmatpush.bf16.msra.mxu0 %v2184
  %3362 = vmatpush.bf16.msra.mxu0 %v2176
  %3363 = vmatmul.bf16.gmra.mxu0 %v559
  %v3364 = vpop.f32.mrf.mxu0
  %v3365 = vadd.f32 %v3352, %v3364
  %v3366 = vpop.f32.mrf.mxu0
  %3367 = vdwg.mxu0
  %3368 = vmatpush.bf16.msra.mxu0 %v2296
  %3369 = vmatpush.bf16.msra.mxu0 %v2288
  %3370 = vmatpush.bf16.msra.mxu0 %v2280
  %3371 = vmatpush.bf16.msra.mxu0 %v2272
  %3372 = vmatpush.bf16.msra.mxu0 %v2264
  %3373 = vmatpush.bf16.msra.mxu0 %v2256
  %3374 = vmatpush.bf16.msra.mxu0 %v2248
  %3375 = vmatpush.bf16.msra.mxu0 %v2240
  %3376 = vmatmul.bf16.gmra.mxu0 %v560
  %v3377 = vpop.f32.mrf.mxu0
  %v3378 = vadd.f32 %v3365, %v3377
  %v3379 = vpop.f32.mrf.mxu0
  %3380 = vdwg.mxu0
  %3381 = vmatpush.bf16.msra.mxu0 %v2360
  %3382 = vmatpush.bf16.msra.mxu0 %v2352
  %3383 = vmatpush.bf16.msra.mxu0 %v2344
  %3384 = vmatpush.bf16.msra.mxu0 %v2336
  %3385 = vmatpush.bf16.msra.mxu0 %v2328
  %3386 = vmatpush.bf16.msra.mxu0 %v2320
  %3387 = vmatpush.bf16.msra.mxu0 %v2312
  %3388 = vmatpush.bf16.msra.mxu0 %v2304
  %3389 = vmatmul.bf16.gmra.mxu0 %v561
  %v3390 = vpop.f32.mrf.mxu0
  %v3391 = vadd.f32 %v3378, %v3390
  %v3392 = vpop.f32.mrf.mxu0
  %3393 = vdwg.mxu0
  %3394 = vmatpush.bf16.msra.mxu0 %v2424
  %3395 = vmatpush.bf16.msra.mxu0 %v2416
  %3396 = vmatpush.bf16.msra.mxu0 %v2408
  %3397 = vmatpush.bf16.msra.mxu0 %v2400
  %3398 = vmatpush.bf16.msra.mxu0 %v2392
  %3399 = vmatpush.bf16.msra.mxu0 %v2384
  %3400 = vmatpush.bf16.msra.mxu0 %v2376
  %3401 = vmatpush.bf16.msra.mxu0 %v2368
  %3402 = vmatmul.bf16.gmra.mxu0 %v562
  %v3403 = vpop.f32.mrf.mxu0
  %v3404 = vadd.f32 %v3391, %v3403
  %v3405 = vpop.f32.mrf.mxu0
  %3406 = vdwg.mxu0
  %3407 = vmatpush.bf16.msra.mxu0 %v2488
  %3408 = vmatpush.bf16.msra.mxu0 %v2480
  %3409 = vmatpush.bf16.msra.mxu0 %v2472
  %3410 = vmatpush.bf16.msra.mxu0 %v2464
  %3411 = vmatpush.bf16.msra.mxu0 %v2456
  %3412 = vmatpush.bf16.msra.mxu0 %v2448
  %3413 = vmatpush.bf16.msra.mxu0 %v2440
  %3414 = vmatpush.bf16.msra.mxu0 %v2432
  %3415 = vmatmul.bf16.gmra.mxu0 %v563
  %v3416 = vpop.f32.mrf.mxu0
  %v3417 = vadd.f32 %v3404, %v3416
  %v3418 = vpop.f32.mrf.mxu0
  %3419 = vdwg.mxu0
  %3420 = vmatpush.bf16.msra.mxu0 %v2552
  %3421 = vmatpush.bf16.msra.mxu0 %v2544
  %3422 = vmatpush.bf16.msra.mxu0 %v2536
  %3423 = vmatpush.bf16.msra.mxu0 %v2528
  %3424 = vmatpush.bf16.msra.mxu0 %v2520
  %3425 = vmatpush.bf16.msra.mxu0 %v2512
  %3426 = vmatpush.bf16.msra.mxu0 %v2504
  %3427 = vmatpush.bf16.msra.mxu0 %v2496
  %3428 = vmatmul.bf16.gmra.mxu0 %v564
  %v3429 = vpop.f32.mrf.mxu0
  %v3430 = vadd.f32 %v3417, %v3429
  %v3431 = vpop.f32.mrf.mxu0
  %3432 = vdwg.mxu0
  %3433 = vmatpush.bf16.msra.mxu0 %v2616
  %3434 = vmatpush.bf16.msra.mxu0 %v2608
  %3435 = vmatpush.bf16.msra.mxu0 %v2600
  %3436 = vmatpush.bf16.msra.mxu0 %v2592
  %3437 = vmatpush.bf16.msra.mxu0 %v2584
  %3438 = vmatpush.bf16.msra.mxu0 %v2576
  %3439 = vmatpush.bf16.msra.mxu0 %v2568
  %3440 = vmatpush.bf16.msra.mxu0 %v2560
  %3441 = vmatmul.bf16.gmra.mxu0 %v565
  %v3442 = vpop.f32.mrf.mxu0
  %v3443 = vadd.f32 %v3430, %v3442
  %v3444 = vpop.f32.mrf.mxu0
  %3445 = vdwg.mxu0
  %3446 = vmatpush.bf16.msra.mxu0 %v2169
  %3447 = vmatpush.bf16.msra.mxu0 %v2161
  %3448 = vmatpush.bf16.msra.mxu0 %v2153
  %3449 = vmatpush.bf16.msra.mxu0 %v2145
  %3450 = vmatpush.bf16.msra.mxu0 %v2137
  %3451 = vmatpush.bf16.msra.mxu0 %v2129
  %3452 = vmatpush.bf16.msra.mxu0 %v2121
  %3453 = vmatpush.bf16.msra.mxu0 %v2113
  %3454 = vmatmul.bf16.gmra.mxu0 %v558
  %v3455 = vpop.f32.mrf.mxu0
  %v3456 = vadd.f32 %v540, %v3455
  %v3457 = vpop.f32.mrf.mxu0
  %3458 = vdwg.mxu0
  %3459 = vmatpush.bf16.msra.mxu0 %v2233
  %3460 = vmatpush.bf16.msra.mxu0 %v2225
  %3461 = vmatpush.bf16.msra.mxu0 %v2217
  %3462 = vmatpush.bf16.msra.mxu0 %v2209
  %3463 = vmatpush.bf16.msra.mxu0 %v2201
  %3464 = vmatpush.bf16.msra.mxu0 %v2193
  %3465 = vmatpush.bf16.msra.mxu0 %v2185
  %3466 = vmatpush.bf16.msra.mxu0 %v2177
  %3467 = vmatmul.bf16.gmra.mxu0 %v559
  %v3468 = vpop.f32.mrf.mxu0
  %v3469 = vadd.f32 %v3456, %v3468
  %v3470 = vpop.f32.mrf.mxu0
  %3471 = vdwg.mxu0
  %3472 = vmatpush.bf16.msra.mxu0 %v2297
  %3473 = vmatpush.bf16.msra.mxu0 %v2289
  %3474 = vmatpush.bf16.msra.mxu0 %v2281
  %3475 = vmatpush.bf16.msra.mxu0 %v2273
  %3476 = vmatpush.bf16.msra.mxu0 %v2265
  %3477 = vmatpush.bf16.msra.mxu0 %v2257
  %3478 = vmatpush.bf16.msra.mxu0 %v2249
  %3479 = vmatpush.bf16.msra.mxu0 %v2241
  %3480 = vmatmul.bf16.gmra.mxu0 %v560
  %v3481 = vpop.f32.mrf.mxu0
  %v3482 = vadd.f32 %v3469, %v3481
  %v3483 = vpop.f32.mrf.mxu0
  %3484 = vdwg.mxu0
  %3485 = vmatpush.bf16.msra.mxu0 %v2361
  %3486 = vmatpush.bf16.msra.mxu0 %v2353
  %3487 = vmatpush.bf16.msra.mxu0 %v2345
  %3488 = vmatpush.bf16.msra.mxu0 %v2337
  %3489 = vmatpush.bf16.msra.mxu0 %v2329
  %3490 = vmatpush.bf16.msra.mxu0 %v2321
  %3491 = vmatpush.bf16.msra.mxu0 %v2313
  %3492 = vmatpush.bf16.msra.mxu0 %v2305
  %3493 = vmatmul.bf16.gmra.mxu0 %v561
  %v3494 = vpop.f32.mrf.mxu0
  %v3495 = vadd.f32 %v3482, %v3494
  %v3496 = vpop.f32.mrf.mxu0
  %3497 = vdwg.mxu0
  %3498 = vmatpush.bf16.msra.mxu0 %v2425
  %3499 = vmatpush.bf16.msra.mxu0 %v2417
  %3500 = vmatpush.bf16.msra.mxu0 %v2409
  %3501 = vmatpush.bf16.msra.mxu0 %v2401
  %3502 = vmatpush.bf16.msra.mxu0 %v2393
  %3503 = vmatpush.bf16.msra.mxu0 %v2385
  %3504 = vmatpush.bf16.msra.mxu0 %v2377
  %3505 = vmatpush.bf16.msra.mxu0 %v2369
  %3506 = vmatmul.bf16.gmra.mxu0 %v562
  %v3507 = vpop.f32.mrf.mxu0
  %v3508 = vadd.f32 %v3495, %v3507
  %v3509 = vpop.f32.mrf.mxu0
  %3510 = vdwg.mxu0
  %3511 = vmatpush.bf16.msra.mxu0 %v2489
  %3512 = vmatpush.bf16.msra.mxu0 %v2481
  %3513 = vmatpush.bf16.msra.mxu0 %v2473
  %3514 = vmatpush.bf16.msra.mxu0 %v2465
  %3515 = vmatpush.bf16.msra.mxu0 %v2457
  %3516 = vmatpush.bf16.msra.mxu0 %v2449
  %3517 = vmatpush.bf16.msra.mxu0 %v2441
  %3518 = vmatpush.bf16.msra.mxu0 %v2433
  %3519 = vmatmul.bf16.gmra.mxu0 %v563
  %v3520 = vpop.f32.mrf.mxu0
  %v3521 = vadd.f32 %v3508, %v3520
  %v3522 = vpop.f32.mrf.mxu0
  %3523 = vdwg.mxu0
  %3524 = vmatpush.bf16.msra.mxu0 %v2553
  %3525 = vmatpush.bf16.msra.mxu0 %v2545
  %3526 = vmatpush.bf16.msra.mxu0 %v2537
  %3527 = vmatpush.bf16.msra.mxu0 %v2529
  %3528 = vmatpush.bf16.msra.mxu0 %v2521
  %3529 = vmatpush.bf16.msra.mxu0 %v2513
  %3530 = vmatpush.bf16.msra.mxu0 %v2505
  %3531 = vmatpush.bf16.msra.mxu0 %v2497
  %3532 = vmatmul.bf16.gmra.mxu0 %v564
  %v3533 = vpop.f32.mrf.mxu0
  %v3534 = vadd.f32 %v3521, %v3533
  %v3535 = vpop.f32.mrf.mxu0
  %3536 = vdwg.mxu0
  %3537 = vmatpush.bf16.msra.mxu0 %v2617
  %3538 = vmatpush.bf16.msra.mxu0 %v2609
  %3539 = vmatpush.bf16.msra.mxu0 %v2601
  %3540 = vmatpush.bf16.msra.mxu0 %v2593
  %3541 = vmatpush.bf16.msra.mxu0 %v2585
  %3542 = vmatpush.bf16.msra.mxu0 %v2577
  %3543 = vmatpush.bf16.msra.mxu0 %v2569
  %3544 = vmatpush.bf16.msra.mxu0 %v2561
  %3545 = vmatmul.bf16.gmra.mxu0 %v565
  %v3546 = vpop.f32.mrf.mxu0
  %v3547 = vadd.f32 %v3534, %v3546
  %v3548 = vpop.f32.mrf.mxu0
  %3549 = vdwg.mxu0
  %3550 = vmatpush.bf16.msra.mxu0 %v2170
  %3551 = vmatpush.bf16.msra.mxu0 %v2162
  %3552 = vmatpush.bf16.msra.mxu0 %v2154
  %3553 = vmatpush.bf16.msra.mxu0 %v2146
  %3554 = vmatpush.bf16.msra.mxu0 %v2138
  %3555 = vmatpush.bf16.msra.mxu0 %v2130
  %3556 = vmatpush.bf16.msra.mxu0 %v2122
  %3557 = vmatpush.bf16.msra.mxu0 %v2114
  %3558 = vmatmul.bf16.gmra.mxu0 %v558
  %v3559 = vpop.f32.mrf.mxu0
  %v3560 = vadd.f32 %v541, %v3559
  %v3561 = vpop.f32.mrf.mxu0
  %3562 = vdwg.mxu0
  %3563 = vmatpush.bf16.msra.mxu0 %v2234
  %3564 = vmatpush.bf16.msra.mxu0 %v2226
  %3565 = vmatpush.bf16.msra.mxu0 %v2218
  %3566 = vmatpush.bf16.msra.mxu0 %v2210
  %3567 = vmatpush.bf16.msra.mxu0 %v2202
  %3568 = vmatpush.bf16.msra.mxu0 %v2194
  %3569 = vmatpush.bf16.msra.mxu0 %v2186
  %3570 = vmatpush.bf16.msra.mxu0 %v2178
  %3571 = vmatmul.bf16.gmra.mxu0 %v559
  %v3572 = vpop.f32.mrf.mxu0
  %v3573 = vadd.f32 %v3560, %v3572
  %v3574 = vpop.f32.mrf.mxu0
  %3575 = vdwg.mxu0
  %3576 = vmatpush.bf16.msra.mxu0 %v2298
  %3577 = vmatpush.bf16.msra.mxu0 %v2290
  %3578 = vmatpush.bf16.msra.mxu0 %v2282
  %3579 = vmatpush.bf16.msra.mxu0 %v2274
  %3580 = vmatpush.bf16.msra.mxu0 %v2266
  %3581 = vmatpush.bf16.msra.mxu0 %v2258
  %3582 = vmatpush.bf16.msra.mxu0 %v2250
  %3583 = vmatpush.bf16.msra.mxu0 %v2242
  %3584 = vmatmul.bf16.gmra.mxu0 %v560
  %v3585 = vpop.f32.mrf.mxu0
  %v3586 = vadd.f32 %v3573, %v3585
  %v3587 = vpop.f32.mrf.mxu0
  %3588 = vdwg.mxu0
  %3589 = vmatpush.bf16.msra.mxu0 %v2362
  %3590 = vmatpush.bf16.msra.mxu0 %v2354
  %3591 = vmatpush.bf16.msra.mxu0 %v2346
  %3592 = vmatpush.bf16.msra.mxu0 %v2338
  %3593 = vmatpush.bf16.msra.mxu0 %v2330
  %3594 = vmatpush.bf16.msra.mxu0 %v2322
  %3595 = vmatpush.bf16.msra.mxu0 %v2314
  %3596 = vmatpush.bf16.msra.mxu0 %v2306
  %3597 = vmatmul.bf16.gmra.mxu0 %v561
  %v3598 = vpop.f32.mrf.mxu0
  %v3599 = vadd.f32 %v3586, %v3598
  %v3600 = vpop.f32.mrf.mxu0
  %3601 = vdwg.mxu0
  %3602 = vmatpush.bf16.msra.mxu0 %v2426
  %3603 = vmatpush.bf16.msra.mxu0 %v2418
  %3604 = vmatpush.bf16.msra.mxu0 %v2410
  %3605 = vmatpush.bf16.msra.mxu0 %v2402
  %3606 = vmatpush.bf16.msra.mxu0 %v2394
  %3607 = vmatpush.bf16.msra.mxu0 %v2386
  %3608 = vmatpush.bf16.msra.mxu0 %v2378
  %3609 = vmatpush.bf16.msra.mxu0 %v2370
  %3610 = vmatmul.bf16.gmra.mxu0 %v562
  %v3611 = vpop.f32.mrf.mxu0
  %v3612 = vadd.f32 %v3599, %v3611
  %v3613 = vpop.f32.mrf.mxu0
  %3614 = vdwg.mxu0
  %3615 = vmatpush.bf16.msra.mxu0 %v2490
  %3616 = vmatpush.bf16.msra.mxu0 %v2482
  %3617 = vmatpush.bf16.msra.mxu0 %v2474
  %3618 = vmatpush.bf16.msra.mxu0 %v2466
  %3619 = vmatpush.bf16.msra.mxu0 %v2458
  %3620 = vmatpush.bf16.msra.mxu0 %v2450
  %3621 = vmatpush.bf16.msra.mxu0 %v2442
  %3622 = vmatpush.bf16.msra.mxu0 %v2434
  %3623 = vmatmul.bf16.gmra.mxu0 %v563
  %v3624 = vpop.f32.mrf.mxu0
  %v3625 = vadd.f32 %v3612, %v3624
  %v3626 = vpop.f32.mrf.mxu0
  %3627 = vdwg.mxu0
  %3628 = vmatpush.bf16.msra.mxu0 %v2554
  %3629 = vmatpush.bf16.msra.mxu0 %v2546
  %3630 = vmatpush.bf16.msra.mxu0 %v2538
  %3631 = vmatpush.bf16.msra.mxu0 %v2530
  %3632 = vmatpush.bf16.msra.mxu0 %v2522
  %3633 = vmatpush.bf16.msra.mxu0 %v2514
  %3634 = vmatpush.bf16.msra.mxu0 %v2506
  %3635 = vmatpush.bf16.msra.mxu0 %v2498
  %3636 = vmatmul.bf16.gmra.mxu0 %v564
  %v3637 = vpop.f32.mrf.mxu0
  %v3638 = vadd.f32 %v3625, %v3637
  %v3639 = vpop.f32.mrf.mxu0
  %3640 = vdwg.mxu0
  %3641 = vmatpush.bf16.msra.mxu0 %v2618
  %3642 = vmatpush.bf16.msra.mxu0 %v2610
  %3643 = vmatpush.bf16.msra.mxu0 %v2602
  %3644 = vmatpush.bf16.msra.mxu0 %v2594
  %3645 = vmatpush.bf16.msra.mxu0 %v2586
  %3646 = vmatpush.bf16.msra.mxu0 %v2578
  %3647 = vmatpush.bf16.msra.mxu0 %v2570
  %3648 = vmatpush.bf16.msra.mxu0 %v2562
  %3649 = vmatmul.bf16.gmra.mxu0 %v565
  %v3650 = vpop.f32.mrf.mxu0
  %v3651 = vadd.f32 %v3638, %v3650
  %v3652 = vpop.f32.mrf.mxu0
  %3653 = vdwg.mxu0
  %3654 = vmatpush.bf16.msra.mxu0 %v2171
  %3655 = vmatpush.bf16.msra.mxu0 %v2163
  %3656 = vmatpush.bf16.msra.mxu0 %v2155
  %3657 = vmatpush.bf16.msra.mxu0 %v2147
  %3658 = vmatpush.bf16.msra.mxu0 %v2139
  %3659 = vmatpush.bf16.msra.mxu0 %v2131
  %3660 = vmatpush.bf16.msra.mxu0 %v2123
  %3661 = vmatpush.bf16.msra.mxu0 %v2115
  %3662 = vmatmul.bf16.gmra.mxu0 %v558
  %v3663 = vpop.f32.mrf.mxu0
  %v3664 = vadd.f32 %v542, %v3663
  %v3665 = vpop.f32.mrf.mxu0
  %3666 = vdwg.mxu0
  %3667 = vmatpush.bf16.msra.mxu0 %v2235
  %3668 = vmatpush.bf16.msra.mxu0 %v2227
  %3669 = vmatpush.bf16.msra.mxu0 %v2219
  %3670 = vmatpush.bf16.msra.mxu0 %v2211
  %3671 = vmatpush.bf16.msra.mxu0 %v2203
  %3672 = vmatpush.bf16.msra.mxu0 %v2195
  %3673 = vmatpush.bf16.msra.mxu0 %v2187
  %3674 = vmatpush.bf16.msra.mxu0 %v2179
  %3675 = vmatmul.bf16.gmra.mxu0 %v559
  %v3676 = vpop.f32.mrf.mxu0
  %v3677 = vadd.f32 %v3664, %v3676
  %v3678 = vpop.f32.mrf.mxu0
  %3679 = vdwg.mxu0
  %3680 = vmatpush.bf16.msra.mxu0 %v2299
  %3681 = vmatpush.bf16.msra.mxu0 %v2291
  %3682 = vmatpush.bf16.msra.mxu0 %v2283
  %3683 = vmatpush.bf16.msra.mxu0 %v2275
  %3684 = vmatpush.bf16.msra.mxu0 %v2267
  %3685 = vmatpush.bf16.msra.mxu0 %v2259
  %3686 = vmatpush.bf16.msra.mxu0 %v2251
  %3687 = vmatpush.bf16.msra.mxu0 %v2243
  %3688 = vmatmul.bf16.gmra.mxu0 %v560
  %v3689 = vpop.f32.mrf.mxu0
  %v3690 = vadd.f32 %v3677, %v3689
  %v3691 = vpop.f32.mrf.mxu0
  %3692 = vdwg.mxu0
  %3693 = vmatpush.bf16.msra.mxu0 %v2363
  %3694 = vmatpush.bf16.msra.mxu0 %v2355
  %3695 = vmatpush.bf16.msra.mxu0 %v2347
  %3696 = vmatpush.bf16.msra.mxu0 %v2339
  %3697 = vmatpush.bf16.msra.mxu0 %v2331
  %3698 = vmatpush.bf16.msra.mxu0 %v2323
  %3699 = vmatpush.bf16.msra.mxu0 %v2315
  %3700 = vmatpush.bf16.msra.mxu0 %v2307
  %3701 = vmatmul.bf16.gmra.mxu0 %v561
  %v3702 = vpop.f32.mrf.mxu0
  %v3703 = vadd.f32 %v3690, %v3702
  %v3704 = vpop.f32.mrf.mxu0
  %3705 = vdwg.mxu0
  %3706 = vmatpush.bf16.msra.mxu0 %v2427
  %3707 = vmatpush.bf16.msra.mxu0 %v2419
  %3708 = vmatpush.bf16.msra.mxu0 %v2411
  %3709 = vmatpush.bf16.msra.mxu0 %v2403
  %3710 = vmatpush.bf16.msra.mxu0 %v2395
  %3711 = vmatpush.bf16.msra.mxu0 %v2387
  %3712 = vmatpush.bf16.msra.mxu0 %v2379
  %3713 = vmatpush.bf16.msra.mxu0 %v2371
  %3714 = vmatmul.bf16.gmra.mxu0 %v562
  %v3715 = vpop.f32.mrf.mxu0
  %v3716 = vadd.f32 %v3703, %v3715
  %v3717 = vpop.f32.mrf.mxu0
  %3718 = vdwg.mxu0
  %3719 = vmatpush.bf16.msra.mxu0 %v2491
  %3720 = vmatpush.bf16.msra.mxu0 %v2483
  %3721 = vmatpush.bf16.msra.mxu0 %v2475
  %3722 = vmatpush.bf16.msra.mxu0 %v2467
  %3723 = vmatpush.bf16.msra.mxu0 %v2459
  %3724 = vmatpush.bf16.msra.mxu0 %v2451
  %3725 = vmatpush.bf16.msra.mxu0 %v2443
  %3726 = vmatpush.bf16.msra.mxu0 %v2435
  %3727 = vmatmul.bf16.gmra.mxu0 %v563
  %v3728 = vpop.f32.mrf.mxu0
  %v3729 = vadd.f32 %v3716, %v3728
  %v3730 = vpop.f32.mrf.mxu0
  %3731 = vdwg.mxu0
  %3732 = vmatpush.bf16.msra.mxu0 %v2555
  %3733 = vmatpush.bf16.msra.mxu0 %v2547
  %3734 = vmatpush.bf16.msra.mxu0 %v2539
  %3735 = vmatpush.bf16.msra.mxu0 %v2531
  %3736 = vmatpush.bf16.msra.mxu0 %v2523
  %3737 = vmatpush.bf16.msra.mxu0 %v2515
  %3738 = vmatpush.bf16.msra.mxu0 %v2507
  %3739 = vmatpush.bf16.msra.mxu0 %v2499
  %3740 = vmatmul.bf16.gmra.mxu0 %v564
  %v3741 = vpop.f32.mrf.mxu0
  %v3742 = vadd.f32 %v3729, %v3741
  %v3743 = vpop.f32.mrf.mxu0
  %3744 = vdwg.mxu0
  %3745 = vmatpush.bf16.msra.mxu0 %v2619
  %3746 = vmatpush.bf16.msra.mxu0 %v2611
  %3747 = vmatpush.bf16.msra.mxu0 %v2603
  %3748 = vmatpush.bf16.msra.mxu0 %v2595
  %3749 = vmatpush.bf16.msra.mxu0 %v2587
  %3750 = vmatpush.bf16.msra.mxu0 %v2579
  %3751 = vmatpush.bf16.msra.mxu0 %v2571
  %3752 = vmatpush.bf16.msra.mxu0 %v2563
  %3753 = vmatmul.bf16.gmra.mxu0 %v565
  %v3754 = vpop.f32.mrf.mxu0
  %v3755 = vadd.f32 %v3742, %v3754
  %v3756 = vpop.f32.mrf.mxu0
  %3757 = vdwg.mxu0
  %3758 = vmatpush.bf16.msra.mxu0 %v2172
  %3759 = vmatpush.bf16.msra.mxu0 %v2164
  %3760 = vmatpush.bf16.msra.mxu0 %v2156
  %3761 = vmatpush.bf16.msra.mxu0 %v2148
  %3762 = vmatpush.bf16.msra.mxu0 %v2140
  %3763 = vmatpush.bf16.msra.mxu0 %v2132
  %3764 = vmatpush.bf16.msra.mxu0 %v2124
  %3765 = vmatpush.bf16.msra.mxu0 %v2116
  %3766 = vmatmul.bf16.gmra.mxu0 %v558
  %v3767 = vpop.f32.mrf.mxu0
  %v3768 = vadd.f32 %v543, %v3767
  %v3769 = vpop.f32.mrf.mxu0
  %3770 = vdwg.mxu0
  %3771 = vmatpush.bf16.msra.mxu0 %v2236
  %3772 = vmatpush.bf16.msra.mxu0 %v2228
  %3773 = vmatpush.bf16.msra.mxu0 %v2220
  %3774 = vmatpush.bf16.msra.mxu0 %v2212
  %3775 = vmatpush.bf16.msra.mxu0 %v2204
  %3776 = vmatpush.bf16.msra.mxu0 %v2196
  %3777 = vmatpush.bf16.msra.mxu0 %v2188
  %3778 = vmatpush.bf16.msra.mxu0 %v2180
  %3779 = vmatmul.bf16.gmra.mxu0 %v559
  %v3780 = vpop.f32.mrf.mxu0
  %v3781 = vadd.f32 %v3768, %v3780
  %v3782 = vpop.f32.mrf.mxu0
  %3783 = vdwg.mxu0
  %3784 = vmatpush.bf16.msra.mxu0 %v2300
  %3785 = vmatpush.bf16.msra.mxu0 %v2292
  %3786 = vmatpush.bf16.msra.mxu0 %v2284
  %3787 = vmatpush.bf16.msra.mxu0 %v2276
  %3788 = vmatpush.bf16.msra.mxu0 %v2268
  %3789 = vmatpush.bf16.msra.mxu0 %v2260
  %3790 = vmatpush.bf16.msra.mxu0 %v2252
  %3791 = vmatpush.bf16.msra.mxu0 %v2244
  %3792 = vmatmul.bf16.gmra.mxu0 %v560
  %v3793 = vpop.f32.mrf.mxu0
  %v3794 = vadd.f32 %v3781, %v3793
  %v3795 = vpop.f32.mrf.mxu0
  %3796 = vdwg.mxu0
  %3797 = vmatpush.bf16.msra.mxu0 %v2364
  %3798 = vmatpush.bf16.msra.mxu0 %v2356
  %3799 = vmatpush.bf16.msra.mxu0 %v2348
  %3800 = vmatpush.bf16.msra.mxu0 %v2340
  %3801 = vmatpush.bf16.msra.mxu0 %v2332
  %3802 = vmatpush.bf16.msra.mxu0 %v2324
  %3803 = vmatpush.bf16.msra.mxu0 %v2316
  %3804 = vmatpush.bf16.msra.mxu0 %v2308
  %3805 = vmatmul.bf16.gmra.mxu0 %v561
  %v3806 = vpop.f32.mrf.mxu0
  %v3807 = vadd.f32 %v3794, %v3806
  %v3808 = vpop.f32.mrf.mxu0
  %3809 = vdwg.mxu0
  %3810 = vmatpush.bf16.msra.mxu0 %v2428
  %3811 = vmatpush.bf16.msra.mxu0 %v2420
  %3812 = vmatpush.bf16.msra.mxu0 %v2412
  %3813 = vmatpush.bf16.msra.mxu0 %v2404
  %3814 = vmatpush.bf16.msra.mxu0 %v2396
  %3815 = vmatpush.bf16.msra.mxu0 %v2388
  %3816 = vmatpush.bf16.msra.mxu0 %v2380
  %3817 = vmatpush.bf16.msra.mxu0 %v2372
  %3818 = vmatmul.bf16.gmra.mxu0 %v562
  %v3819 = vpop.f32.mrf.mxu0
  %v3820 = vadd.f32 %v3807, %v3819
  %v3821 = vpop.f32.mrf.mxu0
  %3822 = vdwg.mxu0
  %3823 = vmatpush.bf16.msra.mxu0 %v2492
  %3824 = vmatpush.bf16.msra.mxu0 %v2484
  %3825 = vmatpush.bf16.msra.mxu0 %v2476
  %3826 = vmatpush.bf16.msra.mxu0 %v2468
  %3827 = vmatpush.bf16.msra.mxu0 %v2460
  %3828 = vmatpush.bf16.msra.mxu0 %v2452
  %3829 = vmatpush.bf16.msra.mxu0 %v2444
  %3830 = vmatpush.bf16.msra.mxu0 %v2436
  %3831 = vmatmul.bf16.gmra.mxu0 %v563
  %v3832 = vpop.f32.mrf.mxu0
  %v3833 = vadd.f32 %v3820, %v3832
  %v3834 = vpop.f32.mrf.mxu0
  %3835 = vdwg.mxu0
  %3836 = vmatpush.bf16.msra.mxu0 %v2556
  %3837 = vmatpush.bf16.msra.mxu0 %v2548
  %3838 = vmatpush.bf16.msra.mxu0 %v2540
  %3839 = vmatpush.bf16.msra.mxu0 %v2532
  %3840 = vmatpush.bf16.msra.mxu0 %v2524
  %3841 = vmatpush.bf16.msra.mxu0 %v2516
  %3842 = vmatpush.bf16.msra.mxu0 %v2508
  %3843 = vmatpush.bf16.msra.mxu0 %v2500
  %3844 = vmatmul.bf16.gmra.mxu0 %v564
  %v3845 = vpop.f32.mrf.mxu0
  %v3846 = vadd.f32 %v3833, %v3845
  %v3847 = vpop.f32.mrf.mxu0
  %3848 = vdwg.mxu0
  %3849 = vmatpush.bf16.msra.mxu0 %v2620
  %3850 = vmatpush.bf16.msra.mxu0 %v2612
  %3851 = vmatpush.bf16.msra.mxu0 %v2604
  %3852 = vmatpush.bf16.msra.mxu0 %v2596
  %3853 = vmatpush.bf16.msra.mxu0 %v2588
  %3854 = vmatpush.bf16.msra.mxu0 %v2580
  %3855 = vmatpush.bf16.msra.mxu0 %v2572
  %3856 = vmatpush.bf16.msra.mxu0 %v2564
  %3857 = vmatmul.bf16.gmra.mxu0 %v565
  %v3858 = vpop.f32.mrf.mxu0
  %v3859 = vadd.f32 %v3846, %v3858
  %v3860 = vpop.f32.mrf.mxu0
  %3861 = vdwg.mxu0
  %3862 = vmatpush.bf16.msra.mxu0 %v2173
  %3863 = vmatpush.bf16.msra.mxu0 %v2165
  %3864 = vmatpush.bf16.msra.mxu0 %v2157
  %3865 = vmatpush.bf16.msra.mxu0 %v2149
  %3866 = vmatpush.bf16.msra.mxu0 %v2141
  %3867 = vmatpush.bf16.msra.mxu0 %v2133
  %3868 = vmatpush.bf16.msra.mxu0 %v2125
  %3869 = vmatpush.bf16.msra.mxu0 %v2117
  %3870 = vmatmul.bf16.gmra.mxu0 %v558
  %v3871 = vpop.f32.mrf.mxu0
  %v3872 = vadd.f32 %v544, %v3871
  %v3873 = vpop.f32.mrf.mxu0
  %3874 = vdwg.mxu0
  %3875 = vmatpush.bf16.msra.mxu0 %v2237
  %3876 = vmatpush.bf16.msra.mxu0 %v2229
  %3877 = vmatpush.bf16.msra.mxu0 %v2221
  %3878 = vmatpush.bf16.msra.mxu0 %v2213
  %3879 = vmatpush.bf16.msra.mxu0 %v2205
  %3880 = vmatpush.bf16.msra.mxu0 %v2197
  %3881 = vmatpush.bf16.msra.mxu0 %v2189
  %3882 = vmatpush.bf16.msra.mxu0 %v2181
  %3883 = vmatmul.bf16.gmra.mxu0 %v559
  %v3884 = vpop.f32.mrf.mxu0
  %v3885 = vadd.f32 %v3872, %v3884
  %v3886 = vpop.f32.mrf.mxu0
  %3887 = vdwg.mxu0
  %3888 = vmatpush.bf16.msra.mxu0 %v2301
  %3889 = vmatpush.bf16.msra.mxu0 %v2293
  %3890 = vmatpush.bf16.msra.mxu0 %v2285
  %3891 = vmatpush.bf16.msra.mxu0 %v2277
  %3892 = vmatpush.bf16.msra.mxu0 %v2269
  %3893 = vmatpush.bf16.msra.mxu0 %v2261
  %3894 = vmatpush.bf16.msra.mxu0 %v2253
  %3895 = vmatpush.bf16.msra.mxu0 %v2245
  %3896 = vmatmul.bf16.gmra.mxu0 %v560
  %v3897 = vpop.f32.mrf.mxu0
  %v3898 = vadd.f32 %v3885, %v3897
  %v3899 = vpop.f32.mrf.mxu0
  %3900 = vdwg.mxu0
  %3901 = vmatpush.bf16.msra.mxu0 %v2365
  %3902 = vmatpush.bf16.msra.mxu0 %v2357
  %3903 = vmatpush.bf16.msra.mxu0 %v2349
  %3904 = vmatpush.bf16.msra.mxu0 %v2341
  %3905 = vmatpush.bf16.msra.mxu0 %v2333
  %3906 = vmatpush.bf16.msra.mxu0 %v2325
  %3907 = vmatpush.bf16.msra.mxu0 %v2317
  %3908 = vmatpush.bf16.msra.mxu0 %v2309
  %3909 = vmatmul.bf16.gmra.mxu0 %v561
  %v3910 = vpop.f32.mrf.mxu0
  %v3911 = vadd.f32 %v3898, %v3910
  %v3912 = vpop.f32.mrf.mxu0
  %3913 = vdwg.mxu0
  %3914 = vmatpush.bf16.msra.mxu0 %v2429
  %3915 = vmatpush.bf16.msra.mxu0 %v2421
  %3916 = vmatpush.bf16.msra.mxu0 %v2413
  %3917 = vmatpush.bf16.msra.mxu0 %v2405
  %3918 = vmatpush.bf16.msra.mxu0 %v2397
  %3919 = vmatpush.bf16.msra.mxu0 %v2389
  %3920 = vmatpush.bf16.msra.mxu0 %v2381
  %3921 = vmatpush.bf16.msra.mxu0 %v2373
  %3922 = vmatmul.bf16.gmra.mxu0 %v562
  %v3923 = vpop.f32.mrf.mxu0
  %v3924 = vadd.f32 %v3911, %v3923
  %v3925 = vpop.f32.mrf.mxu0
  %3926 = vdwg.mxu0
  %3927 = vmatpush.bf16.msra.mxu0 %v2493
  %3928 = vmatpush.bf16.msra.mxu0 %v2485
  %3929 = vmatpush.bf16.msra.mxu0 %v2477
  %3930 = vmatpush.bf16.msra.mxu0 %v2469
  %3931 = vmatpush.bf16.msra.mxu0 %v2461
  %3932 = vmatpush.bf16.msra.mxu0 %v2453
  %3933 = vmatpush.bf16.msra.mxu0 %v2445
  %3934 = vmatpush.bf16.msra.mxu0 %v2437
  %3935 = vmatmul.bf16.gmra.mxu0 %v563
  %v3936 = vpop.f32.mrf.mxu0
  %v3937 = vadd.f32 %v3924, %v3936
  %v3938 = vpop.f32.mrf.mxu0
  %3939 = vdwg.mxu0
  %3940 = vmatpush.bf16.msra.mxu0 %v2557
  %3941 = vmatpush.bf16.msra.mxu0 %v2549
  %3942 = vmatpush.bf16.msra.mxu0 %v2541
  %3943 = vmatpush.bf16.msra.mxu0 %v2533
  %3944 = vmatpush.bf16.msra.mxu0 %v2525
  %3945 = vmatpush.bf16.msra.mxu0 %v2517
  %3946 = vmatpush.bf16.msra.mxu0 %v2509
  %3947 = vmatpush.bf16.msra.mxu0 %v2501
  %3948 = vmatmul.bf16.gmra.mxu0 %v564
  %v3949 = vpop.f32.mrf.mxu0
  %v3950 = vadd.f32 %v3937, %v3949
  %v3951 = vpop.f32.mrf.mxu0
  %3952 = vdwg.mxu0
  %3953 = vmatpush.bf16.msra.mxu0 %v2621
  %3954 = vmatpush.bf16.msra.mxu0 %v2613
  %3955 = vmatpush.bf16.msra.mxu0 %v2605
  %3956 = vmatpush.bf16.msra.mxu0 %v2597
  %3957 = vmatpush.bf16.msra.mxu0 %v2589
  %3958 = vmatpush.bf16.msra.mxu0 %v2581
  %3959 = vmatpush.bf16.msra.mxu0 %v2573
  %3960 = vmatpush.bf16.msra.mxu0 %v2565
  %3961 = vmatmul.bf16.gmra.mxu0 %v565
  %v3962 = vpop.f32.mrf.mxu0
  %v3963 = vadd.f32 %v3950, %v3962
  %v3964 = vpop.f32.mrf.mxu0
  %3965 = vdwg.mxu0
  %v3966 = vmax.f32 %v3235, 0.0
  %v3967 = vmax.f32 %v3339, 0.0
  %v3968 = vmax.f32 %v3443, 0.0
  %v3969 = vmax.f32 %v3547, 0.0
  %v3970 = vmax.f32 %v3651, 0.0
  %v3971 = vmax.f32 %v3755, 0.0
  %v3972 = vmax.f32 %v3859, 0.0
  %v3973 = vmax.f32 %v3963, 0.0
  %v3974 = vpack.c.bf16 %v3966, %v3966
  %v3975 = vpack.c.bf16 %v3967, %v3967
  %v3976 = vpack.c.bf16 %v3968, %v3968
  %v3977 = vpack.c.bf16 %v3969, %v3969
  %v3978 = vpack.c.bf16 %v3970, %v3970
  %v3979 = vpack.c.bf16 %v3971, %v3971
  %v3980 = vpack.c.bf16 %v3972, %v3972
  %v3981 = vpack.c.bf16 %v3973, %v3973
  %v3982 = vld [vmem:[%s3] sm:$0xf]
  %v3983 = vld [vmem:[%s3 + $0x4] sm:$0xf]
  %v3984 = vld [vmem:[%s3 + $0x8] sm:$0xf]
  %v3985 = vld [vmem:[%s3 + $0xc] sm:$0xf]
  %v3986 = vld [vmem:[%s3 + $0x10] sm:$0xf]
  %v3987 = vld [vmem:[%s3 + $0x14] sm:$0xf]
  %v3988 = vld [vmem:[%s3 + $0x18] sm:$0xf]
  %v3989 = vld [vmem:[%s3 + $0x1c] sm:$0xf]
  %v3990 = vld [vmem:[%s3 + $0x20] sm:$0xf]
  %v3991 = vld [vmem:[%s3 + $0x24] sm:$0xf]
  %v3992 = vld [vmem:[%s3 + $0x28] sm:$0xf]
  %v3993 = vld [vmem:[%s3 + $0x2c] sm:$0xf]
  %v3994 = vld [vmem:[%s3 + $0x30] sm:$0xf]
  %v3995 = vld [vmem:[%s3 + $0x34] sm:$0xf]
  %v3996 = vld [vmem:[%s3 + $0x38] sm:$0xf]
  %v3997 = vld [vmem:[%s3 + $0x3c] sm:$0xf]
  %v3998 = vld [vmem:[%s3 + $0x40] sm:$0xf]
  %v3999 = vld [vmem:[%s3 + $0x44] sm:$0xf]
  %v4000 = vld [vmem:[%s3 + $0x48] sm:$0xf]
  %v4001 = vld [vmem:[%s3 + $0x4c] sm:$0xf]
  %v4002 = vld [vmem:[%s3 + $0x50] sm:$0xf]
  %v4003 = vld [vmem:[%s3 + $0x54] sm:$0xf]
  %v4004 = vld [vmem:[%s3 + $0x58] sm:$0xf]
  %v4005 = vld [vmem:[%s3 + $0x5c] sm:$0xf]
  %v4006 = vld [vmem:[%s3 + $0x60] sm:$0xf]
  %v4007 = vld [vmem:[%s3 + $0x64] sm:$0xf]
  %v4008 = vld [vmem:[%s3 + $0x68] sm:$0xf]
  %v4009 = vld [vmem:[%s3 + $0x6c] sm:$0xf]
  %v4010 = vld [vmem:[%s3 + $0x70] sm:$0xf]
  %v4011 = vld [vmem:[%s3 + $0x74] sm:$0xf]
  %v4012 = vld [vmem:[%s3 + $0x78] sm:$0xf]
  %v4013 = vld [vmem:[%s3 + $0x7c] sm:$0xf]
  %v4014 = vld [vmem:[%s3 + $0x80] sm:$0xf]
  %v4015 = vld [vmem:[%s3 + $0x84] sm:$0xf]
  %v4016 = vld [vmem:[%s3 + $0x88] sm:$0xf]
  %v4017 = vld [vmem:[%s3 + $0x8c] sm:$0xf]
  %v4018 = vld [vmem:[%s3 + $0x90] sm:$0xf]
  %v4019 = vld [vmem:[%s3 + $0x94] sm:$0xf]
  %v4020 = vld [vmem:[%s3 + $0x98] sm:$0xf]
  %v4021 = vld [vmem:[%s3 + $0x9c] sm:$0xf]
  %v4022 = vld [vmem:[%s3 + $0xa0] sm:$0xf]
  %v4023 = vld [vmem:[%s3 + $0xa4] sm:$0xf]
  %v4024 = vld [vmem:[%s3 + $0xa8] sm:$0xf]
  %v4025 = vld [vmem:[%s3 + $0xac] sm:$0xf]
  %v4026 = vld [vmem:[%s3 + $0xb0] sm:$0xf]
  %v4027 = vld [vmem:[%s3 + $0xb4] sm:$0xf]
  %v4028 = vld [vmem:[%s3 + $0xb8] sm:$0xf]
  %v4029 = vld [vmem:[%s3 + $0xbc] sm:$0xf]
  %v4030 = vld [vmem:[%s3 + $0xc0] sm:$0xf]
  %v4031 = vld [vmem:[%s3 + $0xc4] sm:$0xf]
  %v4032 = vld [vmem:[%s3 + $0xc8] sm:$0xf]
  %v4033 = vld [vmem:[%s3 + $0xcc] sm:$0xf]
  %v4034 = vld [vmem:[%s3 + $0xd0] sm:$0xf]
  %v4035 = vld [vmem:[%s3 + $0xd4] sm:$0xf]
  %v4036 = vld [vmem:[%s3 + $0xd8] sm:$0xf]
  %v4037 = vld [vmem:[%s3 + $0xdc] sm:$0xf]
  %v4038 = vld [vmem:[%s3 + $0xe0] sm:$0xf]
  %v4039 = vld [vmem:[%s3 + $0xe4] sm:$0xf]
  %v4040 = vld [vmem:[%s3 + $0xe8] sm:$0xf]
  %v4041 = vld [vmem:[%s3 + $0xec] sm:$0xf]
  %v4042 = vld [vmem:[%s3 + $0xf0] sm:$0xf]
  %v4043 = vld [vmem:[%s3 + $0xf4] sm:$0xf]
  %v4044 = vld [vmem:[%s3 + $0xf8] sm:$0xf]
  %v4045 = vld [vmem:[%s3 + $0xfc] sm:$0xf]
  %v4046 = vld [vmem:[%s3 + $0x100] sm:$0xf]
  %v4047 = vld [vmem:[%s3 + $0x104] sm:$0xf]
  %v4048 = vld [vmem:[%s3 + $0x108] sm:$0xf]
  %v4049 = vld [vmem:[%s3 + $0x10c] sm:$0xf]
  %v4050 = vld [vmem:[%s3 + $0x110] sm:$0xf]
  %v4051 = vld [vmem:[%s3 + $0x114] sm:$0xf]
  %v4052 = vld [vmem:[%s3 + $0x118] sm:$0xf]
  %v4053 = vld [vmem:[%s3 + $0x11c] sm:$0xf]
  %v4054 = vld [vmem:[%s3 + $0x120] sm:$0xf]
  %v4055 = vld [vmem:[%s3 + $0x124] sm:$0xf]
  %v4056 = vld [vmem:[%s3 + $0x128] sm:$0xf]
  %v4057 = vld [vmem:[%s3 + $0x12c] sm:$0xf]
  %v4058 = vld [vmem:[%s3 + $0x130] sm:$0xf]
  %v4059 = vld [vmem:[%s3 + $0x134] sm:$0xf]
  %v4060 = vld [vmem:[%s3 + $0x138] sm:$0xf]
  %v4061 = vld [vmem:[%s3 + $0x13c] sm:$0xf]
  %v4062 = vld [vmem:[%s3 + $0x140] sm:$0xf]
  %v4063 = vld [vmem:[%s3 + $0x144] sm:$0xf]
  %v4064 = vld [vmem:[%s3 + $0x148] sm:$0xf]
  %v4065 = vld [vmem:[%s3 + $0x14c] sm:$0xf]
  %v4066 = vld [vmem:[%s3 + $0x150] sm:$0xf]
  %v4067 = vld [vmem:[%s3 + $0x154] sm:$0xf]
  %v4068 = vld [vmem:[%s3 + $0x158] sm:$0xf]
  %v4069 = vld [vmem:[%s3 + $0x15c] sm:$0xf]
  %v4070 = vld [vmem:[%s3 + $0x160] sm:$0xf]
  %v4071 = vld [vmem:[%s3 + $0x164] sm:$0xf]
  %v4072 = vld [vmem:[%s3 + $0x168] sm:$0xf]
  %v4073 = vld [vmem:[%s3 + $0x16c] sm:$0xf]
  %v4074 = vld [vmem:[%s3 + $0x170] sm:$0xf]
  %v4075 = vld [vmem:[%s3 + $0x174] sm:$0xf]
  %v4076 = vld [vmem:[%s3 + $0x178] sm:$0xf]
  %v4077 = vld [vmem:[%s3 + $0x17c] sm:$0xf]
  %v4078 = vld [vmem:[%s3 + $0x180] sm:$0xf]
  %v4079 = vld [vmem:[%s3 + $0x184] sm:$0xf]
  %v4080 = vld [vmem:[%s3 + $0x188] sm:$0xf]
  %v4081 = vld [vmem:[%s3 + $0x18c] sm:$0xf]
  %v4082 = vld [vmem:[%s3 + $0x190] sm:$0xf]
  %v4083 = vld [vmem:[%s3 + $0x194] sm:$0xf]
  %v4084 = vld [vmem:[%s3 + $0x198] sm:$0xf]
  %v4085 = vld [vmem:[%s3 + $0x19c] sm:$0xf]
  %v4086 = vld [vmem:[%s3 + $0x1a0] sm:$0xf]
  %v4087 = vld [vmem:[%s3 + $0x1a4] sm:$0xf]
  %v4088 = vld [vmem:[%s3 + $0x1a8] sm:$0xf]
  %v4089 = vld [vmem:[%s3 + $0x1ac] sm:$0xf]
  %v4090 = vld [vmem:[%s3 + $0x1b0] sm:$0xf]
  %v4091 = vld [vmem:[%s3 + $0x1b4] sm:$0xf]
  %v4092 = vld [vmem:[%s3 + $0x1b8] sm:$0xf]
  %v4093 = vld [vmem:[%s3 + $0x1bc] sm:$0xf]
  %v4094 = vld [vmem:[%s3 + $0x1c0] sm:$0xf]
  %v4095 = vld [vmem:[%s3 + $0x1c4] sm:$0xf]
  %v4096 = vld [vmem:[%s3 + $0x1c8] sm:$0xf]
  %v4097 = vld [vmem:[%s3 + $0x1cc] sm:$0xf]
  %v4098 = vld [vmem:[%s3 + $0x1d0] sm:$0xf]
  %v4099 = vld [vmem:[%s3 + $0x1d4] sm:$0xf]
  %v4100 = vld [vmem:[%s3 + $0x1d8] sm:$0xf]
  %v4101 = vld [vmem:[%s3 + $0x1dc] sm:$0xf]
  %v4102 = vld [vmem:[%s3 + $0x1e0] sm:$0xf]
  %v4103 = vld [vmem:[%s3 + $0x1e4] sm:$0xf]
  %v4104 = vld [vmem:[%s3 + $0x1e8] sm:$0xf]
  %v4105 = vld [vmem:[%s3 + $0x1ec] sm:$0xf]
  %v4106 = vld [vmem:[%s3 + $0x1f0] sm:$0xf]
  %v4107 = vld [vmem:[%s4] sm:$0x1]
  %v4109 = vperm.slane %v4107, 0
  %v4236 = vunpack.c.l.b16 %v3982
  %v4237 = vunpack.c.l.b16 %v3983
  %v4238 = vunpack.c.l.b16 %v3984
  %v4239 = vunpack.c.l.b16 %v3985
  %v4240 = vunpack.c.l.b16 %v3986
  %v4241 = vunpack.c.l.b16 %v3987
  %v4242 = vunpack.c.l.b16 %v3988
  %v4243 = vunpack.c.l.b16 %v3989
  %v4244 = vunpack.c.l.b16 %v3990
  %v4245 = vunpack.c.l.b16 %v3991
  %v4246 = vunpack.c.l.b16 %v3992
  %v4247 = vunpack.c.l.b16 %v3993
  %v4248 = vunpack.c.l.b16 %v3994
  %v4249 = vunpack.c.l.b16 %v3995
  %v4250 = vunpack.c.l.b16 %v3996
  %v4251 = vunpack.c.l.b16 %v3997
  %v4252 = vunpack.c.l.b16 %v3998
  %v4253 = vunpack.c.l.b16 %v3999
  %v4254 = vunpack.c.l.b16 %v4000
  %v4255 = vunpack.c.l.b16 %v4001
  %v4256 = vunpack.c.l.b16 %v4002
  %v4257 = vunpack.c.l.b16 %v4003
  %v4258 = vunpack.c.l.b16 %v4004
  %v4259 = vunpack.c.l.b16 %v4005
  %v4260 = vunpack.c.l.b16 %v4006
  %v4261 = vunpack.c.l.b16 %v4007
  %v4262 = vunpack.c.l.b16 %v4008
  %v4263 = vunpack.c.l.b16 %v4009
  %v4264 = vunpack.c.l.b16 %v4010
  %v4265 = vunpack.c.l.b16 %v4011
  %v4266 = vunpack.c.l.b16 %v4012
  %v4267 = vunpack.c.l.b16 %v4013
  %v4268 = vunpack.c.l.b16 %v4014
  %v4269 = vunpack.c.l.b16 %v4015
  %v4270 = vunpack.c.l.b16 %v4016
  %v4271 = vunpack.c.l.b16 %v4017
  %v4272 = vunpack.c.l.b16 %v4018
  %v4273 = vunpack.c.l.b16 %v4019
  %v4274 = vunpack.c.l.b16 %v4020
  %v4275 = vunpack.c.l.b16 %v4021
  %v4276 = vunpack.c.l.b16 %v4022
  %v4277 = vunpack.c.l.b16 %v4023
  %v4278 = vunpack.c.l.b16 %v4024
  %v4279 = vunpack.c.l.b16 %v4025
  %v4280 = vunpack.c.l.b16 %v4026
  %v4281 = vunpack.c.l.b16 %v4027
  %v4282 = vunpack.c.l.b16 %v4028
  %v4283 = vunpack.c.l.b16 %v4029
  %v4284 = vunpack.c.l.b16 %v4030
  %v4285 = vunpack.c.l.b16 %v4031
  %v4286 = vunpack.c.l.b16 %v4032
  %v4287 = vunpack.c.l.b16 %v4033
  %v4288 = vunpack.c.l.b16 %v4034
  %v4289 = vunpack.c.l.b16 %v4035
  %v4290 = vunpack.c.l.b16 %v4036
  %v4291 = vunpack.c.l.b16 %v4037
  %v4292 = vunpack.c.l.b16 %v4038
  %v4293 = vunpack.c.l.b16 %v4039
  %v4294 = vunpack.c.l.b16 %v4040
  %v4295 = vunpack.c.l.b16 %v4041
  %v4296 = vunpack.c.l.b16 %v4042
  %v4297 = vunpack.c.l.b16 %v4043
  %v4298 = vunpack.c.l.b16 %v4044
  %v4299 = vunpack.c.l.b16 %v4045
  %v4300 = vunpack.c.l.b16 %v4046
  %v4301 = vunpack.c.l.b16 %v4047
  %v4302 = vunpack.c.l.b16 %v4048
  %v4303 = vunpack.c.l.b16 %v4049
  %v4304 = vunpack.c.l.b16 %v4050
  %v4305 = vunpack.c.l.b16 %v4051
  %v4306 = vunpack.c.l.b16 %v4052
  %v4307 = vunpack.c.l.b16 %v4053
  %v4308 = vunpack.c.l.b16 %v4054
  %v4309 = vunpack.c.l.b16 %v4055
  %v4310 = vunpack.c.l.b16 %v4056
  %v4311 = vunpack.c.l.b16 %v4057
  %v4312 = vunpack.c.l.b16 %v4058
  %v4313 = vunpack.c.l.b16 %v4059
  %v4314 = vunpack.c.l.b16 %v4060
  %v4315 = vunpack.c.l.b16 %v4061
  %v4316 = vunpack.c.l.b16 %v4062
  %v4317 = vunpack.c.l.b16 %v4063
  %v4318 = vunpack.c.l.b16 %v4064
  %v4319 = vunpack.c.l.b16 %v4065
  %v4320 = vunpack.c.l.b16 %v4066
  %v4321 = vunpack.c.l.b16 %v4067
  %v4322 = vunpack.c.l.b16 %v4068
  %v4323 = vunpack.c.l.b16 %v4069
  %v4324 = vunpack.c.l.b16 %v4070
  %v4325 = vunpack.c.l.b16 %v4071
  %v4326 = vunpack.c.l.b16 %v4072
  %v4327 = vunpack.c.l.b16 %v4073
  %v4328 = vunpack.c.l.b16 %v4074
  %v4329 = vunpack.c.l.b16 %v4075
  %v4330 = vunpack.c.l.b16 %v4076
  %v4331 = vunpack.c.l.b16 %v4077
  %v4332 = vunpack.c.l.b16 %v4078
  %v4333 = vunpack.c.l.b16 %v4079
  %v4334 = vunpack.c.l.b16 %v4080
  %v4335 = vunpack.c.l.b16 %v4081
  %v4336 = vunpack.c.l.b16 %v4082
  %v4337 = vunpack.c.l.b16 %v4083
  %v4338 = vunpack.c.l.b16 %v4084
  %v4339 = vunpack.c.l.b16 %v4085
  %v4340 = vunpack.c.l.b16 %v4086
  %v4341 = vunpack.c.l.b16 %v4087
  %v4342 = vunpack.c.l.b16 %v4088
  %v4343 = vunpack.c.l.b16 %v4089
  %v4344 = vunpack.c.l.b16 %v4090
  %v4345 = vunpack.c.l.b16 %v4091
  %v4346 = vunpack.c.l.b16 %v4092
  %v4347 = vunpack.c.l.b16 %v4093
  %v4348 = vunpack.c.l.b16 %v4094
  %v4349 = vunpack.c.l.b16 %v4095
  %v4350 = vunpack.c.l.b16 %v4096
  %v4351 = vunpack.c.l.b16 %v4097
  %v4352 = vunpack.c.l.b16 %v4098
  %v4353 = vunpack.c.l.b16 %v4099
  %v4354 = vunpack.c.l.b16 %v4100
  %v4355 = vunpack.c.l.b16 %v4101
  %v4356 = vunpack.c.l.b16 %v4102
  %v4357 = vunpack.c.l.b16 %v4103
  %v4358 = vunpack.c.l.b16 %v4104
  %v4359 = vunpack.c.l.b16 %v4105
  %v4360 = vunpack.c.l.b16 %v4106
  %v4361 = vpack.c.b16 %v4237, %v4236
  %v4362 = vpack.c.b16 %v4239, %v4238
  %v4363 = vpack.c.b16 %v4241, %v4240
  %v4364 = vpack.c.b16 %v4243, %v4242
  %v4365 = vpack.c.b16 %v4245, %v4244
  %v4366 = vpack.c.b16 %v4247, %v4246
  %v4367 = vpack.c.b16 %v4249, %v4248
  %v4368 = vpack.c.b16 %v4251, %v4250
  %v4369 = vpack.c.b16 %v4253, %v4252
  %v4370 = vpack.c.b16 %v4255, %v4254
  %v4371 = vpack.c.b16 %v4257, %v4256
  %v4372 = vpack.c.b16 %v4259, %v4258
  %v4373 = vpack.c.b16 %v4261, %v4260
  %v4374 = vpack.c.b16 %v4263, %v4262
  %v4375 = vpack.c.b16 %v4265, %v4264
  %v4376 = vpack.c.b16 %v4267, %v4266
  %v4377 = vpack.c.b16 %v4269, %v4268
  %v4378 = vpack.c.b16 %v4271, %v4270
  %v4379 = vpack.c.b16 %v4273, %v4272
  %v4380 = vpack.c.b16 %v4275, %v4274
  %v4381 = vpack.c.b16 %v4277, %v4276
  %v4382 = vpack.c.b16 %v4279, %v4278
  %v4383 = vpack.c.b16 %v4281, %v4280
  %v4384 = vpack.c.b16 %v4283, %v4282
  %v4385 = vpack.c.b16 %v4285, %v4284
  %v4386 = vpack.c.b16 %v4287, %v4286
  %v4387 = vpack.c.b16 %v4289, %v4288
  %v4388 = vpack.c.b16 %v4291, %v4290
  %v4389 = vpack.c.b16 %v4293, %v4292
  %v4390 = vpack.c.b16 %v4295, %v4294
  %v4391 = vpack.c.b16 %v4297, %v4296
  %v4392 = vpack.c.b16 %v4299, %v4298
  %v4393 = vpack.c.b16 %v4301, %v4300
  %v4394 = vpack.c.b16 %v4303, %v4302
  %v4395 = vpack.c.b16 %v4305, %v4304
  %v4396 = vpack.c.b16 %v4307, %v4306
  %v4397 = vpack.c.b16 %v4309, %v4308
  %v4398 = vpack.c.b16 %v4311, %v4310
  %v4399 = vpack.c.b16 %v4313, %v4312
  %v4400 = vpack.c.b16 %v4315, %v4314
  %v4401 = vpack.c.b16 %v4317, %v4316
  %v4402 = vpack.c.b16 %v4319, %v4318
  %v4403 = vpack.c.b16 %v4321, %v4320
  %v4404 = vpack.c.b16 %v4323, %v4322
  %v4405 = vpack.c.b16 %v4325, %v4324
  %v4406 = vpack.c.b16 %v4327, %v4326
  %v4407 = vpack.c.b16 %v4329, %v4328
  %v4408 = vpack.c.b16 %v4331, %v4330
  %v4409 = vpack.c.b16 %v4333, %v4332
  %v4410 = vpack.c.b16 %v4335, %v4334
  %v4411 = vpack.c.b16 %v4337, %v4336
  %v4412 = vpack.c.b16 %v4339, %v4338
  %v4413 = vpack.c.b16 %v4341, %v4340
  %v4414 = vpack.c.b16 %v4343, %v4342
  %v4415 = vpack.c.b16 %v4345, %v4344
  %v4416 = vpack.c.b16 %v4347, %v4346
  %v4417 = vpack.c.b16 %v4349, %v4348
  %v4418 = vpack.c.b16 %v4351, %v4350
  %v4419 = vpack.c.b16 %v4353, %v4352
  %v4420 = vpack.c.b16 %v4355, %v4354
  %v4421 = vpack.c.b16 %v4357, %v4356
  %v4422 = vpack.c.b16 %v4359, %v4358
  %v4423 = vpack.c.b16 %v4360, %v4360
  %vm4486 = vcmask 850944
  %v4488 = vsel %vm4486, %v3981, 0
  %vm4490 = vcmask 1043456
  %v4492 = vsel %vm4490, %v4423, 0
  %4494 = vmatpush.bf16.msra.mxu0 %v4368
  %4495 = vmatpush.bf16.msra.mxu0 %v4367
  %4496 = vmatpush.bf16.msra.mxu0 %v4366
  %4497 = vmatpush.bf16.msra.mxu0 %v4365
  %4498 = vmatpush.bf16.msra.mxu0 %v4364
  %4499 = vmatpush.bf16.msra.mxu0 %v4363
  %4500 = vmatpush.bf16.msra.mxu0 %v4362
  %4501 = vmatpush.bf16.msra.mxu0 %v4361
  %4502 = vmatmul.bf16.gmra.mxu0 %v3974
  %v4503 = vpop.f32.mrf.mxu0
  %v4504 = vadd.f32 %v4109, %v4503
  %v4505 = vpop.f32.mrf.mxu0
  %4506 = vdwg.mxu0
  %4507 = vmatpush.bf16.msra.mxu0 %v4376
  %4508 = vmatpush.bf16.msra.mxu0 %v4375
  %4509 = vmatpush.bf16.msra.mxu0 %v4374
  %4510 = vmatpush.bf16.msra.mxu0 %v4373
  %4511 = vmatpush.bf16.msra.mxu0 %v4372
  %4512 = vmatpush.bf16.msra.mxu0 %v4371
  %4513 = vmatpush.bf16.msra.mxu0 %v4370
  %4514 = vmatpush.bf16.msra.mxu0 %v4369
  %4515 = vmatmul.bf16.gmra.mxu0 %v3975
  %v4516 = vpop.f32.mrf.mxu0
  %v4517 = vadd.f32 %v4504, %v4516
  %v4518 = vpop.f32.mrf.mxu0
  %4519 = vdwg.mxu0
  %4520 = vmatpush.bf16.msra.mxu0 %v4384
  %4521 = vmatpush.bf16.msra.mxu0 %v4383
  %4522 = vmatpush.bf16.msra.mxu0 %v4382
  %4523 = vmatpush.bf16.msra.mxu0 %v4381
  %4524 = vmatpush.bf16.msra.mxu0 %v4380
  %4525 = vmatpush.bf16.msra.mxu0 %v4379
  %4526 = vmatpush.bf16.msra.mxu0 %v4378
  %4527 = vmatpush.bf16.msra.mxu0 %v4377
  %4528 = vmatmul.bf16.gmra.mxu0 %v3976
  %v4529 = vpop.f32.mrf.mxu0
  %v4530 = vadd.f32 %v4517, %v4529
  %v4531 = vpop.f32.mrf.mxu0
  %4532 = vdwg.mxu0
  %4533 = vmatpush.bf16.msra.mxu0 %v4392
  %4534 = vmatpush.bf16.msra.mxu0 %v4391
  %4535 = vmatpush.bf16.msra.mxu0 %v4390
  %4536 = vmatpush.bf16.msra.mxu0 %v4389
  %4537 = vmatpush.bf16.msra.mxu0 %v4388
  %4538 = vmatpush.bf16.msra.mxu0 %v4387
  %4539 = vmatpush.bf16.msra.mxu0 %v4386
  %4540 = vmatpush.bf16.msra.mxu0 %v4385
  %4541 = vmatmul.bf16.gmra.mxu0 %v3977
  %v4542 = vpop.f32.mrf.mxu0
  %v4543 = vadd.f32 %v4530, %v4542
  %v4544 = vpop.f32.mrf.mxu0
  %4545 = vdwg.mxu0
  %4546 = vmatpush.bf16.msra.mxu0 %v4400
  %4547 = vmatpush.bf16.msra.mxu0 %v4399
  %4548 = vmatpush.bf16.msra.mxu0 %v4398
  %4549 = vmatpush.bf16.msra.mxu0 %v4397
  %4550 = vmatpush.bf16.msra.mxu0 %v4396
  %4551 = vmatpush.bf16.msra.mxu0 %v4395
  %4552 = vmatpush.bf16.msra.mxu0 %v4394
  %4553 = vmatpush.bf16.msra.mxu0 %v4393
  %4554 = vmatmul.bf16.gmra.mxu0 %v3978
  %v4555 = vpop.f32.mrf.mxu0
  %v4556 = vadd.f32 %v4543, %v4555
  %v4557 = vpop.f32.mrf.mxu0
  %4558 = vdwg.mxu0
  %4559 = vmatpush.bf16.msra.mxu0 %v4408
  %4560 = vmatpush.bf16.msra.mxu0 %v4407
  %4561 = vmatpush.bf16.msra.mxu0 %v4406
  %4562 = vmatpush.bf16.msra.mxu0 %v4405
  %4563 = vmatpush.bf16.msra.mxu0 %v4404
  %4564 = vmatpush.bf16.msra.mxu0 %v4403
  %4565 = vmatpush.bf16.msra.mxu0 %v4402
  %4566 = vmatpush.bf16.msra.mxu0 %v4401
  %4567 = vmatmul.bf16.gmra.mxu0 %v3979
  %v4568 = vpop.f32.mrf.mxu0
  %v4569 = vadd.f32 %v4556, %v4568
  %v4570 = vpop.f32.mrf.mxu0
  %4571 = vdwg.mxu0
  %4572 = vmatpush.bf16.msra.mxu0 %v4416
  %4573 = vmatpush.bf16.msra.mxu0 %v4415
  %4574 = vmatpush.bf16.msra.mxu0 %v4414
  %4575 = vmatpush.bf16.msra.mxu0 %v4413
  %4576 = vmatpush.bf16.msra.mxu0 %v4412
  %4577 = vmatpush.bf16.msra.mxu0 %v4411
  %4578 = vmatpush.bf16.msra.mxu0 %v4410
  %4579 = vmatpush.bf16.msra.mxu0 %v4409
  %4580 = vmatmul.bf16.gmra.mxu0 %v3980
  %v4581 = vpop.f32.mrf.mxu0
  %v4582 = vadd.f32 %v4569, %v4581
  %v4583 = vpop.f32.mrf.mxu0
  %4584 = vdwg.mxu0
  %4585 = vmatpush.bf16.msra.mxu0 0
  %4586 = vmatpush.bf16.msra.mxu0 %v4492
  %4587 = vmatpush.bf16.msra.mxu0 %v4422
  %4588 = vmatpush.bf16.msra.mxu0 %v4421
  %4589 = vmatpush.bf16.msra.mxu0 %v4420
  %4590 = vmatpush.bf16.msra.mxu0 %v4419
  %4591 = vmatpush.bf16.msra.mxu0 %v4418
  %4592 = vmatpush.bf16.msra.mxu0 %v4417
  %4593 = vmatmul.bf16.gmra.mxu0 %v4488
  %v4594 = vpop.f32.mrf.mxu0
  %v4595 = vadd.f32 %v4582, %v4594
  %v4596 = vpop.f32.mrf.mxu0
  %4597 = vdwg.mxu0
  %vm4598 = vcmask 76800
  %4599 = vst.msk [vmem:[%s5] sm:$0xf] %vm4598, %v4595
  // Predicated region
  $region22: #{simple_convnet_forward.5} parent=0 // pred_check
    _
  $region23: #{simple_convnet_forward.5} parent=0 // pred_check_branch
    %4601 = sbr.rel (0) target = $region25
  $region24: #{simple_convnet_forward.5} parent=0 // pred_region
    _
  $region25: #{simple_convnet_forward.5} parent=0 // pred_fallthru
    _
  // Predicated region
  $region26: #{simple_convnet_forward.5} parent=0 // pred_check
    _
  $region27: #{simple_convnet_forward.5} parent=0 // pred_check_branch
    %4603 = sbr.rel (0) target = $region29
  $region28: #{simple_convnet_forward.5} parent=0 // pred_region
    _
  $region29: #{simple_convnet_forward.5} parent=0 // pred_fallthru
    _

</llo_original>
